<compile_context>
chip_gen: v6e
topology: v6e:2x2x1
jax: 0.10.0
libtpu: 0.0.40
codegen_flags: <defaults>
</compile_context>

<pallas_src>
import functools

import jax
import jax.numpy as jnp
from jax import lax
from jax.experimental import pallas as pl
from jax.experimental.pallas import tpu as pltpu

_LN_EPS = 1e-5  # torch.nn.LayerNorm default


def _layernorm(x, gamma, beta):
    mean = jnp.mean(x, axis=-1, keepdims=True)
    xc = x - mean
    var = jnp.mean(xc * xc, axis=-1, keepdims=True)
    return xc * lax.rsqrt(var + _LN_EPS) * gamma + beta


def _slot_attention_kernel(
    # activations (per-batch blocks)
    x_ref, slots0_ref,
    # q / k / v projections (pre-transposed to x @ W layout)
    wq_ref, bq_ref, wk_ref, bk_ref, wv_ref, bv_ref,
    # GRUCell weights (split per gate, pre-transposed) and merged biases
    w_ir_ref, w_iz_ref, w_in_ref, w_hr_ref, w_hz_ref, w_hn_ref,
    b_r_ref, b_z_ref, b_in_ref, b_hn_ref,
    # MLP
    w1_ref, b1_ref, w2_ref, b2_ref,
    # LayerNorm affine params
    g_in_ref, be_in_ref, g_sl_ref, be_sl_ref, g_ff_ref, be_ff_ref,
    # output
    out_ref,
    *, num_iterations, scale, eps):
    f32 = jnp.float32

    x = x_ref[0].astype(f32)          # [N, C]
    slots = slots0_ref[0].astype(f32)  # [S, C]

    # norm_input + K/V projections: once per batch element, outside the loop.
    x_n = _layernorm(x, g_in_ref[...], be_in_ref[...])
    k = jnp.dot(x_n, wk_ref[...], preferred_element_type=f32) + bk_ref[...]   # [N, C]
    v = jnp.dot(x_n, wv_ref[...], preferred_element_type=f32) + bv_ref[...]   # [N, C]

    for _ in range(num_iterations):
        slots_prev = slots

        s_n = _layernorm(slots, g_sl_ref[...], be_sl_ref[...])
        q = jnp.dot(s_n, wq_ref[...], preferred_element_type=f32) + bq_ref[...]   # [S, C]

        # dots = q @ k^T  -> [S, N]   (contraction over C, no materialized transpose)
        dots = lax.dot_general(q, k, (((1,), (1,)), ((), ())),
                               preferred_element_type=f32) * scale

        # softmax over the SLOT axis (torch: dots.softmax(dim=1) on [B, S, N])
        dots = dots - jnp.max(dots, axis=0, keepdims=True)
        p = jnp.exp(dots)
        attn = p / jnp.sum(p, axis=0, keepdims=True) + eps
        # re-normalize over the input axis N
        attn = attn / jnp.sum(attn, axis=1, keepdims=True)

        updates = jnp.dot(attn, v, preferred_element_type=f32)                    # [S, C]

        # GRUCell(updates, slots_prev)
        r = jax.nn.sigmoid(
            jnp.dot(updates, w_ir_ref[...], preferred_element_type=f32)
            + jnp.dot(slots_prev, w_hr_ref[...], preferred_element_type=f32)
            + b_r_ref[...])
        z = jax.nn.sigmoid(
            jnp.dot(updates, w_iz_ref[...], preferred_element_type=f32)
            + jnp.dot(slots_prev, w_hz_ref[...], preferred_element_type=f32)
            + b_z_ref[...])
        n = jnp.tanh(
            jnp.dot(updates, w_in_ref[...], preferred_element_type=f32) + b_in_ref[...]
            + r * (jnp.dot(slots_prev, w_hn_ref[...], preferred_element_type=f32)
                   + b_hn_ref[...]))
        slots = (1.0 - z) * n + z * slots_prev

        # residual MLP
        s_ff = _layernorm(slots, g_ff_ref[...], be_ff_ref[...])
        h = jnp.maximum(
            jnp.dot(s_ff, w1_ref[...], preferred_element_type=f32) + b1_ref[...], 0.0)
        slots = slots + jnp.dot(h, w2_ref[...], preferred_element_type=f32) + b2_ref[...]

    out_ref[0] = slots.astype(out_ref.dtype)


def _const_spec(shape):
    nd = len(shape)
    return pl.BlockSpec(shape, lambda i, _nd=nd: (0,) * _nd)


def slot_attention_forward(x, noise, params, *, num_iterations, eps=1e-8):
    """x: [B, N, C]; noise: [B, S, C] (standard normal used for slot init);
    params: dict of PyTorch-layout parameters."""
    B, N, C = x.shape
    S = noise.shape[1]
    scale = float(C) ** -0.5
    f32 = jnp.float32

    # ---- batch-invariant / tiny precompute done once in the wrapper ----
    slots0 = (params["slots_mu"].astype(f32)
              + jnp.exp(params["slots_logsigma"].astype(f32)) * noise.astype(f32)
              ).astype(x.dtype)                                        # [B, S, C]

    def T(w):
        return jnp.asarray(w, f32).T

    def row(b):
        return jnp.asarray(b, f32).reshape(1, -1)

    wq, bq = T(params["to_q_w"]), row(params["to_q_b"])
    wk, bk = T(params["to_k_w"]), row(params["to_k_b"])
    wv, bv = T(params["to_v_w"]), row(params["to_v_b"])

    w_ih, w_hh = params["gru_w_ih"], params["gru_w_hh"]                # [3C, C]
    b_ih, b_hh = params["gru_b_ih"], params["gru_b_hh"]                # [3C]
    w_ir, w_iz, w_in = T(w_ih[:C]), T(w_ih[C:2 * C]), T(w_ih[2 * C:])
    w_hr, w_hz, w_hn = T(w_hh[:C]), T(w_hh[C:2 * C]), T(w_hh[2 * C:])
    b_r = row(b_ih[:C] + b_hh[:C])
    b_z = row(b_ih[C:2 * C] + b_hh[C:2 * C])
    b_in = row(b_ih[2 * C:])
    b_hn = row(b_hh[2 * C:])

    w1, b1 = T(params["mlp_w1"]), row(params["mlp_b1"])
    w2, b2 = T(params["mlp_w2"]), row(params["mlp_b2"])

    g_in, be_in = row(params["ln_input_w"]), row(params["ln_input_b"])
    g_sl, be_sl = row(params["ln_slots_w"]), row(params["ln_slots_b"])
    g_ff, be_ff = row(params["ln_pre_ff_w"]), row(params["ln_pre_ff_b"])

    weight_args = (wq, bq, wk, bk, wv, bv,
                   w_ir, w_iz, w_in, w_hr, w_hz, w_hn,
                   b_r, b_z, b_in, b_hn,
                   w1, b1, w2, b2,
                   g_in, be_in, g_sl, be_sl, g_ff, be_ff)
    weight_specs = [_const_spec(w.shape) for w in weight_args]

    kernel = functools.partial(_slot_attention_kernel,
                               num_iterations=int(num_iterations),
                               scale=scale, eps=float(eps))

    out = pl.pallas_call(
        kernel,
        out_shape=jax.ShapeDtypeStruct((B, S, C), x.dtype),
        grid_spec=pltpu.PrefetchScalarGridSpec(
            num_scalar_prefetch=0,
            grid=(B,),
            in_specs=[
                pl.BlockSpec((1, N, C), lambda i: (i, 0, 0)),   # input features
                pl.BlockSpec((1, S, C), lambda i: (i, 0, 0)),   # initial slots
                *weight_specs,                                  # resident weights
            ],
            out_specs=pl.BlockSpec((1, S, C), lambda i: (i, 0, 0)),
        ),
        compiler_params=pltpu.CompilerParams(
            dimension_semantics=("parallel",)),
    )(x, slots0, *weight_args)
    return out


def slot_attention_reference(x, noise, params, *, num_iterations, eps=1e-8):
    """Plain-JAX replica of the PyTorch forward (for correctness checking)."""
    B, N, C = x.shape
    scale = float(C) ** -0.5
    hp = lax.Precision.HIGHEST

    def ln(v, w, b):
        m = jnp.mean(v, -1, keepdims=True)
        var = jnp.mean((v - m) ** 2, -1, keepdims=True)
        return (v - m) / jnp.sqrt(var + _LN_EPS) * w + b

    def lin(v, w, b):   # PyTorch layout: w [out, in]
        return jnp.einsum("...i,oi->...o", v, w, precision=hp) + b

    slots = params["slots_mu"] + jnp.exp(params["slots_logsigma"]) * noise

    xin = ln(x, params["ln_input_w"], params["ln_input_b"])
    k = lin(xin, params["to_k_w"], params["to_k_b"])
    v = lin(xin, params["to_v_w"], params["to_v_b"])

    w_ih, w_hh = params["gru_w_ih"], params["gru_w_hh"]
    b_ih, b_hh = params["gru_b_ih"], params["gru_b_hh"]

    for _ in range(num_iterations):
        slots_prev = slots
        sn = ln(slots, params["ln_slots_w"], params["ln_slots_b"])
        q = lin(sn, params["to_q_w"], params["to_q_b"])
        dots = jnp.einsum("bsc,bnc->bsn", q, k, precision=hp) * scale
        attn = jax.nn.softmax(dots, axis=1) + eps
        attn = attn / jnp.sum(attn, axis=-1, keepdims=True)
        updates = jnp.einsum("bnc,bsn->bsc", v, attn, precision=hp)

        xg = jnp.einsum("bsc,gc->bsg", updates, w_ih, precision=hp) + b_ih
        hg = jnp.einsum("bsc,gc->bsg", slots_prev, w_hh, precision=hp) + b_hh
        xr, xz, xn = jnp.split(xg, 3, axis=-1)
        hr, hz, hn = jnp.split(hg, 3, axis=-1)
        r = jax.nn.sigmoid(xr + hr)
        z = jax.nn.sigmoid(xz + hz)
        n = jnp.tanh(xn + r * hn)
        slots = (1.0 - z) * n + z * slots_prev

        sff = ln(slots, params["ln_pre_ff_w"], params["ln_pre_ff_b"])
        h = jax.nn.relu(lin(sff, params["mlp_w1"], params["mlp_b1"]))
        slots = slots + lin(h, params["mlp_w2"], params["mlp_b2"])
    return slots


if __name__ == "__main__":
    B, N, C = 2, 128, 64          # batch, num input tokens, dim
    S = 4                         # num_slots
    HM = 128                      # mlp_hidden_size = max(dim, mlp_hidden_size)
    ITERS = 3                     # num_iterations
    EPS = 1e-8

    key = jax.random.PRNGKey(0)
    keys = iter(jax.random.split(key, 32))

    def rnd(shape, s=0.1):
        return jax.random.normal(next(keys), shape, jnp.float32) * s

    params = {
        "slots_mu": rnd((1, 1, C), 1.0),
        "slots_logsigma": rnd((1, 1, C), 0.1),
        "to_q_w": rnd((C, C)), "to_q_b": rnd((C,)),
        "to_k_w": rnd((C, C)), "to_k_b": rnd((C,)),
        "to_v_w": rnd((C, C)), "to_v_b": rnd((C,)),
        "gru_w_ih": rnd((3 * C, C)), "gru_b_ih": rnd((3 * C,)),
        "gru_w_hh": rnd((3 * C, C)), "gru_b_hh": rnd((3 * C,)),
        "mlp_w1": rnd((HM, C)), "mlp_b1": rnd((HM,)),
        "mlp_w2": rnd((C, HM)), "mlp_b2": rnd((C,)),
        "ln_input_w": 1.0 + rnd((C,)), "ln_input_b": rnd((C,)),
        "ln_slots_w": 1.0 + rnd((C,)), "ln_slots_b": rnd((C,)),
        "ln_pre_ff_w": 1.0 + rnd((C,)), "ln_pre_ff_b": rnd((C,)),
    }

    x = jax.random.normal(next(keys), (B, N, C), jnp.float32)
    # Deterministic stand-in for torch.randn slot-init noise (sampled in wrapper scope).
    noise = jax.random.normal(next(keys), (B, S, C), jnp.float32)

    out = jax.block_until_ready(
        slot_attention_forward(x, noise, params, num_iterations=ITERS, eps=EPS))

    ref = slot_attention_reference(x, noise, params, num_iterations=ITERS, eps=EPS)

    assert out.shape == (B, S, C) and out.dtype == x.dtype
    max_err = float(jnp.max(jnp.abs(out - ref)))
    assert jnp.allclose(out, ref, atol=1e-3, rtol=1e-3), f"max abs err = {max_err}"
    print("KERNEL_OK")
</pallas_src>

<mosaic_0001>
module attributes {stable_mosaic.version = 11 : i64} {
  func.func @_slot_attention_kernel(%arg0: i32, %arg1: memref<1x128x64xf32, #tpu.memory_space<vmem>>, %arg2: memref<1x4x64xf32, #tpu.memory_space<vmem>>, %arg3: memref<64x64xf32, #tpu.memory_space<vmem>>, %arg4: memref<1x64xf32, #tpu.memory_space<vmem>>, %arg5: memref<64x64xf32, #tpu.memory_space<vmem>>, %arg6: memref<1x64xf32, #tpu.memory_space<vmem>>, %arg7: memref<64x64xf32, #tpu.memory_space<vmem>>, %arg8: memref<1x64xf32, #tpu.memory_space<vmem>>, %arg9: memref<64x64xf32, #tpu.memory_space<vmem>>, %arg10: memref<64x64xf32, #tpu.memory_space<vmem>>, %arg11: memref<64x64xf32, #tpu.memory_space<vmem>>, %arg12: memref<64x64xf32, #tpu.memory_space<vmem>>, %arg13: memref<64x64xf32, #tpu.memory_space<vmem>>, %arg14: memref<64x64xf32, #tpu.memory_space<vmem>>, %arg15: memref<1x64xf32, #tpu.memory_space<vmem>>, %arg16: memref<1x64xf32, #tpu.memory_space<vmem>>, %arg17: memref<1x64xf32, #tpu.memory_space<vmem>>, %arg18: memref<1x64xf32, #tpu.memory_space<vmem>>, %arg19: memref<64x128xf32, #tpu.memory_space<vmem>>, %arg20: memref<1x128xf32, #tpu.memory_space<vmem>>, %arg21: memref<128x64xf32, #tpu.memory_space<vmem>>, %arg22: memref<1x64xf32, #tpu.memory_space<vmem>>, %arg23: memref<1x64xf32, #tpu.memory_space<vmem>>, %arg24: memref<1x64xf32, #tpu.memory_space<vmem>>, %arg25: memref<1x64xf32, #tpu.memory_space<vmem>>, %arg26: memref<1x64xf32, #tpu.memory_space<vmem>>, %arg27: memref<1x64xf32, #tpu.memory_space<vmem>>, %arg28: memref<1x64xf32, #tpu.memory_space<vmem>>, %arg29: memref<1x4x64xf32, #tpu.memory_space<vmem>>) attributes {dimension_semantics = [#tpu.dimension_semantics<parallel>], iteration_bounds = array<i64: 2>, scalar_prefetch = 0 : i64, scratch_operands = 0 : i64, tpu.core_type = #tpu.core_type<tc>, window_params = [{transform_indices = @transform_0, window_bounds = array<i64: 1, 128, 64>}, {transform_indices = @transform_1, window_bounds = array<i64: 1, 4, 64>}, {pipeline_mode = #tpu.pipeline_mode<synchronous>, transform_indices = @transform_2, window_bounds = array<i64: 64, 64>}, {pipeline_mode = #tpu.pipeline_mode<synchronous>, transform_indices = @transform_3, window_bounds = array<i64: 1, 64>}, {pipeline_mode = #tpu.pipeline_mode<synchronous>, transform_indices = @transform_4, window_bounds = array<i64: 64, 64>}, {pipeline_mode = #tpu.pipeline_mode<synchronous>, transform_indices = @transform_5, window_bounds = array<i64: 1, 64>}, {pipeline_mode = #tpu.pipeline_mode<synchronous>, transform_indices = @transform_6, window_bounds = array<i64: 64, 64>}, {pipeline_mode = #tpu.pipeline_mode<synchronous>, transform_indices = @transform_7, window_bounds = array<i64: 1, 64>}, {pipeline_mode = #tpu.pipeline_mode<synchronous>, transform_indices = @transform_8, window_bounds = array<i64: 64, 64>}, {pipeline_mode = #tpu.pipeline_mode<synchronous>, transform_indices = @transform_9, window_bounds = array<i64: 64, 64>}, {pipeline_mode = #tpu.pipeline_mode<synchronous>, transform_indices = @transform_10, window_bounds = array<i64: 64, 64>}, {pipeline_mode = #tpu.pipeline_mode<synchronous>, transform_indices = @transform_11, window_bounds = array<i64: 64, 64>}, {pipeline_mode = #tpu.pipeline_mode<synchronous>, transform_indices = @transform_12, window_bounds = array<i64: 64, 64>}, {pipeline_mode = #tpu.pipeline_mode<synchronous>, transform_indices = @transform_13, window_bounds = array<i64: 64, 64>}, {pipeline_mode = #tpu.pipeline_mode<synchronous>, transform_indices = @transform_14, window_bounds = array<i64: 1, 64>}, {pipeline_mode = #tpu.pipeline_mode<synchronous>, transform_indices = @transform_15, window_bounds = array<i64: 1, 64>}, {pipeline_mode = #tpu.pipeline_mode<synchronous>, transform_indices = @transform_16, window_bounds = array<i64: 1, 64>}, {pipeline_mode = #tpu.pipeline_mode<synchronous>, transform_indices = @transform_17, window_bounds = array<i64: 1, 64>}, {pipeline_mode = #tpu.pipeline_mode<synchronous>, transform_indices = @transform_18, window_bounds = array<i64: 64, 128>}, {pipeline_mode = #tpu.pipeline_mode<synchronous>, transform_indices = @transform_19, window_bounds = array<i64: 1, 128>}, {pipeline_mode = #tpu.pipeline_mode<synchronous>, transform_indices = @transform_20, window_bounds = array<i64: 128, 64>}, {pipeline_mode = #tpu.pipeline_mode<synchronous>, transform_indices = @transform_21, window_bounds = array<i64: 1, 64>}, {pipeline_mode = #tpu.pipeline_mode<synchronous>, transform_indices = @transform_22, window_bounds = array<i64: 1, 64>}, {pipeline_mode = #tpu.pipeline_mode<synchronous>, transform_indices = @transform_23, window_bounds = array<i64: 1, 64>}, {pipeline_mode = #tpu.pipeline_mode<synchronous>, transform_indices = @transform_24, window_bounds = array<i64: 1, 64>}, {pipeline_mode = #tpu.pipeline_mode<synchronous>, transform_indices = @transform_25, window_bounds = array<i64: 1, 64>}, {pipeline_mode = #tpu.pipeline_mode<synchronous>, transform_indices = @transform_26, window_bounds = array<i64: 1, 64>}, {pipeline_mode = #tpu.pipeline_mode<synchronous>, transform_indices = @transform_27, window_bounds = array<i64: 1, 64>}, {transform_indices = @transform_28, window_bounds = array<i64: 1, 4, 64>}]} {
    %c0 = arith.constant 0 : index
    %c0_0 = arith.constant 0 : index
    %c0_1 = arith.constant 0 : index
    %0 = vector.load %arg1[%c0, %c0_0, %c0_1] : memref<1x128x64xf32, #tpu.memory_space<vmem>>, vector<1x128x64xf32>
    %1 = vector.shape_cast %0 : vector<1x128x64xf32> to vector<128x64xf32>
    %c0_2 = arith.constant 0 : index
    %c0_3 = arith.constant 0 : index
    %c0_4 = arith.constant 0 : index
    %2 = vector.load %arg2[%c0_2, %c0_3, %c0_4] : memref<1x4x64xf32, #tpu.memory_space<vmem>>, vector<1x4x64xf32>
    %3 = vector.shape_cast %2 : vector<1x4x64xf32> to vector<4x64xf32>
    %c0_5 = arith.constant 0 : index
    %c0_6 = arith.constant 0 : index
    %4 = vector.load %arg23[%c0_5, %c0_6] : memref<1x64xf32, #tpu.memory_space<vmem>>, vector<1x64xf32>
    %c0_7 = arith.constant 0 : index
    %c0_8 = arith.constant 0 : index
    %5 = vector.load %arg24[%c0_7, %c0_8] : memref<1x64xf32, #tpu.memory_space<vmem>>, vector<1x64xf32>
    %cst = arith.constant dense<0.000000e+00> : vector<128xf32>
    %6 = vector.multi_reduction <add>, %1, %cst [1] : vector<128x64xf32> to vector<128xf32>
    %7 = vector.shape_cast %6 : vector<128xf32> to vector<128x1xf32>
    %cst_9 = arith.constant 6.400000e+01 : f32
    %8 = vector.broadcast %cst_9 : f32 to vector<128x1xf32>
    %9 = arith.divf %7, %8 : vector<128x1xf32>
    %10 = vector.broadcast %9 : vector<128x1xf32> to vector<128x64xf32>
    %11 = arith.subf %1, %10 : vector<128x64xf32>
    %12 = arith.mulf %11, %11 : vector<128x64xf32>
    %cst_10 = arith.constant dense<0.000000e+00> : vector<128xf32>
    %13 = vector.multi_reduction <add>, %12, %cst_10 [1] : vector<128x64xf32> to vector<128xf32>
    %14 = vector.shape_cast %13 : vector<128xf32> to vector<128x1xf32>
    %cst_11 = arith.constant 6.400000e+01 : f32
    %15 = vector.broadcast %cst_11 : f32 to vector<128x1xf32>
    %16 = arith.divf %14, %15 : vector<128x1xf32>
    %cst_12 = arith.constant 9.99999974E-6 : f32
    %17 = vector.broadcast %cst_12 : f32 to vector<128x1xf32>
    %18 = arith.addf %16, %17 : vector<128x1xf32>
    %19 = math.rsqrt %18 : vector<128x1xf32>
    %20 = vector.broadcast %19 : vector<128x1xf32> to vector<128x64xf32>
    %21 = arith.mulf %11, %20 : vector<128x64xf32>
    %22 = vector.broadcast %4 : vector<1x64xf32> to vector<128x64xf32>
    %23 = arith.mulf %21, %22 : vector<128x64xf32>
    %24 = vector.broadcast %5 : vector<1x64xf32> to vector<128x64xf32>
    %25 = arith.addf %23, %24 : vector<128x64xf32>
    %c0_13 = arith.constant 0 : index
    %c0_14 = arith.constant 0 : index
    %26 = vector.load %arg5[%c0_13, %c0_14] : memref<64x64xf32, #tpu.memory_space<vmem>>, vector<64x64xf32>
    %cst_15 = arith.constant dense<0.000000e+00> : vector<128x64xf32>
    %27 = tpu.matmul %25, %26, %cst_15 {dimension_numbers = #tpu.dot_dimension_numbers<[1], [0], [0], [1], [0, 0, 1, 1], [], []>} : vector<128x64xf32>, vector<64x64xf32>, vector<128x64xf32> -> vector<128x64xf32>
    %c0_16 = arith.constant 0 : index
    %c0_17 = arith.constant 0 : index
    %28 = vector.load %arg6[%c0_16, %c0_17] : memref<1x64xf32, #tpu.memory_space<vmem>>, vector<1x64xf32>
    %29 = vector.broadcast %28 : vector<1x64xf32> to vector<128x64xf32>
    %30 = arith.addf %27, %29 : vector<128x64xf32>
    %c0_18 = arith.constant 0 : index
    %c0_19 = arith.constant 0 : index
    %31 = vector.load %arg7[%c0_18, %c0_19] : memref<64x64xf32, #tpu.memory_space<vmem>>, vector<64x64xf32>
    %cst_20 = arith.constant dense<0.000000e+00> : vector<128x64xf32>
    %32 = tpu.matmul %25, %31, %cst_20 {dimension_numbers = #tpu.dot_dimension_numbers<[1], [0], [0], [1], [0, 0, 1, 1], [], []>} : vector<128x64xf32>, vector<64x64xf32>, vector<128x64xf32> -> vector<128x64xf32>
    %c0_21 = arith.constant 0 : index
    %c0_22 = arith.constant 0 : index
    %33 = vector.load %arg8[%c0_21, %c0_22] : memref<1x64xf32, #tpu.memory_space<vmem>>, vector<1x64xf32>
    %34 = vector.broadcast %33 : vector<1x64xf32> to vector<128x64xf32>
    %35 = arith.addf %32, %34 : vector<128x64xf32>
    %c0_23 = arith.constant 0 : index
    %c0_24 = arith.constant 0 : index
    %36 = vector.load %arg25[%c0_23, %c0_24] : memref<1x64xf32, #tpu.memory_space<vmem>>, vector<1x64xf32>
    %c0_25 = arith.constant 0 : index
    %c0_26 = arith.constant 0 : index
    %37 = vector.load %arg26[%c0_25, %c0_26] : memref<1x64xf32, #tpu.memory_space<vmem>>, vector<1x64xf32>
    %cst_27 = arith.constant dense<0.000000e+00> : vector<4xf32>
    %38 = vector.multi_reduction <add>, %3, %cst_27 [1] : vector<4x64xf32> to vector<4xf32>
    %39 = vector.shape_cast %38 : vector<4xf32> to vector<4x1xf32>
    %cst_28 = arith.constant 6.400000e+01 : f32
    %40 = vector.broadcast %cst_28 : f32 to vector<4x1xf32>
    %41 = arith.divf %39, %40 : vector<4x1xf32>
    %42 = vector.broadcast %41 : vector<4x1xf32> to vector<4x64xf32>
    %43 = arith.subf %3, %42 : vector<4x64xf32>
    %44 = arith.mulf %43, %43 : vector<4x64xf32>
    %cst_29 = arith.constant dense<0.000000e+00> : vector<4xf32>
    %45 = vector.multi_reduction <add>, %44, %cst_29 [1] : vector<4x64xf32> to vector<4xf32>
    %46 = vector.shape_cast %45 : vector<4xf32> to vector<4x1xf32>
    %cst_30 = arith.constant 6.400000e+01 : f32
    %47 = vector.broadcast %cst_30 : f32 to vector<4x1xf32>
    %48 = arith.divf %46, %47 : vector<4x1xf32>
    %cst_31 = arith.constant 9.99999974E-6 : f32
    %49 = vector.broadcast %cst_31 : f32 to vector<4x1xf32>
    %50 = arith.addf %48, %49 : vector<4x1xf32>
    %51 = math.rsqrt %50 : vector<4x1xf32>
    %52 = vector.broadcast %51 : vector<4x1xf32> to vector<4x64xf32>
    %53 = arith.mulf %43, %52 : vector<4x64xf32>
    %54 = vector.broadcast %36 : vector<1x64xf32> to vector<4x64xf32>
    %55 = arith.mulf %53, %54 : vector<4x64xf32>
    %56 = vector.broadcast %37 : vector<1x64xf32> to vector<4x64xf32>
    %57 = arith.addf %55, %56 : vector<4x64xf32>
    %c0_32 = arith.constant 0 : index
    %c0_33 = arith.constant 0 : index
    %58 = vector.load %arg3[%c0_32, %c0_33] : memref<64x64xf32, #tpu.memory_space<vmem>>, vector<64x64xf32>
    %cst_34 = arith.constant dense<0.000000e+00> : vector<4x64xf32>
    %59 = tpu.matmul %57, %58, %cst_34 {dimension_numbers = #tpu.dot_dimension_numbers<[1], [0], [0], [1], [0, 0, 1, 1], [], []>} : vector<4x64xf32>, vector<64x64xf32>, vector<4x64xf32> -> vector<4x64xf32>
    %c0_35 = arith.constant 0 : index
    %c0_36 = arith.constant 0 : index
    %60 = vector.load %arg4[%c0_35, %c0_36] : memref<1x64xf32, #tpu.memory_space<vmem>>, vector<1x64xf32>
    %61 = vector.broadcast %60 : vector<1x64xf32> to vector<4x64xf32>
    %62 = arith.addf %59, %61 : vector<4x64xf32>
    %cst_37 = arith.constant dense<0.000000e+00> : vector<4x128xf32>
    %63 = tpu.matmul %62, %30, %cst_37 {dimension_numbers = #tpu.dot_dimension_numbers<[1], [1], [0], [0], [0, 0, 1, 0], [], []>} : vector<4x64xf32>, vector<128x64xf32>, vector<4x128xf32> -> vector<4x128xf32>
    %cst_38 = arith.constant 1.250000e-01 : f32
    %64 = vector.broadcast %cst_38 : f32 to vector<4x128xf32>
    %65 = arith.mulf %63, %64 : vector<4x128xf32>
    %cst_39 = arith.constant dense<0xFF800000> : vector<128xf32>
    %66 = vector.multi_reduction <maximumf>, %65, %cst_39 [0] : vector<4x128xf32> to vector<128xf32>
    %67 = vector.shape_cast %66 : vector<128xf32> to vector<1x128xf32>
    %68 = vector.broadcast %67 : vector<1x128xf32> to vector<4x128xf32>
    %69 = arith.subf %65, %68 : vector<4x128xf32>
    %70 = math.exp %69 : vector<4x128xf32>
    %cst_40 = arith.constant dense<0.000000e+00> : vector<128xf32>
    %71 = vector.multi_reduction <add>, %70, %cst_40 [0] : vector<4x128xf32> to vector<128xf32>
    %72 = vector.shape_cast %71 : vector<128xf32> to vector<1x128xf32>
    %73 = vector.broadcast %72 : vector<1x128xf32> to vector<4x128xf32>
    %74 = arith.divf %70, %73 : vector<4x128xf32>
    %cst_41 = arith.constant 9.99999993E-9 : f32
    %75 = vector.broadcast %cst_41 : f32 to vector<4x128xf32>
    %76 = arith.addf %74, %75 : vector<4x128xf32>
    %cst_42 = arith.constant dense<0.000000e+00> : vector<4xf32>
    %77 = vector.multi_reduction <add>, %76, %cst_42 [1] : vector<4x128xf32> to vector<4xf32>
    %78 = vector.shape_cast %77 : vector<4xf32> to vector<4x1xf32>
    %79 = vector.broadcast %78 : vector<4x1xf32> to vector<4x128xf32>
    %80 = arith.divf %76, %79 : vector<4x128xf32>
    %cst_43 = arith.constant dense<0.000000e+00> : vector<4x64xf32>
    %81 = tpu.matmul %80, %35, %cst_43 {dimension_numbers = #tpu.dot_dimension_numbers<[1], [0], [0], [1], [0, 0, 1, 1], [], []>} : vector<4x128xf32>, vector<128x64xf32>, vector<4x64xf32> -> vector<4x64xf32>
    %c0_44 = arith.constant 0 : index
    %c0_45 = arith.constant 0 : index
    %82 = vector.load %arg9[%c0_44, %c0_45] : memref<64x64xf32, #tpu.memory_space<vmem>>, vector<64x64xf32>
    %cst_46 = arith.constant dense<0.000000e+00> : vector<4x64xf32>
    %83 = tpu.matmul %81, %82, %cst_46 {dimension_numbers = #tpu.dot_dimension_numbers<[1], [0], [0], [1], [0, 0, 1, 1], [], []>} : vector<4x64xf32>, vector<64x64xf32>, vector<4x64xf32> -> vector<4x64xf32>
    %c0_47 = arith.constant 0 : index
    %c0_48 = arith.constant 0 : index
    %84 = vector.load %arg12[%c0_47, %c0_48] : memref<64x64xf32, #tpu.memory_space<vmem>>, vector<64x64xf32>
    %cst_49 = arith.constant dense<0.000000e+00> : vector<4x64xf32>
    %85 = tpu.matmul %3, %84, %cst_49 {dimension_numbers = #tpu.dot_dimension_numbers<[1], [0], [0], [1], [0, 0, 1, 1], [], []>} : vector<4x64xf32>, vector<64x64xf32>, vector<4x64xf32> -> vector<4x64xf32>
    %86 = arith.addf %83, %85 : vector<4x64xf32>
    %c0_50 = arith.constant 0 : index
    %c0_51 = arith.constant 0 : index
    %87 = vector.load %arg15[%c0_50, %c0_51] : memref<1x64xf32, #tpu.memory_space<vmem>>, vector<1x64xf32>
    %88 = vector.broadcast %87 : vector<1x64xf32> to vector<4x64xf32>
    %89 = arith.addf %86, %88 : vector<4x64xf32>
    %90 = arith.negf %89 : vector<4x64xf32>
    %91 = math.exp %90 : vector<4x64xf32>
    %cst_52 = arith.constant 1.000000e+00 : f32
    %92 = vector.broadcast %cst_52 : f32 to vector<4x64xf32>
    %93 = arith.addf %92, %91 : vector<4x64xf32>
    %94 = arith.divf %92, %93 : vector<4x64xf32>
    %c0_53 = arith.constant 0 : index
    %c0_54 = arith.constant 0 : index
    %95 = vector.load %arg10[%c0_53, %c0_54] : memref<64x64xf32, #tpu.memory_space<vmem>>, vector<64x64xf32>
    %cst_55 = arith.constant dense<0.000000e+00> : vector<4x64xf32>
    %96 = tpu.matmul %81, %95, %cst_55 {dimension_numbers = #tpu.dot_dimension_numbers<[1], [0], [0], [1], [0, 0, 1, 1], [], []>} : vector<4x64xf32>, vector<64x64xf32>, vector<4x64xf32> -> vector<4x64xf32>
    %c0_56 = arith.constant 0 : index
    %c0_57 = arith.constant 0 : index
    %97 = vector.load %arg13[%c0_56, %c0_57] : memref<64x64xf32, #tpu.memory_space<vmem>>, vector<64x64xf32>
    %cst_58 = arith.constant dense<0.000000e+00> : vector<4x64xf32>
    %98 = tpu.matmul %3, %97, %cst_58 {dimension_numbers = #tpu.dot_dimension_numbers<[1], [0], [0], [1], [0, 0, 1, 1], [], []>} : vector<4x64xf32>, vector<64x64xf32>, vector<4x64xf32> -> vector<4x64xf32>
    %99 = arith.addf %96, %98 : vector<4x64xf32>
    %c0_59 = arith.constant 0 : index
    %c0_60 = arith.constant 0 : index
    %100 = vector.load %arg16[%c0_59, %c0_60] : memref<1x64xf32, #tpu.memory_space<vmem>>, vector<1x64xf32>
    %101 = vector.broadcast %100 : vector<1x64xf32> to vector<4x64xf32>
    %102 = arith.addf %99, %101 : vector<4x64xf32>
    %103 = arith.negf %102 : vector<4x64xf32>
    %104 = math.exp %103 : vector<4x64xf32>
    %cst_61 = arith.constant 1.000000e+00 : f32
    %105 = vector.broadcast %cst_61 : f32 to vector<4x64xf32>
    %106 = arith.addf %105, %104 : vector<4x64xf32>
    %107 = arith.divf %105, %106 : vector<4x64xf32>
    %c0_62 = arith.constant 0 : index
    %c0_63 = arith.constant 0 : index
    %108 = vector.load %arg11[%c0_62, %c0_63] : memref<64x64xf32, #tpu.memory_space<vmem>>, vector<64x64xf32>
    %cst_64 = arith.constant dense<0.000000e+00> : vector<4x64xf32>
    %109 = tpu.matmul %81, %108, %cst_64 {dimension_numbers = #tpu.dot_dimension_numbers<[1], [0], [0], [1], [0, 0, 1, 1], [], []>} : vector<4x64xf32>, vector<64x64xf32>, vector<4x64xf32> -> vector<4x64xf32>
    %c0_65 = arith.constant 0 : index
    %c0_66 = arith.constant 0 : index
    %110 = vector.load %arg17[%c0_65, %c0_66] : memref<1x64xf32, #tpu.memory_space<vmem>>, vector<1x64xf32>
    %111 = vector.broadcast %110 : vector<1x64xf32> to vector<4x64xf32>
    %112 = arith.addf %109, %111 : vector<4x64xf32>
    %c0_67 = arith.constant 0 : index
    %c0_68 = arith.constant 0 : index
    %113 = vector.load %arg14[%c0_67, %c0_68] : memref<64x64xf32, #tpu.memory_space<vmem>>, vector<64x64xf32>
    %cst_69 = arith.constant dense<0.000000e+00> : vector<4x64xf32>
    %114 = tpu.matmul %3, %113, %cst_69 {dimension_numbers = #tpu.dot_dimension_numbers<[1], [0], [0], [1], [0, 0, 1, 1], [], []>} : vector<4x64xf32>, vector<64x64xf32>, vector<4x64xf32> -> vector<4x64xf32>
    %c0_70 = arith.constant 0 : index
    %c0_71 = arith.constant 0 : index
    %115 = vector.load %arg18[%c0_70, %c0_71] : memref<1x64xf32, #tpu.memory_space<vmem>>, vector<1x64xf32>
    %116 = vector.broadcast %115 : vector<1x64xf32> to vector<4x64xf32>
    %117 = arith.addf %114, %116 : vector<4x64xf32>
    %118 = arith.mulf %94, %117 : vector<4x64xf32>
    %119 = arith.addf %112, %118 : vector<4x64xf32>
    %120 = math.tanh %119 : vector<4x64xf32>
    %cst_72 = arith.constant 1.000000e+00 : f32
    %121 = vector.broadcast %cst_72 : f32 to vector<4x64xf32>
    %122 = arith.subf %121, %107 : vector<4x64xf32>
    %123 = arith.mulf %122, %120 : vector<4x64xf32>
    %124 = arith.mulf %107, %3 : vector<4x64xf32>
    %125 = arith.addf %123, %124 : vector<4x64xf32>
    %c0_73 = arith.constant 0 : index
    %c0_74 = arith.constant 0 : index
    %126 = vector.load %arg27[%c0_73, %c0_74] : memref<1x64xf32, #tpu.memory_space<vmem>>, vector<1x64xf32>
    %c0_75 = arith.constant 0 : index
    %c0_76 = arith.constant 0 : index
    %127 = vector.load %arg28[%c0_75, %c0_76] : memref<1x64xf32, #tpu.memory_space<vmem>>, vector<1x64xf32>
    %cst_77 = arith.constant dense<0.000000e+00> : vector<4xf32>
    %128 = vector.multi_reduction <add>, %125, %cst_77 [1] : vector<4x64xf32> to vector<4xf32>
    %129 = vector.shape_cast %128 : vector<4xf32> to vector<4x1xf32>
    %cst_78 = arith.constant 6.400000e+01 : f32
    %130 = vector.broadcast %cst_78 : f32 to vector<4x1xf32>
    %131 = arith.divf %129, %130 : vector<4x1xf32>
    %132 = vector.broadcast %131 : vector<4x1xf32> to vector<4x64xf32>
    %133 = arith.subf %125, %132 : vector<4x64xf32>
    %134 = arith.mulf %133, %133 : vector<4x64xf32>
    %cst_79 = arith.constant dense<0.000000e+00> : vector<4xf32>
    %135 = vector.multi_reduction <add>, %134, %cst_79 [1] : vector<4x64xf32> to vector<4xf32>
    %136 = vector.shape_cast %135 : vector<4xf32> to vector<4x1xf32>
    %cst_80 = arith.constant 6.400000e+01 : f32
    %137 = vector.broadcast %cst_80 : f32 to vector<4x1xf32>
    %138 = arith.divf %136, %137 : vector<4x1xf32>
    %cst_81 = arith.constant 9.99999974E-6 : f32
    %139 = vector.broadcast %cst_81 : f32 to vector<4x1xf32>
    %140 = arith.addf %138, %139 : vector<4x1xf32>
    %141 = math.rsqrt %140 : vector<4x1xf32>
    %142 = vector.broadcast %141 : vector<4x1xf32> to vector<4x64xf32>
    %143 = arith.mulf %133, %142 : vector<4x64xf32>
    %144 = vector.broadcast %126 : vector<1x64xf32> to vector<4x64xf32>
    %145 = arith.mulf %143, %144 : vector<4x64xf32>
    %146 = vector.broadcast %127 : vector<1x64xf32> to vector<4x64xf32>
    %147 = arith.addf %145, %146 : vector<4x64xf32>
    %c0_82 = arith.constant 0 : index
    %c0_83 = arith.constant 0 : index
    %148 = vector.load %arg19[%c0_82, %c0_83] : memref<64x128xf32, #tpu.memory_space<vmem>>, vector<64x128xf32>
    %cst_84 = arith.constant dense<0.000000e+00> : vector<4x128xf32>
    %149 = tpu.matmul %147, %148, %cst_84 {dimension_numbers = #tpu.dot_dimension_numbers<[1], [0], [0], [1], [0, 0, 1, 1], [], []>} : vector<4x64xf32>, vector<64x128xf32>, vector<4x128xf32> -> vector<4x128xf32>
    %c0_85 = arith.constant 0 : index
    %c0_86 = arith.constant 0 : index
    %150 = vector.load %arg20[%c0_85, %c0_86] : memref<1x128xf32, #tpu.memory_space<vmem>>, vector<1x128xf32>
    %151 = vector.broadcast %150 : vector<1x128xf32> to vector<4x128xf32>
    %152 = arith.addf %149, %151 : vector<4x128xf32>
    %cst_87 = arith.constant 0.000000e+00 : f32
    %153 = vector.broadcast %cst_87 : f32 to vector<4x128xf32>
    %154 = arith.maximumf %152, %153 : vector<4x128xf32>
    %c0_88 = arith.constant 0 : index
    %c0_89 = arith.constant 0 : index
    %155 = vector.load %arg21[%c0_88, %c0_89] : memref<128x64xf32, #tpu.memory_space<vmem>>, vector<128x64xf32>
    %cst_90 = arith.constant dense<0.000000e+00> : vector<4x64xf32>
    %156 = tpu.matmul %154, %155, %cst_90 {dimension_numbers = #tpu.dot_dimension_numbers<[1], [0], [0], [1], [0, 0, 1, 1], [], []>} : vector<4x128xf32>, vector<128x64xf32>, vector<4x64xf32> -> vector<4x64xf32>
    %157 = arith.addf %125, %156 : vector<4x64xf32>
    %c0_91 = arith.constant 0 : index
    %c0_92 = arith.constant 0 : index
    %158 = vector.load %arg22[%c0_91, %c0_92] : memref<1x64xf32, #tpu.memory_space<vmem>>, vector<1x64xf32>
    %159 = vector.broadcast %158 : vector<1x64xf32> to vector<4x64xf32>
    %160 = arith.addf %157, %159 : vector<4x64xf32>
    %c0_93 = arith.constant 0 : index
    %c0_94 = arith.constant 0 : index
    %161 = vector.load %arg25[%c0_93, %c0_94] : memref<1x64xf32, #tpu.memory_space<vmem>>, vector<1x64xf32>
    %c0_95 = arith.constant 0 : index
    %c0_96 = arith.constant 0 : index
    %162 = vector.load %arg26[%c0_95, %c0_96] : memref<1x64xf32, #tpu.memory_space<vmem>>, vector<1x64xf32>
    %cst_97 = arith.constant dense<0.000000e+00> : vector<4xf32>
    %163 = vector.multi_reduction <add>, %160, %cst_97 [1] : vector<4x64xf32> to vector<4xf32>
    %164 = vector.shape_cast %163 : vector<4xf32> to vector<4x1xf32>
    %cst_98 = arith.constant 6.400000e+01 : f32
    %165 = vector.broadcast %cst_98 : f32 to vector<4x1xf32>
    %166 = arith.divf %164, %165 : vector<4x1xf32>
    %167 = vector.broadcast %166 : vector<4x1xf32> to vector<4x64xf32>
    %168 = arith.subf %160, %167 : vector<4x64xf32>
    %169 = arith.mulf %168, %168 : vector<4x64xf32>
    %cst_99 = arith.constant dense<0.000000e+00> : vector<4xf32>
    %170 = vector.multi_reduction <add>, %169, %cst_99 [1] : vector<4x64xf32> to vector<4xf32>
    %171 = vector.shape_cast %170 : vector<4xf32> to vector<4x1xf32>
    %cst_100 = arith.constant 6.400000e+01 : f32
    %172 = vector.broadcast %cst_100 : f32 to vector<4x1xf32>
    %173 = arith.divf %171, %172 : vector<4x1xf32>
    %cst_101 = arith.constant 9.99999974E-6 : f32
    %174 = vector.broadcast %cst_101 : f32 to vector<4x1xf32>
    %175 = arith.addf %173, %174 : vector<4x1xf32>
    %176 = math.rsqrt %175 : vector<4x1xf32>
    %177 = vector.broadcast %176 : vector<4x1xf32> to vector<4x64xf32>
    %178 = arith.mulf %168, %177 : vector<4x64xf32>
    %179 = vector.broadcast %161 : vector<1x64xf32> to vector<4x64xf32>
    %180 = arith.mulf %178, %179 : vector<4x64xf32>
    %181 = vector.broadcast %162 : vector<1x64xf32> to vector<4x64xf32>
    %182 = arith.addf %180, %181 : vector<4x64xf32>
    %c0_102 = arith.constant 0 : index
    %c0_103 = arith.constant 0 : index
    %183 = vector.load %arg3[%c0_102, %c0_103] : memref<64x64xf32, #tpu.memory_space<vmem>>, vector<64x64xf32>
    %cst_104 = arith.constant dense<0.000000e+00> : vector<4x64xf32>
    %184 = tpu.matmul %182, %183, %cst_104 {dimension_numbers = #tpu.dot_dimension_numbers<[1], [0], [0], [1], [0, 0, 1, 1], [], []>} : vector<4x64xf32>, vector<64x64xf32>, vector<4x64xf32> -> vector<4x64xf32>
    %c0_105 = arith.constant 0 : index
    %c0_106 = arith.constant 0 : index
    %185 = vector.load %arg4[%c0_105, %c0_106] : memref<1x64xf32, #tpu.memory_space<vmem>>, vector<1x64xf32>
    %186 = vector.broadcast %185 : vector<1x64xf32> to vector<4x64xf32>
    %187 = arith.addf %184, %186 : vector<4x64xf32>
    %cst_107 = arith.constant dense<0.000000e+00> : vector<4x128xf32>
    %188 = tpu.matmul %187, %30, %cst_107 {dimension_numbers = #tpu.dot_dimension_numbers<[1], [1], [0], [0], [0, 0, 1, 0], [], []>} : vector<4x64xf32>, vector<128x64xf32>, vector<4x128xf32> -> vector<4x128xf32>
    %cst_108 = arith.constant 1.250000e-01 : f32
    %189 = vector.broadcast %cst_108 : f32 to vector<4x128xf32>
    %190 = arith.mulf %188, %189 : vector<4x128xf32>
    %cst_109 = arith.constant dense<0xFF800000> : vector<128xf32>
    %191 = vector.multi_reduction <maximumf>, %190, %cst_109 [0] : vector<4x128xf32> to vector<128xf32>
    %192 = vector.shape_cast %191 : vector<128xf32> to vector<1x128xf32>
    %193 = vector.broadcast %192 : vector<1x128xf32> to vector<4x128xf32>
    %194 = arith.subf %190, %193 : vector<4x128xf32>
    %195 = math.exp %194 : vector<4x128xf32>
    %cst_110 = arith.constant dense<0.000000e+00> : vector<128xf32>
    %196 = vector.multi_reduction <add>, %195, %cst_110 [0] : vector<4x128xf32> to vector<128xf32>
    %197 = vector.shape_cast %196 : vector<128xf32> to vector<1x128xf32>
    %198 = vector.broadcast %197 : vector<1x128xf32> to vector<4x128xf32>
    %199 = arith.divf %195, %198 : vector<4x128xf32>
    %cst_111 = arith.constant 9.99999993E-9 : f32
    %200 = vector.broadcast %cst_111 : f32 to vector<4x128xf32>
    %201 = arith.addf %199, %200 : vector<4x128xf32>
    %cst_112 = arith.constant dense<0.000000e+00> : vector<4xf32>
    %202 = vector.multi_reduction <add>, %201, %cst_112 [1] : vector<4x128xf32> to vector<4xf32>
    %203 = vector.shape_cast %202 : vector<4xf32> to vector<4x1xf32>
    %204 = vector.broadcast %203 : vector<4x1xf32> to vector<4x128xf32>
    %205 = arith.divf %201, %204 : vector<4x128xf32>
    %cst_113 = arith.constant dense<0.000000e+00> : vector<4x64xf32>
    %206 = tpu.matmul %205, %35, %cst_113 {dimension_numbers = #tpu.dot_dimension_numbers<[1], [0], [0], [1], [0, 0, 1, 1], [], []>} : vector<4x128xf32>, vector<128x64xf32>, vector<4x64xf32> -> vector<4x64xf32>
    %c0_114 = arith.constant 0 : index
    %c0_115 = arith.constant 0 : index
    %207 = vector.load %arg9[%c0_114, %c0_115] : memref<64x64xf32, #tpu.memory_space<vmem>>, vector<64x64xf32>
    %cst_116 = arith.constant dense<0.000000e+00> : vector<4x64xf32>
    %208 = tpu.matmul %206, %207, %cst_116 {dimension_numbers = #tpu.dot_dimension_numbers<[1], [0], [0], [1], [0, 0, 1, 1], [], []>} : vector<4x64xf32>, vector<64x64xf32>, vector<4x64xf32> -> vector<4x64xf32>
    %c0_117 = arith.constant 0 : index
    %c0_118 = arith.constant 0 : index
    %209 = vector.load %arg12[%c0_117, %c0_118] : memref<64x64xf32, #tpu.memory_space<vmem>>, vector<64x64xf32>
    %cst_119 = arith.constant dense<0.000000e+00> : vector<4x64xf32>
    %210 = tpu.matmul %160, %209, %cst_119 {dimension_numbers = #tpu.dot_dimension_numbers<[1], [0], [0], [1], [0, 0, 1, 1], [], []>} : vector<4x64xf32>, vector<64x64xf32>, vector<4x64xf32> -> vector<4x64xf32>
    %211 = arith.addf %208, %210 : vector<4x64xf32>
    %c0_120 = arith.constant 0 : index
    %c0_121 = arith.constant 0 : index
    %212 = vector.load %arg15[%c0_120, %c0_121] : memref<1x64xf32, #tpu.memory_space<vmem>>, vector<1x64xf32>
    %213 = vector.broadcast %212 : vector<1x64xf32> to vector<4x64xf32>
    %214 = arith.addf %211, %213 : vector<4x64xf32>
    %215 = arith.negf %214 : vector<4x64xf32>
    %216 = math.exp %215 : vector<4x64xf32>
    %cst_122 = arith.constant 1.000000e+00 : f32
    %217 = vector.broadcast %cst_122 : f32 to vector<4x64xf32>
    %218 = arith.addf %217, %216 : vector<4x64xf32>
    %219 = arith.divf %217, %218 : vector<4x64xf32>
    %c0_123 = arith.constant 0 : index
    %c0_124 = arith.constant 0 : index
    %220 = vector.load %arg10[%c0_123, %c0_124] : memref<64x64xf32, #tpu.memory_space<vmem>>, vector<64x64xf32>
    %cst_125 = arith.constant dense<0.000000e+00> : vector<4x64xf32>
    %221 = tpu.matmul %206, %220, %cst_125 {dimension_numbers = #tpu.dot_dimension_numbers<[1], [0], [0], [1], [0, 0, 1, 1], [], []>} : vector<4x64xf32>, vector<64x64xf32>, vector<4x64xf32> -> vector<4x64xf32>
    %c0_126 = arith.constant 0 : index
    %c0_127 = arith.constant 0 : index
    %222 = vector.load %arg13[%c0_126, %c0_127] : memref<64x64xf32, #tpu.memory_space<vmem>>, vector<64x64xf32>
    %cst_128 = arith.constant dense<0.000000e+00> : vector<4x64xf32>
    %223 = tpu.matmul %160, %222, %cst_128 {dimension_numbers = #tpu.dot_dimension_numbers<[1], [0], [0], [1], [0, 0, 1, 1], [], []>} : vector<4x64xf32>, vector<64x64xf32>, vector<4x64xf32> -> vector<4x64xf32>
    %224 = arith.addf %221, %223 : vector<4x64xf32>
    %c0_129 = arith.constant 0 : index
    %c0_130 = arith.constant 0 : index
    %225 = vector.load %arg16[%c0_129, %c0_130] : memref<1x64xf32, #tpu.memory_space<vmem>>, vector<1x64xf32>
    %226 = vector.broadcast %225 : vector<1x64xf32> to vector<4x64xf32>
    %227 = arith.addf %224, %226 : vector<4x64xf32>
    %228 = arith.negf %227 : vector<4x64xf32>
    %229 = math.exp %228 : vector<4x64xf32>
    %cst_131 = arith.constant 1.000000e+00 : f32
    %230 = vector.broadcast %cst_131 : f32 to vector<4x64xf32>
    %231 = arith.addf %230, %229 : vector<4x64xf32>
    %232 = arith.divf %230, %231 : vector<4x64xf32>
    %c0_132 = arith.constant 0 : index
    %c0_133 = arith.constant 0 : index
    %233 = vector.load %arg11[%c0_132, %c0_133] : memref<64x64xf32, #tpu.memory_space<vmem>>, vector<64x64xf32>
    %cst_134 = arith.constant dense<0.000000e+00> : vector<4x64xf32>
    %234 = tpu.matmul %206, %233, %cst_134 {dimension_numbers = #tpu.dot_dimension_numbers<[1], [0], [0], [1], [0, 0, 1, 1], [], []>} : vector<4x64xf32>, vector<64x64xf32>, vector<4x64xf32> -> vector<4x64xf32>
    %c0_135 = arith.constant 0 : index
    %c0_136 = arith.constant 0 : index
    %235 = vector.load %arg17[%c0_135, %c0_136] : memref<1x64xf32, #tpu.memory_space<vmem>>, vector<1x64xf32>
    %236 = vector.broadcast %235 : vector<1x64xf32> to vector<4x64xf32>
    %237 = arith.addf %234, %236 : vector<4x64xf32>
    %c0_137 = arith.constant 0 : index
    %c0_138 = arith.constant 0 : index
    %238 = vector.load %arg14[%c0_137, %c0_138] : memref<64x64xf32, #tpu.memory_space<vmem>>, vector<64x64xf32>
    %cst_139 = arith.constant dense<0.000000e+00> : vector<4x64xf32>
    %239 = tpu.matmul %160, %238, %cst_139 {dimension_numbers = #tpu.dot_dimension_numbers<[1], [0], [0], [1], [0, 0, 1, 1], [], []>} : vector<4x64xf32>, vector<64x64xf32>, vector<4x64xf32> -> vector<4x64xf32>
    %c0_140 = arith.constant 0 : index
    %c0_141 = arith.constant 0 : index
    %240 = vector.load %arg18[%c0_140, %c0_141] : memref<1x64xf32, #tpu.memory_space<vmem>>, vector<1x64xf32>
    %241 = vector.broadcast %240 : vector<1x64xf32> to vector<4x64xf32>
    %242 = arith.addf %239, %241 : vector<4x64xf32>
    %243 = arith.mulf %219, %242 : vector<4x64xf32>
    %244 = arith.addf %237, %243 : vector<4x64xf32>
    %245 = math.tanh %244 : vector<4x64xf32>
    %cst_142 = arith.constant 1.000000e+00 : f32
    %246 = vector.broadcast %cst_142 : f32 to vector<4x64xf32>
    %247 = arith.subf %246, %232 : vector<4x64xf32>
    %248 = arith.mulf %247, %245 : vector<4x64xf32>
    %249 = arith.mulf %232, %160 : vector<4x64xf32>
    %250 = arith.addf %248, %249 : vector<4x64xf32>
    %c0_143 = arith.constant 0 : index
    %c0_144 = arith.constant 0 : index
    %251 = vector.load %arg27[%c0_143, %c0_144] : memref<1x64xf32, #tpu.memory_space<vmem>>, vector<1x64xf32>
    %c0_145 = arith.constant 0 : index
    %c0_146 = arith.constant 0 : index
    %252 = vector.load %arg28[%c0_145, %c0_146] : memref<1x64xf32, #tpu.memory_space<vmem>>, vector<1x64xf32>
    %cst_147 = arith.constant dense<0.000000e+00> : vector<4xf32>
    %253 = vector.multi_reduction <add>, %250, %cst_147 [1] : vector<4x64xf32> to vector<4xf32>
    %254 = vector.shape_cast %253 : vector<4xf32> to vector<4x1xf32>
    %cst_148 = arith.constant 6.400000e+01 : f32
    %255 = vector.broadcast %cst_148 : f32 to vector<4x1xf32>
    %256 = arith.divf %254, %255 : vector<4x1xf32>
    %257 = vector.broadcast %256 : vector<4x1xf32> to vector<4x64xf32>
    %258 = arith.subf %250, %257 : vector<4x64xf32>
    %259 = arith.mulf %258, %258 : vector<4x64xf32>
    %cst_149 = arith.constant dense<0.000000e+00> : vector<4xf32>
    %260 = vector.multi_reduction <add>, %259, %cst_149 [1] : vector<4x64xf32> to vector<4xf32>
    %261 = vector.shape_cast %260 : vector<4xf32> to vector<4x1xf32>
    %cst_150 = arith.constant 6.400000e+01 : f32
    %262 = vector.broadcast %cst_150 : f32 to vector<4x1xf32>
    %263 = arith.divf %261, %262 : vector<4x1xf32>
    %cst_151 = arith.constant 9.99999974E-6 : f32
    %264 = vector.broadcast %cst_151 : f32 to vector<4x1xf32>
    %265 = arith.addf %263, %264 : vector<4x1xf32>
    %266 = math.rsqrt %265 : vector<4x1xf32>
    %267 = vector.broadcast %266 : vector<4x1xf32> to vector<4x64xf32>
    %268 = arith.mulf %258, %267 : vector<4x64xf32>
    %269 = vector.broadcast %251 : vector<1x64xf32> to vector<4x64xf32>
    %270 = arith.mulf %268, %269 : vector<4x64xf32>
    %271 = vector.broadcast %252 : vector<1x64xf32> to vector<4x64xf32>
    %272 = arith.addf %270, %271 : vector<4x64xf32>
    %c0_152 = arith.constant 0 : index
    %c0_153 = arith.constant 0 : index
    %273 = vector.load %arg19[%c0_152, %c0_153] : memref<64x128xf32, #tpu.memory_space<vmem>>, vector<64x128xf32>
    %cst_154 = arith.constant dense<0.000000e+00> : vector<4x128xf32>
    %274 = tpu.matmul %272, %273, %cst_154 {dimension_numbers = #tpu.dot_dimension_numbers<[1], [0], [0], [1], [0, 0, 1, 1], [], []>} : vector<4x64xf32>, vector<64x128xf32>, vector<4x128xf32> -> vector<4x128xf32>
    %c0_155 = arith.constant 0 : index
    %c0_156 = arith.constant 0 : index
    %275 = vector.load %arg20[%c0_155, %c0_156] : memref<1x128xf32, #tpu.memory_space<vmem>>, vector<1x128xf32>
    %276 = vector.broadcast %275 : vector<1x128xf32> to vector<4x128xf32>
    %277 = arith.addf %274, %276 : vector<4x128xf32>
    %cst_157 = arith.constant 0.000000e+00 : f32
    %278 = vector.broadcast %cst_157 : f32 to vector<4x128xf32>
    %279 = arith.maximumf %277, %278 : vector<4x128xf32>
    %c0_158 = arith.constant 0 : index
    %c0_159 = arith.constant 0 : index
    %280 = vector.load %arg21[%c0_158, %c0_159] : memref<128x64xf32, #tpu.memory_space<vmem>>, vector<128x64xf32>
    %cst_160 = arith.constant dense<0.000000e+00> : vector<4x64xf32>
    %281 = tpu.matmul %279, %280, %cst_160 {dimension_numbers = #tpu.dot_dimension_numbers<[1], [0], [0], [1], [0, 0, 1, 1], [], []>} : vector<4x128xf32>, vector<128x64xf32>, vector<4x64xf32> -> vector<4x64xf32>
    %282 = arith.addf %250, %281 : vector<4x64xf32>
    %c0_161 = arith.constant 0 : index
    %c0_162 = arith.constant 0 : index
    %283 = vector.load %arg22[%c0_161, %c0_162] : memref<1x64xf32, #tpu.memory_space<vmem>>, vector<1x64xf32>
    %284 = vector.broadcast %283 : vector<1x64xf32> to vector<4x64xf32>
    %285 = arith.addf %282, %284 : vector<4x64xf32>
    %c0_163 = arith.constant 0 : index
    %c0_164 = arith.constant 0 : index
    %286 = vector.load %arg25[%c0_163, %c0_164] : memref<1x64xf32, #tpu.memory_space<vmem>>, vector<1x64xf32>
    %c0_165 = arith.constant 0 : index
    %c0_166 = arith.constant 0 : index
    %287 = vector.load %arg26[%c0_165, %c0_166] : memref<1x64xf32, #tpu.memory_space<vmem>>, vector<1x64xf32>
    %cst_167 = arith.constant dense<0.000000e+00> : vector<4xf32>
    %288 = vector.multi_reduction <add>, %285, %cst_167 [1] : vector<4x64xf32> to vector<4xf32>
    %289 = vector.shape_cast %288 : vector<4xf32> to vector<4x1xf32>
    %cst_168 = arith.constant 6.400000e+01 : f32
    %290 = vector.broadcast %cst_168 : f32 to vector<4x1xf32>
    %291 = arith.divf %289, %290 : vector<4x1xf32>
    %292 = vector.broadcast %291 : vector<4x1xf32> to vector<4x64xf32>
    %293 = arith.subf %285, %292 : vector<4x64xf32>
    %294 = arith.mulf %293, %293 : vector<4x64xf32>
    %cst_169 = arith.constant dense<0.000000e+00> : vector<4xf32>
    %295 = vector.multi_reduction <add>, %294, %cst_169 [1] : vector<4x64xf32> to vector<4xf32>
    %296 = vector.shape_cast %295 : vector<4xf32> to vector<4x1xf32>
    %cst_170 = arith.constant 6.400000e+01 : f32
    %297 = vector.broadcast %cst_170 : f32 to vector<4x1xf32>
    %298 = arith.divf %296, %297 : vector<4x1xf32>
    %cst_171 = arith.constant 9.99999974E-6 : f32
    %299 = vector.broadcast %cst_171 : f32 to vector<4x1xf32>
    %300 = arith.addf %298, %299 : vector<4x1xf32>
    %301 = math.rsqrt %300 : vector<4x1xf32>
    %302 = vector.broadcast %301 : vector<4x1xf32> to vector<4x64xf32>
    %303 = arith.mulf %293, %302 : vector<4x64xf32>
    %304 = vector.broadcast %286 : vector<1x64xf32> to vector<4x64xf32>
    %305 = arith.mulf %303, %304 : vector<4x64xf32>
    %306 = vector.broadcast %287 : vector<1x64xf32> to vector<4x64xf32>
    %307 = arith.addf %305, %306 : vector<4x64xf32>
    %c0_172 = arith.constant 0 : index
    %c0_173 = arith.constant 0 : index
    %308 = vector.load %arg3[%c0_172, %c0_173] : memref<64x64xf32, #tpu.memory_space<vmem>>, vector<64x64xf32>
    %cst_174 = arith.constant dense<0.000000e+00> : vector<4x64xf32>
    %309 = tpu.matmul %307, %308, %cst_174 {dimension_numbers = #tpu.dot_dimension_numbers<[1], [0], [0], [1], [0, 0, 1, 1], [], []>} : vector<4x64xf32>, vector<64x64xf32>, vector<4x64xf32> -> vector<4x64xf32>
    %c0_175 = arith.constant 0 : index
    %c0_176 = arith.constant 0 : index
    %310 = vector.load %arg4[%c0_175, %c0_176] : memref<1x64xf32, #tpu.memory_space<vmem>>, vector<1x64xf32>
    %311 = vector.broadcast %310 : vector<1x64xf32> to vector<4x64xf32>
    %312 = arith.addf %309, %311 : vector<4x64xf32>
    %cst_177 = arith.constant dense<0.000000e+00> : vector<4x128xf32>
    %313 = tpu.matmul %312, %30, %cst_177 {dimension_numbers = #tpu.dot_dimension_numbers<[1], [1], [0], [0], [0, 0, 1, 0], [], []>} : vector<4x64xf32>, vector<128x64xf32>, vector<4x128xf32> -> vector<4x128xf32>
    %cst_178 = arith.constant 1.250000e-01 : f32
    %314 = vector.broadcast %cst_178 : f32 to vector<4x128xf32>
    %315 = arith.mulf %313, %314 : vector<4x128xf32>
    %cst_179 = arith.constant dense<0xFF800000> : vector<128xf32>
    %316 = vector.multi_reduction <maximumf>, %315, %cst_179 [0] : vector<4x128xf32> to vector<128xf32>
    %317 = vector.shape_cast %316 : vector<128xf32> to vector<1x128xf32>
    %318 = vector.broadcast %317 : vector<1x128xf32> to vector<4x128xf32>
    %319 = arith.subf %315, %318 : vector<4x128xf32>
    %320 = math.exp %319 : vector<4x128xf32>
    %cst_180 = arith.constant dense<0.000000e+00> : vector<128xf32>
    %321 = vector.multi_reduction <add>, %320, %cst_180 [0] : vector<4x128xf32> to vector<128xf32>
    %322 = vector.shape_cast %321 : vector<128xf32> to vector<1x128xf32>
    %323 = vector.broadcast %322 : vector<1x128xf32> to vector<4x128xf32>
    %324 = arith.divf %320, %323 : vector<4x128xf32>
    %cst_181 = arith.constant 9.99999993E-9 : f32
    %325 = vector.broadcast %cst_181 : f32 to vector<4x128xf32>
    %326 = arith.addf %324, %325 : vector<4x128xf32>
    %cst_182 = arith.constant dense<0.000000e+00> : vector<4xf32>
    %327 = vector.multi_reduction <add>, %326, %cst_182 [1] : vector<4x128xf32> to vector<4xf32>
    %328 = vector.shape_cast %327 : vector<4xf32> to vector<4x1xf32>
    %329 = vector.broadcast %328 : vector<4x1xf32> to vector<4x128xf32>
    %330 = arith.divf %326, %329 : vector<4x128xf32>
    %cst_183 = arith.constant dense<0.000000e+00> : vector<4x64xf32>
    %331 = tpu.matmul %330, %35, %cst_183 {dimension_numbers = #tpu.dot_dimension_numbers<[1], [0], [0], [1], [0, 0, 1, 1], [], []>} : vector<4x128xf32>, vector<128x64xf32>, vector<4x64xf32> -> vector<4x64xf32>
    %c0_184 = arith.constant 0 : index
    %c0_185 = arith.constant 0 : index
    %332 = vector.load %arg9[%c0_184, %c0_185] : memref<64x64xf32, #tpu.memory_space<vmem>>, vector<64x64xf32>
    %cst_186 = arith.constant dense<0.000000e+00> : vector<4x64xf32>
    %333 = tpu.matmul %331, %332, %cst_186 {dimension_numbers = #tpu.dot_dimension_numbers<[1], [0], [0], [1], [0, 0, 1, 1], [], []>} : vector<4x64xf32>, vector<64x64xf32>, vector<4x64xf32> -> vector<4x64xf32>
    %c0_187 = arith.constant 0 : index
    %c0_188 = arith.constant 0 : index
    %334 = vector.load %arg12[%c0_187, %c0_188] : memref<64x64xf32, #tpu.memory_space<vmem>>, vector<64x64xf32>
    %cst_189 = arith.constant dense<0.000000e+00> : vector<4x64xf32>
    %335 = tpu.matmul %285, %334, %cst_189 {dimension_numbers = #tpu.dot_dimension_numbers<[1], [0], [0], [1], [0, 0, 1, 1], [], []>} : vector<4x64xf32>, vector<64x64xf32>, vector<4x64xf32> -> vector<4x64xf32>
    %336 = arith.addf %333, %335 : vector<4x64xf32>
    %c0_190 = arith.constant 0 : index
    %c0_191 = arith.constant 0 : index
    %337 = vector.load %arg15[%c0_190, %c0_191] : memref<1x64xf32, #tpu.memory_space<vmem>>, vector<1x64xf32>
    %338 = vector.broadcast %337 : vector<1x64xf32> to vector<4x64xf32>
    %339 = arith.addf %336, %338 : vector<4x64xf32>
    %340 = arith.negf %339 : vector<4x64xf32>
    %341 = math.exp %340 : vector<4x64xf32>
    %cst_192 = arith.constant 1.000000e+00 : f32
    %342 = vector.broadcast %cst_192 : f32 to vector<4x64xf32>
    %343 = arith.addf %342, %341 : vector<4x64xf32>
    %344 = arith.divf %342, %343 : vector<4x64xf32>
    %c0_193 = arith.constant 0 : index
    %c0_194 = arith.constant 0 : index
    %345 = vector.load %arg10[%c0_193, %c0_194] : memref<64x64xf32, #tpu.memory_space<vmem>>, vector<64x64xf32>
    %cst_195 = arith.constant dense<0.000000e+00> : vector<4x64xf32>
    %346 = tpu.matmul %331, %345, %cst_195 {dimension_numbers = #tpu.dot_dimension_numbers<[1], [0], [0], [1], [0, 0, 1, 1], [], []>} : vector<4x64xf32>, vector<64x64xf32>, vector<4x64xf32> -> vector<4x64xf32>
    %c0_196 = arith.constant 0 : index
    %c0_197 = arith.constant 0 : index
    %347 = vector.load %arg13[%c0_196, %c0_197] : memref<64x64xf32, #tpu.memory_space<vmem>>, vector<64x64xf32>
    %cst_198 = arith.constant dense<0.000000e+00> : vector<4x64xf32>
    %348 = tpu.matmul %285, %347, %cst_198 {dimension_numbers = #tpu.dot_dimension_numbers<[1], [0], [0], [1], [0, 0, 1, 1], [], []>} : vector<4x64xf32>, vector<64x64xf32>, vector<4x64xf32> -> vector<4x64xf32>
    %349 = arith.addf %346, %348 : vector<4x64xf32>
    %c0_199 = arith.constant 0 : index
    %c0_200 = arith.constant 0 : index
    %350 = vector.load %arg16[%c0_199, %c0_200] : memref<1x64xf32, #tpu.memory_space<vmem>>, vector<1x64xf32>
    %351 = vector.broadcast %350 : vector<1x64xf32> to vector<4x64xf32>
    %352 = arith.addf %349, %351 : vector<4x64xf32>
    %353 = arith.negf %352 : vector<4x64xf32>
    %354 = math.exp %353 : vector<4x64xf32>
    %cst_201 = arith.constant 1.000000e+00 : f32
    %355 = vector.broadcast %cst_201 : f32 to vector<4x64xf32>
    %356 = arith.addf %355, %354 : vector<4x64xf32>
    %357 = arith.divf %355, %356 : vector<4x64xf32>
    %c0_202 = arith.constant 0 : index
    %c0_203 = arith.constant 0 : index
    %358 = vector.load %arg11[%c0_202, %c0_203] : memref<64x64xf32, #tpu.memory_space<vmem>>, vector<64x64xf32>
    %cst_204 = arith.constant dense<0.000000e+00> : vector<4x64xf32>
    %359 = tpu.matmul %331, %358, %cst_204 {dimension_numbers = #tpu.dot_dimension_numbers<[1], [0], [0], [1], [0, 0, 1, 1], [], []>} : vector<4x64xf32>, vector<64x64xf32>, vector<4x64xf32> -> vector<4x64xf32>
    %c0_205 = arith.constant 0 : index
    %c0_206 = arith.constant 0 : index
    %360 = vector.load %arg17[%c0_205, %c0_206] : memref<1x64xf32, #tpu.memory_space<vmem>>, vector<1x64xf32>
    %361 = vector.broadcast %360 : vector<1x64xf32> to vector<4x64xf32>
    %362 = arith.addf %359, %361 : vector<4x64xf32>
    %c0_207 = arith.constant 0 : index
    %c0_208 = arith.constant 0 : index
    %363 = vector.load %arg14[%c0_207, %c0_208] : memref<64x64xf32, #tpu.memory_space<vmem>>, vector<64x64xf32>
    %cst_209 = arith.constant dense<0.000000e+00> : vector<4x64xf32>
    %364 = tpu.matmul %285, %363, %cst_209 {dimension_numbers = #tpu.dot_dimension_numbers<[1], [0], [0], [1], [0, 0, 1, 1], [], []>} : vector<4x64xf32>, vector<64x64xf32>, vector<4x64xf32> -> vector<4x64xf32>
    %c0_210 = arith.constant 0 : index
    %c0_211 = arith.constant 0 : index
    %365 = vector.load %arg18[%c0_210, %c0_211] : memref<1x64xf32, #tpu.memory_space<vmem>>, vector<1x64xf32>
    %366 = vector.broadcast %365 : vector<1x64xf32> to vector<4x64xf32>
    %367 = arith.addf %364, %366 : vector<4x64xf32>
    %368 = arith.mulf %344, %367 : vector<4x64xf32>
    %369 = arith.addf %362, %368 : vector<4x64xf32>
    %370 = math.tanh %369 : vector<4x64xf32>
    %cst_212 = arith.constant 1.000000e+00 : f32
    %371 = vector.broadcast %cst_212 : f32 to vector<4x64xf32>
    %372 = arith.subf %371, %357 : vector<4x64xf32>
    %373 = arith.mulf %372, %370 : vector<4x64xf32>
    %374 = arith.mulf %357, %285 : vector<4x64xf32>
    %375 = arith.addf %373, %374 : vector<4x64xf32>
    %c0_213 = arith.constant 0 : index
    %c0_214 = arith.constant 0 : index
    %376 = vector.load %arg27[%c0_213, %c0_214] : memref<1x64xf32, #tpu.memory_space<vmem>>, vector<1x64xf32>
    %c0_215 = arith.constant 0 : index
    %c0_216 = arith.constant 0 : index
    %377 = vector.load %arg28[%c0_215, %c0_216] : memref<1x64xf32, #tpu.memory_space<vmem>>, vector<1x64xf32>
    %cst_217 = arith.constant dense<0.000000e+00> : vector<4xf32>
    %378 = vector.multi_reduction <add>, %375, %cst_217 [1] : vector<4x64xf32> to vector<4xf32>
    %379 = vector.shape_cast %378 : vector<4xf32> to vector<4x1xf32>
    %cst_218 = arith.constant 6.400000e+01 : f32
    %380 = vector.broadcast %cst_218 : f32 to vector<4x1xf32>
    %381 = arith.divf %379, %380 : vector<4x1xf32>
    %382 = vector.broadcast %381 : vector<4x1xf32> to vector<4x64xf32>
    %383 = arith.subf %375, %382 : vector<4x64xf32>
    %384 = arith.mulf %383, %383 : vector<4x64xf32>
    %cst_219 = arith.constant dense<0.000000e+00> : vector<4xf32>
    %385 = vector.multi_reduction <add>, %384, %cst_219 [1] : vector<4x64xf32> to vector<4xf32>
    %386 = vector.shape_cast %385 : vector<4xf32> to vector<4x1xf32>
    %cst_220 = arith.constant 6.400000e+01 : f32
    %387 = vector.broadcast %cst_220 : f32 to vector<4x1xf32>
    %388 = arith.divf %386, %387 : vector<4x1xf32>
    %cst_221 = arith.constant 9.99999974E-6 : f32
    %389 = vector.broadcast %cst_221 : f32 to vector<4x1xf32>
    %390 = arith.addf %388, %389 : vector<4x1xf32>
    %391 = math.rsqrt %390 : vector<4x1xf32>
    %392 = vector.broadcast %391 : vector<4x1xf32> to vector<4x64xf32>
    %393 = arith.mulf %383, %392 : vector<4x64xf32>
    %394 = vector.broadcast %376 : vector<1x64xf32> to vector<4x64xf32>
    %395 = arith.mulf %393, %394 : vector<4x64xf32>
    %396 = vector.broadcast %377 : vector<1x64xf32> to vector<4x64xf32>
    %397 = arith.addf %395, %396 : vector<4x64xf32>
    %c0_222 = arith.constant 0 : index
    %c0_223 = arith.constant 0 : index
    %398 = vector.load %arg19[%c0_222, %c0_223] : memref<64x128xf32, #tpu.memory_space<vmem>>, vector<64x128xf32>
    %cst_224 = arith.constant dense<0.000000e+00> : vector<4x128xf32>
    %399 = tpu.matmul %397, %398, %cst_224 {dimension_numbers = #tpu.dot_dimension_numbers<[1], [0], [0], [1], [0, 0, 1, 1], [], []>} : vector<4x64xf32>, vector<64x128xf32>, vector<4x128xf32> -> vector<4x128xf32>
    %c0_225 = arith.constant 0 : index
    %c0_226 = arith.constant 0 : index
    %400 = vector.load %arg20[%c0_225, %c0_226] : memref<1x128xf32, #tpu.memory_space<vmem>>, vector<1x128xf32>
    %401 = vector.broadcast %400 : vector<1x128xf32> to vector<4x128xf32>
    %402 = arith.addf %399, %401 : vector<4x128xf32>
    %cst_227 = arith.constant 0.000000e+00 : f32
    %403 = vector.broadcast %cst_227 : f32 to vector<4x128xf32>
    %404 = arith.maximumf %402, %403 : vector<4x128xf32>
    %c0_228 = arith.constant 0 : index
    %c0_229 = arith.constant 0 : index
    %405 = vector.load %arg21[%c0_228, %c0_229] : memref<128x64xf32, #tpu.memory_space<vmem>>, vector<128x64xf32>
    %cst_230 = arith.constant dense<0.000000e+00> : vector<4x64xf32>
    %406 = tpu.matmul %404, %405, %cst_230 {dimension_numbers = #tpu.dot_dimension_numbers<[1], [0], [0], [1], [0, 0, 1, 1], [], []>} : vector<4x128xf32>, vector<128x64xf32>, vector<4x64xf32> -> vector<4x64xf32>
    %407 = arith.addf %375, %406 : vector<4x64xf32>
    %c0_231 = arith.constant 0 : index
    %c0_232 = arith.constant 0 : index
    %408 = vector.load %arg22[%c0_231, %c0_232] : memref<1x64xf32, #tpu.memory_space<vmem>>, vector<1x64xf32>
    %409 = vector.broadcast %408 : vector<1x64xf32> to vector<4x64xf32>
    %410 = arith.addf %407, %409 : vector<4x64xf32>
    %c0_233 = arith.constant 0 : index
    %c0_234 = arith.constant 0 : index
    %c0_235 = arith.constant 0 : index
    %411 = vector.load %arg29[%c0_233, %c0_234, %c0_235] : memref<1x4x64xf32, #tpu.memory_space<vmem>>, vector<1x4x64xf32>
    %412 = vector.shape_cast %411 : vector<1x4x64xf32> to vector<4x64xf32>
    %413 = vector.shape_cast %410 : vector<4x64xf32> to vector<1x4x64xf32>
    tpu.vector_store %arg29[%c0_233, %c0_234, %c0_235], %413 {strides = array<i32>} : memref<1x4x64xf32, #tpu.memory_space<vmem>>, vector<1x4x64xf32>,
    return
  }
  func.func @transform_0(%arg0: i32) -> (i32, i32, i32) {
    %c0_i32 = arith.constant 0 : i32
    %c0_i32_0 = arith.constant 0 : i32
    %c0_i32_1 = arith.constant 0 : i32
    return %arg0, %c0_i32, %c0_i32_0 : i32, i32, i32
  }
  func.func @transform_1(%arg0: i32) -> (i32, i32, i32) {
    %c0_i32 = arith.constant 0 : i32
    %c0_i32_0 = arith.constant 0 : i32
    %c0_i32_1 = arith.constant 0 : i32
    return %arg0, %c0_i32, %c0_i32_0 : i32, i32, i32
  }
  func.func @transform_2(%arg0: i32) -> (i32, i32) {
    %c0_i32 = arith.constant 0 : i32
    %c0_i32_0 = arith.constant 0 : i32
    %c0_i32_1 = arith.constant 0 : i32
    return %c0_i32, %c0_i32_0 : i32, i32
  }
  func.func @transform_3(%arg0: i32) -> (i32, i32) {
    %c0_i32 = arith.constant 0 : i32
    %c0_i32_0 = arith.constant 0 : i32
    %c0_i32_1 = arith.constant 0 : i32
    return %c0_i32, %c0_i32_0 : i32, i32
  }
  func.func @transform_4(%arg0: i32) -> (i32, i32) {
    %c0_i32 = arith.constant 0 : i32
    %c0_i32_0 = arith.constant 0 : i32
    %c0_i32_1 = arith.constant 0 : i32
    return %c0_i32, %c0_i32_0 : i32, i32
  }
  func.func @transform_5(%arg0: i32) -> (i32, i32) {
    %c0_i32 = arith.constant 0 : i32
    %c0_i32_0 = arith.constant 0 : i32
    %c0_i32_1 = arith.constant 0 : i32
    return %c0_i32, %c0_i32_0 : i32, i32
  }
  func.func @transform_6(%arg0: i32) -> (i32, i32) {
    %c0_i32 = arith.constant 0 : i32
    %c0_i32_0 = arith.constant 0 : i32
    %c0_i32_1 = arith.constant 0 : i32
    return %c0_i32, %c0_i32_0 : i32, i32
  }
  func.func @transform_7(%arg0: i32) -> (i32, i32) {
    %c0_i32 = arith.constant 0 : i32
    %c0_i32_0 = arith.constant 0 : i32
    %c0_i32_1 = arith.constant 0 : i32
    return %c0_i32, %c0_i32_0 : i32, i32
  }
  func.func @transform_8(%arg0: i32) -> (i32, i32) {
    %c0_i32 = arith.constant 0 : i32
    %c0_i32_0 = arith.constant 0 : i32
    %c0_i32_1 = arith.constant 0 : i32
    return %c0_i32, %c0_i32_0 : i32, i32
  }
  func.func @transform_9(%arg0: i32) -> (i32, i32) {
    %c0_i32 = arith.constant 0 : i32
    %c0_i32_0 = arith.constant 0 : i32
    %c0_i32_1 = arith.constant 0 : i32
    return %c0_i32, %c0_i32_0 : i32, i32
  }
  func.func @transform_10(%arg0: i32) -> (i32, i32) {
    %c0_i32 = arith.constant 0 : i32
    %c0_i32_0 = arith.constant 0 : i32
    %c0_i32_1 = arith.constant 0 : i32
    return %c0_i32, %c0_i32_0 : i32, i32
  }
  func.func @transform_11(%arg0: i32) -> (i32, i32) {
    %c0_i32 = arith.constant 0 : i32
    %c0_i32_0 = arith.constant 0 : i32
    %c0_i32_1 = arith.constant 0 : i32
    return %c0_i32, %c0_i32_0 : i32, i32
  }
  func.func @transform_12(%arg0: i32) -> (i32, i32) {
    %c0_i32 = arith.constant 0 : i32
    %c0_i32_0 = arith.constant 0 : i32
    %c0_i32_1 = arith.constant 0 : i32
    return %c0_i32, %c0_i32_0 : i32, i32
  }
  func.func @transform_13(%arg0: i32) -> (i32, i32) {
    %c0_i32 = arith.constant 0 : i32
    %c0_i32_0 = arith.constant 0 : i32
    %c0_i32_1 = arith.constant 0 : i32
    return %c0_i32, %c0_i32_0 : i32, i32
  }
  func.func @transform_14(%arg0: i32) -> (i32, i32) {
    %c0_i32 = arith.constant 0 : i32
    %c0_i32_0 = arith.constant 0 : i32
    %c0_i32_1 = arith.constant 0 : i32
    return %c0_i32, %c0_i32_0 : i32, i32
  }
  func.func @transform_15(%arg0: i32) -> (i32, i32) {
    %c0_i32 = arith.constant 0 : i32
    %c0_i32_0 = arith.constant 0 : i32
    %c0_i32_1 = arith.constant 0 : i32
    return %c0_i32, %c0_i32_0 : i32, i32
  }
  func.func @transform_16(%arg0: i32) -> (i32, i32) {
    %c0_i32 = arith.constant 0 : i32
    %c0_i32_0 = arith.constant 0 : i32
    %c0_i32_1 = arith.constant 0 : i32
    return %c0_i32, %c0_i32_0 : i32, i32
  }
  func.func @transform_17(%arg0: i32) -> (i32, i32) {
    %c0_i32 = arith.constant 0 : i32
    %c0_i32_0 = arith.constant 0 : i32
    %c0_i32_1 = arith.constant 0 : i32
    return %c0_i32, %c0_i32_0 : i32, i32
  }
  func.func @transform_18(%arg0: i32) -> (i32, i32) {
    %c0_i32 = arith.constant 0 : i32
    %c0_i32_0 = arith.constant 0 : i32
    %c0_i32_1 = arith.constant 0 : i32
    return %c0_i32, %c0_i32_0 : i32, i32
  }
  func.func @transform_19(%arg0: i32) -> (i32, i32) {
    %c0_i32 = arith.constant 0 : i32
    %c0_i32_0 = arith.constant 0 : i32
    %c0_i32_1 = arith.constant 0 : i32
    return %c0_i32, %c0_i32_0 : i32, i32
  }
  func.func @transform_20(%arg0: i32) -> (i32, i32) {
    %c0_i32 = arith.constant 0 : i32
    %c0_i32_0 = arith.constant 0 : i32
    %c0_i32_1 = arith.constant 0 : i32
    return %c0_i32, %c0_i32_0 : i32, i32
  }
  func.func @transform_21(%arg0: i32) -> (i32, i32) {
    %c0_i32 = arith.constant 0 : i32
    %c0_i32_0 = arith.constant 0 : i32
    %c0_i32_1 = arith.constant 0 : i32
    return %c0_i32, %c0_i32_0 : i32, i32
  }
  func.func @transform_22(%arg0: i32) -> (i32, i32) {
    %c0_i32 = arith.constant 0 : i32
    %c0_i32_0 = arith.constant 0 : i32
    %c0_i32_1 = arith.constant 0 : i32
    return %c0_i32, %c0_i32_0 : i32, i32
  }
  func.func @transform_23(%arg0: i32) -> (i32, i32) {
    %c0_i32 = arith.constant 0 : i32
    %c0_i32_0 = arith.constant 0 : i32
    %c0_i32_1 = arith.constant 0 : i32
    return %c0_i32, %c0_i32_0 : i32, i32
  }
  func.func @transform_24(%arg0: i32) -> (i32, i32) {
    %c0_i32 = arith.constant 0 : i32
    %c0_i32_0 = arith.constant 0 : i32
    %c0_i32_1 = arith.constant 0 : i32
    return %c0_i32, %c0_i32_0 : i32, i32
  }
  func.func @transform_25(%arg0: i32) -> (i32, i32) {
    %c0_i32 = arith.constant 0 : i32
    %c0_i32_0 = arith.constant 0 : i32
    %c0_i32_1 = arith.constant 0 : i32
    return %c0_i32, %c0_i32_0 : i32, i32
  }
  func.func @transform_26(%arg0: i32) -> (i32, i32) {
    %c0_i32 = arith.constant 0 : i32
    %c0_i32_0 = arith.constant 0 : i32
    %c0_i32_1 = arith.constant 0 : i32
    return %c0_i32, %c0_i32_0 : i32, i32
  }
  func.func @transform_27(%arg0: i32) -> (i32, i32) {
    %c0_i32 = arith.constant 0 : i32
    %c0_i32_0 = arith.constant 0 : i32
    %c0_i32_1 = arith.constant 0 : i32
    return %c0_i32, %c0_i32_0 : i32, i32
  }
  func.func @transform_28(%arg0: i32) -> (i32, i32, i32) {
    %c0_i32 = arith.constant 0 : i32
    %c0_i32_0 = arith.constant 0 : i32
    %c0_i32_1 = arith.constant 0 : i32
    return %arg0, %c0_i32, %c0_i32_0 : i32, i32, i32
  }
}

</mosaic_0001>

<llo_original>
// kernel: tpu_custom_call.1
$region0: #{tpu_custom_call.1}
  #allocation0 [shape = 'u32[]', space=smem, size = 0x4, offset = 0x4, fixed_abs, tag = 'smem constant byte address 0x4 - core index']
  #allocation1 [shape = 'u32[144,128]{1,0:T(1,128)}', space=vmem, size = 0x12000, scoped, tag = 'internal scratch']
  %s0 = inlined_call_operand.vmem [shape: f32[2,128,64], index: 0, kind: input, shape index: {}]
  %s1 = inlined_call_operand.hbm [shape: f32[2,4,64], index: 1, kind: input, shape index: {}]
  %s2 = inlined_call_operand.vmem [shape: f32[64,64], index: 2, kind: input, shape index: {}]
  %s3 = inlined_call_operand.hbm [shape: f32[1,64], index: 3, kind: input, shape index: {}]
  %s4 = inlined_call_operand.vmem [shape: f32[64,64], index: 4, kind: input, shape index: {}]
  %s5 = inlined_call_operand.vmem [shape: f32[1,64], index: 5, kind: input, shape index: {}]
  %s6 = inlined_call_operand.vmem [shape: f32[64,64], index: 6, kind: input, shape index: {}]
  %s7 = inlined_call_operand.vmem [shape: f32[1,64], index: 7, kind: input, shape index: {}]
  %s8 = inlined_call_operand.vmem [shape: f32[64,64], index: 8, kind: input, shape index: {}]
  %s9 = inlined_call_operand.vmem [shape: f32[64,64], index: 9, kind: input, shape index: {}]
  %s10 = inlined_call_operand.vmem [shape: f32[64,64], index: 10, kind: input, shape index: {}]
  %s11 = inlined_call_operand.vmem [shape: f32[64,64], index: 11, kind: input, shape index: {}]
  %s12 = inlined_call_operand.hbm [shape: f32[64,64], index: 12, kind: input, shape index: {}]
  %s13 = inlined_call_operand.hbm [shape: f32[64,64], index: 13, kind: input, shape index: {}]
  %s14 = inlined_call_operand.vmem [shape: f32[1,64], index: 14, kind: input, shape index: {}]
  %s15 = inlined_call_operand.vmem [shape: f32[1,64], index: 15, kind: input, shape index: {}]
  %s16 = inlined_call_operand.vmem [shape: f32[1,64], index: 16, kind: input, shape index: {}]
  %s17 = inlined_call_operand.vmem [shape: f32[1,64], index: 17, kind: input, shape index: {}]
  %s18 = inlined_call_operand.hbm [shape: f32[64,128], index: 18, kind: input, shape index: {}]
  %s19 = inlined_call_operand.vmem [shape: f32[1,128], index: 19, kind: input, shape index: {}]
  %s20 = inlined_call_operand.vmem [shape: f32[128,64], index: 20, kind: input, shape index: {}]
  %s21 = inlined_call_operand.vmem [shape: f32[1,64], index: 21, kind: input, shape index: {}]
  %s22 = inlined_call_operand.vmem [shape: f32[1,64], index: 22, kind: input, shape index: {}]
  %s23 = inlined_call_operand.vmem [shape: f32[1,64], index: 23, kind: input, shape index: {}]
  %s24 = inlined_call_operand.vmem [shape: f32[1,64], index: 24, kind: input, shape index: {}]
  %s25 = inlined_call_operand.vmem [shape: f32[1,64], index: 25, kind: input, shape index: {}]
  %s26 = inlined_call_operand.vmem [shape: f32[1,64], index: 26, kind: input, shape index: {}]
  %s27 = inlined_call_operand.vmem [shape: f32[1,64], index: 27, kind: input, shape index: {}]
  %s28 = inlined_call_operand.hbm [shape: f32[2,4,64], index: 28, kind: output, shape index: {}]
  %s29 = sld [smem:[#allocation0]]
  $region165: #{tpu_custom_call.1} parent=0
    _
  %s31 = ssub.s32 1, %s29
  %s32 = scalar_select 0, %s31, %s29
  $region1: #{tpu_custom_call.1} parent=0
    #allocation2 [shape = 'u8[4096]{0}', space=vmem, size = 0x1000, scoped, tag = 'input window, operand 1']
    #allocation3 [shape = 's32[2]{0}', space=sflag, size = 0x8, scoped, tag = 'scoped memory for tpu_custom_call.1']
    #allocation4 [shape = 's32[2]{0}', space=sflag, size = 0x8, scoped, tag = 'scoped memory for tpu_custom_call.1']
    #allocation5 [shape = 'u8[512]{0}', space=vmem, size = 0x400, scoped, tag = 'input window, operand 3, single buffered']
    #allocation6 [shape = 's32[1]{0}', space=sflag, size = 0x4, scoped, tag = 'scoped memory for tpu_custom_call.1']
    #allocation7 [shape = 'u8[32768]{0}', space=vmem, size = 0x8000, scoped, tag = 'input window, operand 12, single buffered']
    #allocation8 [shape = 'u8[32768]{0}', space=vmem, size = 0x8000, scoped, tag = 'input window, operand 13, single buffered']
    #allocation9 [shape = 's32[1]{0}', space=sflag, size = 0x4, scoped, tag = 'scoped memory for tpu_custom_call.1']
    #allocation10 [shape = 'u8[32768]{0}', space=vmem, size = 0x8000, scoped, tag = 'input window, operand 18, single buffered']
    #allocation11 [shape = 'u8[4096]{0}', space=vmem, size = 0x1000, scoped, tag = 'output window, operand 0']
    %33 = vsyncpa [#allocation3], 0
    %s34 = scalar_lea.sflag [#allocation3], 1
    %35 = vsyncpa %s34, 0
    %36 = vsyncpa [#allocation6], 0
    %37 = vsyncpa [#allocation9], 0
    %38 = vsyncpa [#allocation4], 0
    %s39 = scalar_lea.sflag [#allocation4], 1
    %40 = vsyncpa %s39, 0
    loop: start=0, step=1, limit=4
    $region2: #{tpu_custom_call.1} parent=1 // loop_pre_header
      _
    $region3: #{tpu_custom_call.1} parent=1 // loop_header
      %s42 = sphi 0, %s46
      %p43 = scmp.ge.s32.totalorder %s42, 4
      %s52 = sphi 0, %s54
      %s55 = sphi 0, %s52
      %s56 = sphi 0, %s55
      %s72 = sphi 0, %s56
      %s78 = sphi 0, %s80
      %s81 = sphi 0, %s78
      %s82 = sphi 0, %s81
      %s98 = sphi 0, %s82
      %s102 = sphi 0, %s102
      %s104 = sphi 0, %s102
      %s105 = sphi 0, %s104
      %s119 = sphi 0, %s105
      %s123 = sphi 0, %s123
      %s125 = sphi 0, %s123
      %s126 = sphi 0, %s125
      %s140 = sphi 0, %s126
      %s144 = sphi 0, %s144
      %s146 = sphi 0, %s144
      %s147 = sphi 0, %s146
      %s161 = sphi 0, %s147
      %s165 = sphi 0, %s165
      %s167 = sphi 0, %s165
      %s168 = sphi 0, %s167
      %s182 = sphi 0, %s168
      %s186 = sphi 0, %s186
      %s188 = sphi 0, %s186
      %s189 = sphi 0, %s188
      %s203 = sphi 0, %s189
      %s207 = sphi 0, %s207
      %s209 = sphi 0, %s207
      %s210 = sphi 0, %s209
      %s224 = sphi 0, %s210
      %s228 = sphi 0, %s228
      %s230 = sphi 0, %s228
      %s231 = sphi 0, %s230
      %s245 = sphi 0, %s231
      %s249 = sphi 0, %s249
      %s251 = sphi 0, %s249
      %s252 = sphi 0, %s251
      %s266 = sphi 0, %s252
      %s270 = sphi 0, %s270
      %s272 = sphi 0, %s270
      %s273 = sphi 0, %s272
      %s287 = sphi 0, %s273
      %s291 = sphi 0, %s291
      %s293 = sphi 0, %s291
      %s294 = sphi 0, %s293
      %s308 = sphi 0, %s294
      %s312 = sphi 0, %s312
      %s314 = sphi 0, %s312
      %s315 = sphi 0, %s314
      %s329 = sphi 0, %s315
      %s333 = sphi 0, %s333
      %s335 = sphi 0, %s333
      %s336 = sphi 0, %s335
      %s350 = sphi 0, %s336
      %s354 = sphi 0, %s354
      %s356 = sphi 0, %s354
      %s357 = sphi 0, %s356
      %s371 = sphi 0, %s357
      %s375 = sphi 0, %s375
      %s377 = sphi 0, %s375
      %s378 = sphi 0, %s377
      %s392 = sphi 0, %s378
      %s396 = sphi 0, %s396
      %s398 = sphi 0, %s396
      %s399 = sphi 0, %s398
      %s413 = sphi 0, %s399
      %s417 = sphi 0, %s417
      %s419 = sphi 0, %s417
      %s420 = sphi 0, %s419
      %s434 = sphi 0, %s420
      %s438 = sphi 0, %s438
      %s440 = sphi 0, %s438
      %s441 = sphi 0, %s440
      %s455 = sphi 0, %s441
      %s459 = sphi 0, %s459
      %s461 = sphi 0, %s459
      %s462 = sphi 0, %s461
      %s476 = sphi 0, %s462
      %s480 = sphi 0, %s480
      %s482 = sphi 0, %s480
      %s483 = sphi 0, %s482
      %s497 = sphi 0, %s483
      %s501 = sphi 0, %s501
      %s503 = sphi 0, %s501
      %s504 = sphi 0, %s503
      %s518 = sphi 0, %s504
      %s522 = sphi 0, %s522
      %s524 = sphi 0, %s522
      %s525 = sphi 0, %s524
      %s539 = sphi 0, %s525
      %s543 = sphi 0, %s543
      %s545 = sphi 0, %s543
      %s546 = sphi 0, %s545
      %s560 = sphi 0, %s546
      %s564 = sphi 0, %s564
      %s566 = sphi 0, %s564
      %s567 = sphi 0, %s566
      %s581 = sphi 0, %s567
      %s585 = sphi 0, %s585
      %s587 = sphi 0, %s585
      %s588 = sphi 0, %s587
      %s602 = sphi 0, %s588
      %s606 = sphi 0, %s606
      %s608 = sphi 0, %s606
      %s609 = sphi 0, %s608
      %s623 = sphi 0, %s609
      %s627 = sphi 0, %s627
      %s629 = sphi 0, %s627
      %s630 = sphi 0, %s629
      %s644 = sphi 0, %s630
      %s650 = sphi 0, %s652
      %s653 = sphi 0, %s650
      %s654 = sphi 0, %s653
      %s670 = sphi 0, %s654
    $region4: #{tpu_custom_call.1} parent=1 // loop_header_branch
      %45 = sbr.rel (%p43) target = $region8
    $region5: #{tpu_custom_call.1} parent=1 // loop_body
      %s47 = ssub.s32 %s42, 1
      %s48 = ssub.s32 %s42, 2
      %s49 = sadd.s32 %s42, 1
      %s50 = ssub.s32 %s42, %s49
      %p51 = scmp.eq.s32.totalorder %s50, 0
      %s53 = sadd.s32 %s52, 1
      %s54 = scalar_select %p51, %s52, %s53
      %p57 = pneg %p51
      %p58 = scmp.eq.s32.totalorder %s42, 1
      %p59 = por %p57, %p58
      %p60 = scmp.ne.s32.totalorder %s52, %s55
      %p61 = scmp.eq.s32.totalorder %s42, 0
      %p62 = por %p60, %p61
      %p63 = scmp.ne.s32.totalorder %s52, %s55
      %p64 = scmp.eq.s32.totalorder %s47, 1
      %p65 = por %p63, %p64
      %p66 = scmp.ne.s32.totalorder %s55, %s56
      %p67 = scmp.eq.s32.totalorder %s47, 0
      %p68 = por %p66, %p67
      %p69 = scmp.ne.s32.totalorder %s55, %s56
      %p70 = scmp.eq.s32.totalorder %s48, 1
      %p71 = por %p69, %p70
      %p73 = scmp.ne.s32.totalorder %s56, %s72
      %p74 = scmp.eq.s32.totalorder %s48, 0
      %p75 = por %p73, %p74
      %s76 = ssub.s32 %s42, %s49
      %p77 = scmp.eq.s32.totalorder %s76, 0
      %s79 = sadd.s32 %s78, 1
      %s80 = scalar_select %p77, %s78, %s79
      %p83 = pneg %p77
      %p84 = scmp.eq.s32.totalorder %s42, 1
      %p85 = por %p83, %p84
      %p86 = scmp.ne.s32.totalorder %s78, %s81
      %p87 = scmp.eq.s32.totalorder %s42, 0
      %p88 = por %p86, %p87
      %p89 = scmp.ne.s32.totalorder %s78, %s81
      %p90 = scmp.eq.s32.totalorder %s47, 1
      %p91 = por %p89, %p90
      %p92 = scmp.ne.s32.totalorder %s81, %s82
      %p93 = scmp.eq.s32.totalorder %s47, 0
      %p94 = por %p92, %p93
      %p95 = scmp.ne.s32.totalorder %s81, %s82
      %p96 = scmp.eq.s32.totalorder %s48, 1
      %p97 = por %p95, %p96
      %p99 = scmp.ne.s32.totalorder %s82, %s98
      %p100 = scmp.eq.s32.totalorder %s48, 0
      %p101 = por %p99, %p100
      %s103 = sadd.s32 %s102, 1
      %p106 = scmp.eq.s32.totalorder %s42, 1
      %p107 = scmp.ne.s32.totalorder %s102, %s104
      %p108 = scmp.eq.s32.totalorder %s42, 0
      %p109 = por %p107, %p108
      %p110 = scmp.ne.s32.totalorder %s102, %s104
      %p111 = scmp.eq.s32.totalorder %s47, 1
      %p112 = por %p110, %p111
      %p113 = scmp.ne.s32.totalorder %s104, %s105
      %p114 = scmp.eq.s32.totalorder %s47, 0
      %p115 = por %p113, %p114
      %p116 = scmp.ne.s32.totalorder %s104, %s105
      %p117 = scmp.eq.s32.totalorder %s48, 1
      %p118 = por %p116, %p117
      %p120 = scmp.ne.s32.totalorder %s105, %s119
      %p121 = scmp.eq.s32.totalorder %s48, 0
      %p122 = por %p120, %p121
      %s124 = sadd.s32 %s123, 1
      %p127 = scmp.eq.s32.totalorder %s42, 1
      %p128 = scmp.ne.s32.totalorder %s123, %s125
      %p129 = scmp.eq.s32.totalorder %s42, 0
      %p130 = por %p128, %p129
      %p131 = scmp.ne.s32.totalorder %s123, %s125
      %p132 = scmp.eq.s32.totalorder %s47, 1
      %p133 = por %p131, %p132
      %p134 = scmp.ne.s32.totalorder %s125, %s126
      %p135 = scmp.eq.s32.totalorder %s47, 0
      %p136 = por %p134, %p135
      %p137 = scmp.ne.s32.totalorder %s125, %s126
      %p138 = scmp.eq.s32.totalorder %s48, 1
      %p139 = por %p137, %p138
      %p141 = scmp.ne.s32.totalorder %s126, %s140
      %p142 = scmp.eq.s32.totalorder %s48, 0
      %p143 = por %p141, %p142
      %s145 = sadd.s32 %s144, 1
      %p148 = scmp.eq.s32.totalorder %s42, 1
      %p149 = scmp.ne.s32.totalorder %s144, %s146
      %p150 = scmp.eq.s32.totalorder %s42, 0
      %p151 = por %p149, %p150
      %p152 = scmp.ne.s32.totalorder %s144, %s146
      %p153 = scmp.eq.s32.totalorder %s47, 1
      %p154 = por %p152, %p153
      %p155 = scmp.ne.s32.totalorder %s146, %s147
      %p156 = scmp.eq.s32.totalorder %s47, 0
      %p157 = por %p155, %p156
      %p158 = scmp.ne.s32.totalorder %s146, %s147
      %p159 = scmp.eq.s32.totalorder %s48, 1
      %p160 = por %p158, %p159
      %p162 = scmp.ne.s32.totalorder %s147, %s161
      %p163 = scmp.eq.s32.totalorder %s48, 0
      %p164 = por %p162, %p163
      %s166 = sadd.s32 %s165, 1
      %p169 = scmp.eq.s32.totalorder %s42, 1
      %p170 = scmp.ne.s32.totalorder %s165, %s167
      %p171 = scmp.eq.s32.totalorder %s42, 0
      %p172 = por %p170, %p171
      %p173 = scmp.ne.s32.totalorder %s165, %s167
      %p174 = scmp.eq.s32.totalorder %s47, 1
      %p175 = por %p173, %p174
      %p176 = scmp.ne.s32.totalorder %s167, %s168
      %p177 = scmp.eq.s32.totalorder %s47, 0
      %p178 = por %p176, %p177
      %p179 = scmp.ne.s32.totalorder %s167, %s168
      %p180 = scmp.eq.s32.totalorder %s48, 1
      %p181 = por %p179, %p180
      %p183 = scmp.ne.s32.totalorder %s168, %s182
      %p184 = scmp.eq.s32.totalorder %s48, 0
      %p185 = por %p183, %p184
      %s187 = sadd.s32 %s186, 1
      %p190 = scmp.eq.s32.totalorder %s42, 1
      %p191 = scmp.ne.s32.totalorder %s186, %s188
      %p192 = scmp.eq.s32.totalorder %s42, 0
      %p193 = por %p191, %p192
      %p194 = scmp.ne.s32.totalorder %s186, %s188
      %p195 = scmp.eq.s32.totalorder %s47, 1
      %p196 = por %p194, %p195
      %p197 = scmp.ne.s32.totalorder %s188, %s189
      %p198 = scmp.eq.s32.totalorder %s47, 0
      %p199 = por %p197, %p198
      %p200 = scmp.ne.s32.totalorder %s188, %s189
      %p201 = scmp.eq.s32.totalorder %s48, 1
      %p202 = por %p200, %p201
      %p204 = scmp.ne.s32.totalorder %s189, %s203
      %p205 = scmp.eq.s32.totalorder %s48, 0
      %p206 = por %p204, %p205
      %s208 = sadd.s32 %s207, 1
      %p211 = scmp.eq.s32.totalorder %s42, 1
      %p212 = scmp.ne.s32.totalorder %s207, %s209
      %p213 = scmp.eq.s32.totalorder %s42, 0
      %p214 = por %p212, %p213
      %p215 = scmp.ne.s32.totalorder %s207, %s209
      %p216 = scmp.eq.s32.totalorder %s47, 1
      %p217 = por %p215, %p216
      %p218 = scmp.ne.s32.totalorder %s209, %s210
      %p219 = scmp.eq.s32.totalorder %s47, 0
      %p220 = por %p218, %p219
      %p221 = scmp.ne.s32.totalorder %s209, %s210
      %p222 = scmp.eq.s32.totalorder %s48, 1
      %p223 = por %p221, %p222
      %p225 = scmp.ne.s32.totalorder %s210, %s224
      %p226 = scmp.eq.s32.totalorder %s48, 0
      %p227 = por %p225, %p226
      %s229 = sadd.s32 %s228, 1
      %p232 = scmp.eq.s32.totalorder %s42, 1
      %p233 = scmp.ne.s32.totalorder %s228, %s230
      %p234 = scmp.eq.s32.totalorder %s42, 0
      %p235 = por %p233, %p234
      %p236 = scmp.ne.s32.totalorder %s228, %s230
      %p237 = scmp.eq.s32.totalorder %s47, 1
      %p238 = por %p236, %p237
      %p239 = scmp.ne.s32.totalorder %s230, %s231
      %p240 = scmp.eq.s32.totalorder %s47, 0
      %p241 = por %p239, %p240
      %p242 = scmp.ne.s32.totalorder %s230, %s231
      %p243 = scmp.eq.s32.totalorder %s48, 1
      %p244 = por %p242, %p243
      %p246 = scmp.ne.s32.totalorder %s231, %s245
      %p247 = scmp.eq.s32.totalorder %s48, 0
      %p248 = por %p246, %p247
      %s250 = sadd.s32 %s249, 1
      %p253 = scmp.eq.s32.totalorder %s42, 1
      %p254 = scmp.ne.s32.totalorder %s249, %s251
      %p255 = scmp.eq.s32.totalorder %s42, 0
      %p256 = por %p254, %p255
      %p257 = scmp.ne.s32.totalorder %s249, %s251
      %p258 = scmp.eq.s32.totalorder %s47, 1
      %p259 = por %p257, %p258
      %p260 = scmp.ne.s32.totalorder %s251, %s252
      %p261 = scmp.eq.s32.totalorder %s47, 0
      %p262 = por %p260, %p261
      %p263 = scmp.ne.s32.totalorder %s251, %s252
      %p264 = scmp.eq.s32.totalorder %s48, 1
      %p265 = por %p263, %p264
      %p267 = scmp.ne.s32.totalorder %s252, %s266
      %p268 = scmp.eq.s32.totalorder %s48, 0
      %p269 = por %p267, %p268
      %s271 = sadd.s32 %s270, 1
      %p274 = scmp.eq.s32.totalorder %s42, 1
      %p275 = scmp.ne.s32.totalorder %s270, %s272
      %p276 = scmp.eq.s32.totalorder %s42, 0
      %p277 = por %p275, %p276
      %p278 = scmp.ne.s32.totalorder %s270, %s272
      %p279 = scmp.eq.s32.totalorder %s47, 1
      %p280 = por %p278, %p279
      %p281 = scmp.ne.s32.totalorder %s272, %s273
      %p282 = scmp.eq.s32.totalorder %s47, 0
      %p283 = por %p281, %p282
      %p284 = scmp.ne.s32.totalorder %s272, %s273
      %p285 = scmp.eq.s32.totalorder %s48, 1
      %p286 = por %p284, %p285
      %p288 = scmp.ne.s32.totalorder %s273, %s287
      %p289 = scmp.eq.s32.totalorder %s48, 0
      %p290 = por %p288, %p289
      %s292 = sadd.s32 %s291, 1
      %p295 = scmp.eq.s32.totalorder %s42, 1
      %p296 = scmp.ne.s32.totalorder %s291, %s293
      %p297 = scmp.eq.s32.totalorder %s42, 0
      %p298 = por %p296, %p297
      %p299 = scmp.ne.s32.totalorder %s291, %s293
      %p300 = scmp.eq.s32.totalorder %s47, 1
      %p301 = por %p299, %p300
      %p302 = scmp.ne.s32.totalorder %s293, %s294
      %p303 = scmp.eq.s32.totalorder %s47, 0
      %p304 = por %p302, %p303
      %p305 = scmp.ne.s32.totalorder %s293, %s294
      %p306 = scmp.eq.s32.totalorder %s48, 1
      %p307 = por %p305, %p306
      %p309 = scmp.ne.s32.totalorder %s294, %s308
      %p310 = scmp.eq.s32.totalorder %s48, 0
      %p311 = por %p309, %p310
      %s313 = sadd.s32 %s312, 1
      %p316 = scmp.eq.s32.totalorder %s42, 1
      %p317 = scmp.ne.s32.totalorder %s312, %s314
      %p318 = scmp.eq.s32.totalorder %s42, 0
      %p319 = por %p317, %p318
      %p320 = scmp.ne.s32.totalorder %s312, %s314
      %p321 = scmp.eq.s32.totalorder %s47, 1
      %p322 = por %p320, %p321
      %p323 = scmp.ne.s32.totalorder %s314, %s315
      %p324 = scmp.eq.s32.totalorder %s47, 0
      %p325 = por %p323, %p324
      %p326 = scmp.ne.s32.totalorder %s314, %s315
      %p327 = scmp.eq.s32.totalorder %s48, 1
      %p328 = por %p326, %p327
      %p330 = scmp.ne.s32.totalorder %s315, %s329
      %p331 = scmp.eq.s32.totalorder %s48, 0
      %p332 = por %p330, %p331
      %s334 = sadd.s32 %s333, 1
      %p337 = scmp.eq.s32.totalorder %s42, 1
      %p338 = scmp.ne.s32.totalorder %s333, %s335
      %p339 = scmp.eq.s32.totalorder %s42, 0
      %p340 = por %p338, %p339
      %p341 = scmp.ne.s32.totalorder %s333, %s335
      %p342 = scmp.eq.s32.totalorder %s47, 1
      %p343 = por %p341, %p342
      %p344 = scmp.ne.s32.totalorder %s335, %s336
      %p345 = scmp.eq.s32.totalorder %s47, 0
      %p346 = por %p344, %p345
      %p347 = scmp.ne.s32.totalorder %s335, %s336
      %p348 = scmp.eq.s32.totalorder %s48, 1
      %p349 = por %p347, %p348
      %p351 = scmp.ne.s32.totalorder %s336, %s350
      %p352 = scmp.eq.s32.totalorder %s48, 0
      %p353 = por %p351, %p352
      %s355 = sadd.s32 %s354, 1
      %p358 = scmp.eq.s32.totalorder %s42, 1
      %p359 = scmp.ne.s32.totalorder %s354, %s356
      %p360 = scmp.eq.s32.totalorder %s42, 0
      %p361 = por %p359, %p360
      %p362 = scmp.ne.s32.totalorder %s354, %s356
      %p363 = scmp.eq.s32.totalorder %s47, 1
      %p364 = por %p362, %p363
      %p365 = scmp.ne.s32.totalorder %s356, %s357
      %p366 = scmp.eq.s32.totalorder %s47, 0
      %p367 = por %p365, %p366
      %p368 = scmp.ne.s32.totalorder %s356, %s357
      %p369 = scmp.eq.s32.totalorder %s48, 1
      %p370 = por %p368, %p369
      %p372 = scmp.ne.s32.totalorder %s357, %s371
      %p373 = scmp.eq.s32.totalorder %s48, 0
      %p374 = por %p372, %p373
      %s376 = sadd.s32 %s375, 1
      %p379 = scmp.eq.s32.totalorder %s42, 1
      %p380 = scmp.ne.s32.totalorder %s375, %s377
      %p381 = scmp.eq.s32.totalorder %s42, 0
      %p382 = por %p380, %p381
      %p383 = scmp.ne.s32.totalorder %s375, %s377
      %p384 = scmp.eq.s32.totalorder %s47, 1
      %p385 = por %p383, %p384
      %p386 = scmp.ne.s32.totalorder %s377, %s378
      %p387 = scmp.eq.s32.totalorder %s47, 0
      %p388 = por %p386, %p387
      %p389 = scmp.ne.s32.totalorder %s377, %s378
      %p390 = scmp.eq.s32.totalorder %s48, 1
      %p391 = por %p389, %p390
      %p393 = scmp.ne.s32.totalorder %s378, %s392
      %p394 = scmp.eq.s32.totalorder %s48, 0
      %p395 = por %p393, %p394
      %s397 = sadd.s32 %s396, 1
      %p400 = scmp.eq.s32.totalorder %s42, 1
      %p401 = scmp.ne.s32.totalorder %s396, %s398
      %p402 = scmp.eq.s32.totalorder %s42, 0
      %p403 = por %p401, %p402
      %p404 = scmp.ne.s32.totalorder %s396, %s398
      %p405 = scmp.eq.s32.totalorder %s47, 1
      %p406 = por %p404, %p405
      %p407 = scmp.ne.s32.totalorder %s398, %s399
      %p408 = scmp.eq.s32.totalorder %s47, 0
      %p409 = por %p407, %p408
      %p410 = scmp.ne.s32.totalorder %s398, %s399
      %p411 = scmp.eq.s32.totalorder %s48, 1
      %p412 = por %p410, %p411
      %p414 = scmp.ne.s32.totalorder %s399, %s413
      %p415 = scmp.eq.s32.totalorder %s48, 0
      %p416 = por %p414, %p415
      %s418 = sadd.s32 %s417, 1
      %p421 = scmp.eq.s32.totalorder %s42, 1
      %p422 = scmp.ne.s32.totalorder %s417, %s419
      %p423 = scmp.eq.s32.totalorder %s42, 0
      %p424 = por %p422, %p423
      %p425 = scmp.ne.s32.totalorder %s417, %s419
      %p426 = scmp.eq.s32.totalorder %s47, 1
      %p427 = por %p425, %p426
      %p428 = scmp.ne.s32.totalorder %s419, %s420
      %p429 = scmp.eq.s32.totalorder %s47, 0
      %p430 = por %p428, %p429
      %p431 = scmp.ne.s32.totalorder %s419, %s420
      %p432 = scmp.eq.s32.totalorder %s48, 1
      %p433 = por %p431, %p432
      %p435 = scmp.ne.s32.totalorder %s420, %s434
      %p436 = scmp.eq.s32.totalorder %s48, 0
      %p437 = por %p435, %p436
      %s439 = sadd.s32 %s438, 1
      %p442 = scmp.eq.s32.totalorder %s42, 1
      %p443 = scmp.ne.s32.totalorder %s438, %s440
      %p444 = scmp.eq.s32.totalorder %s42, 0
      %p445 = por %p443, %p444
      %p446 = scmp.ne.s32.totalorder %s438, %s440
      %p447 = scmp.eq.s32.totalorder %s47, 1
      %p448 = por %p446, %p447
      %p449 = scmp.ne.s32.totalorder %s440, %s441
      %p450 = scmp.eq.s32.totalorder %s47, 0
      %p451 = por %p449, %p450
      %p452 = scmp.ne.s32.totalorder %s440, %s441
      %p453 = scmp.eq.s32.totalorder %s48, 1
      %p454 = por %p452, %p453
      %p456 = scmp.ne.s32.totalorder %s441, %s455
      %p457 = scmp.eq.s32.totalorder %s48, 0
      %p458 = por %p456, %p457
      %s460 = sadd.s32 %s459, 1
      %p463 = scmp.eq.s32.totalorder %s42, 1
      %p464 = scmp.ne.s32.totalorder %s459, %s461
      %p465 = scmp.eq.s32.totalorder %s42, 0
      %p466 = por %p464, %p465
      %p467 = scmp.ne.s32.totalorder %s459, %s461
      %p468 = scmp.eq.s32.totalorder %s47, 1
      %p469 = por %p467, %p468
      %p470 = scmp.ne.s32.totalorder %s461, %s462
      %p471 = scmp.eq.s32.totalorder %s47, 0
      %p472 = por %p470, %p471
      %p473 = scmp.ne.s32.totalorder %s461, %s462
      %p474 = scmp.eq.s32.totalorder %s48, 1
      %p475 = por %p473, %p474
      %p477 = scmp.ne.s32.totalorder %s462, %s476
      %p478 = scmp.eq.s32.totalorder %s48, 0
      %p479 = por %p477, %p478
      %s481 = sadd.s32 %s480, 1
      %p484 = scmp.eq.s32.totalorder %s42, 1
      %p485 = scmp.ne.s32.totalorder %s480, %s482
      %p486 = scmp.eq.s32.totalorder %s42, 0
      %p487 = por %p485, %p486
      %p488 = scmp.ne.s32.totalorder %s480, %s482
      %p489 = scmp.eq.s32.totalorder %s47, 1
      %p490 = por %p488, %p489
      %p491 = scmp.ne.s32.totalorder %s482, %s483
      %p492 = scmp.eq.s32.totalorder %s47, 0
      %p493 = por %p491, %p492
      %p494 = scmp.ne.s32.totalorder %s482, %s483
      %p495 = scmp.eq.s32.totalorder %s48, 1
      %p496 = por %p494, %p495
      %p498 = scmp.ne.s32.totalorder %s483, %s497
      %p499 = scmp.eq.s32.totalorder %s48, 0
      %p500 = por %p498, %p499
      %s502 = sadd.s32 %s501, 1
      %p505 = scmp.eq.s32.totalorder %s42, 1
      %p506 = scmp.ne.s32.totalorder %s501, %s503
      %p507 = scmp.eq.s32.totalorder %s42, 0
      %p508 = por %p506, %p507
      %p509 = scmp.ne.s32.totalorder %s501, %s503
      %p510 = scmp.eq.s32.totalorder %s47, 1
      %p511 = por %p509, %p510
      %p512 = scmp.ne.s32.totalorder %s503, %s504
      %p513 = scmp.eq.s32.totalorder %s47, 0
      %p514 = por %p512, %p513
      %p515 = scmp.ne.s32.totalorder %s503, %s504
      %p516 = scmp.eq.s32.totalorder %s48, 1
      %p517 = por %p515, %p516
      %p519 = scmp.ne.s32.totalorder %s504, %s518
      %p520 = scmp.eq.s32.totalorder %s48, 0
      %p521 = por %p519, %p520
      %s523 = sadd.s32 %s522, 1
      %p526 = scmp.eq.s32.totalorder %s42, 1
      %p527 = scmp.ne.s32.totalorder %s522, %s524
      %p528 = scmp.eq.s32.totalorder %s42, 0
      %p529 = por %p527, %p528
      %p530 = scmp.ne.s32.totalorder %s522, %s524
      %p531 = scmp.eq.s32.totalorder %s47, 1
      %p532 = por %p530, %p531
      %p533 = scmp.ne.s32.totalorder %s524, %s525
      %p534 = scmp.eq.s32.totalorder %s47, 0
      %p535 = por %p533, %p534
      %p536 = scmp.ne.s32.totalorder %s524, %s525
      %p537 = scmp.eq.s32.totalorder %s48, 1
      %p538 = por %p536, %p537
      %p540 = scmp.ne.s32.totalorder %s525, %s539
      %p541 = scmp.eq.s32.totalorder %s48, 0
      %p542 = por %p540, %p541
      %s544 = sadd.s32 %s543, 1
      %p547 = scmp.eq.s32.totalorder %s42, 1
      %p548 = scmp.ne.s32.totalorder %s543, %s545
      %p549 = scmp.eq.s32.totalorder %s42, 0
      %p550 = por %p548, %p549
      %p551 = scmp.ne.s32.totalorder %s543, %s545
      %p552 = scmp.eq.s32.totalorder %s47, 1
      %p553 = por %p551, %p552
      %p554 = scmp.ne.s32.totalorder %s545, %s546
      %p555 = scmp.eq.s32.totalorder %s47, 0
      %p556 = por %p554, %p555
      %p557 = scmp.ne.s32.totalorder %s545, %s546
      %p558 = scmp.eq.s32.totalorder %s48, 1
      %p559 = por %p557, %p558
      %p561 = scmp.ne.s32.totalorder %s546, %s560
      %p562 = scmp.eq.s32.totalorder %s48, 0
      %p563 = por %p561, %p562
      %s565 = sadd.s32 %s564, 1
      %p568 = scmp.eq.s32.totalorder %s42, 1
      %p569 = scmp.ne.s32.totalorder %s564, %s566
      %p570 = scmp.eq.s32.totalorder %s42, 0
      %p571 = por %p569, %p570
      %p572 = scmp.ne.s32.totalorder %s564, %s566
      %p573 = scmp.eq.s32.totalorder %s47, 1
      %p574 = por %p572, %p573
      %p575 = scmp.ne.s32.totalorder %s566, %s567
      %p576 = scmp.eq.s32.totalorder %s47, 0
      %p577 = por %p575, %p576
      %p578 = scmp.ne.s32.totalorder %s566, %s567
      %p579 = scmp.eq.s32.totalorder %s48, 1
      %p580 = por %p578, %p579
      %p582 = scmp.ne.s32.totalorder %s567, %s581
      %p583 = scmp.eq.s32.totalorder %s48, 0
      %p584 = por %p582, %p583
      %s586 = sadd.s32 %s585, 1
      %p589 = scmp.eq.s32.totalorder %s42, 1
      %p590 = scmp.ne.s32.totalorder %s585, %s587
      %p591 = scmp.eq.s32.totalorder %s42, 0
      %p592 = por %p590, %p591
      %p593 = scmp.ne.s32.totalorder %s585, %s587
      %p594 = scmp.eq.s32.totalorder %s47, 1
      %p595 = por %p593, %p594
      %p596 = scmp.ne.s32.totalorder %s587, %s588
      %p597 = scmp.eq.s32.totalorder %s47, 0
      %p598 = por %p596, %p597
      %p599 = scmp.ne.s32.totalorder %s587, %s588
      %p600 = scmp.eq.s32.totalorder %s48, 1
      %p601 = por %p599, %p600
      %p603 = scmp.ne.s32.totalorder %s588, %s602
      %p604 = scmp.eq.s32.totalorder %s48, 0
      %p605 = por %p603, %p604
      %s607 = sadd.s32 %s606, 1
      %p610 = scmp.eq.s32.totalorder %s42, 1
      %p611 = scmp.ne.s32.totalorder %s606, %s608
      %p612 = scmp.eq.s32.totalorder %s42, 0
      %p613 = por %p611, %p612
      %p614 = scmp.ne.s32.totalorder %s606, %s608
      %p615 = scmp.eq.s32.totalorder %s47, 1
      %p616 = por %p614, %p615
      %p617 = scmp.ne.s32.totalorder %s608, %s609
      %p618 = scmp.eq.s32.totalorder %s47, 0
      %p619 = por %p617, %p618
      %p620 = scmp.ne.s32.totalorder %s608, %s609
      %p621 = scmp.eq.s32.totalorder %s48, 1
      %p622 = por %p620, %p621
      %p624 = scmp.ne.s32.totalorder %s609, %s623
      %p625 = scmp.eq.s32.totalorder %s48, 0
      %p626 = por %p624, %p625
      %s628 = sadd.s32 %s627, 1
      %p631 = scmp.eq.s32.totalorder %s42, 1
      %p632 = scmp.ne.s32.totalorder %s627, %s629
      %p633 = scmp.eq.s32.totalorder %s42, 0
      %p634 = por %p632, %p633
      %p635 = scmp.ne.s32.totalorder %s627, %s629
      %p636 = scmp.eq.s32.totalorder %s47, 1
      %p637 = por %p635, %p636
      %p638 = scmp.ne.s32.totalorder %s629, %s630
      %p639 = scmp.eq.s32.totalorder %s47, 0
      %p640 = por %p638, %p639
      %p641 = scmp.ne.s32.totalorder %s629, %s630
      %p642 = scmp.eq.s32.totalorder %s48, 1
      %p643 = por %p641, %p642
      %p645 = scmp.ne.s32.totalorder %s630, %s644
      %p646 = scmp.eq.s32.totalorder %s48, 0
      %p647 = por %p645, %p646
      %s648 = ssub.s32 %s42, %s49
      %p649 = scmp.eq.s32.totalorder %s648, 0
      %s651 = sadd.s32 %s650, 1
      %s652 = scalar_select %p649, %s650, %s651
      %p655 = pneg %p649
      %p656 = scmp.eq.s32.totalorder %s42, 1
      %p657 = por %p655, %p656
      %p658 = scmp.ne.s32.totalorder %s650, %s653
      %p659 = scmp.eq.s32.totalorder %s42, 0
      %p660 = por %p658, %p659
      %p661 = scmp.ne.s32.totalorder %s650, %s653
      %p662 = scmp.eq.s32.totalorder %s47, 1
      %p663 = por %p661, %p662
      %p664 = scmp.ne.s32.totalorder %s653, %s654
      %p665 = scmp.eq.s32.totalorder %s47, 0
      %p666 = por %p664, %p665
      %p667 = scmp.ne.s32.totalorder %s653, %s654
      %p668 = scmp.eq.s32.totalorder %s48, 1
      %p669 = por %p667, %p668
      %p671 = scmp.ne.s32.totalorder %s654, %s670
      %p672 = scmp.eq.s32.totalorder %s48, 0
      %p673 = por %p671, %p672
      %p674 = scmp.le.s32.totalorder 1, %s42
      %p675 = scmp.lt.s32.totalorder %s42, 3
      %p676 = pnand %p674, %p675
      %p677 = pneg %p676
      // Predicated region
      $region9: #{tpu_custom_call.1} parent=5 // pred_check
        _
      $region10: #{tpu_custom_call.1} parent=5 // pred_check_branch
        %679 = sbr.rel (%p676) target = $region12
      $region11: #{tpu_custom_call.1} parent=5 // pred_region
        %s680 = ssub.s32 %s42, 1
        // Predicated region
        $region13: #{tpu_custom_call.1} parent=11 // pred_check
          %p681 = pneg %p115
        $region14: #{tpu_custom_call.1} parent=11 // pred_check_branch
          %683 = sbr.rel (%p681) target = $region16
        $region15: #{tpu_custom_call.1} parent=11 // pred_region
          _
        $region16: #{tpu_custom_call.1} parent=11 // pred_fallthru
          _
        // Predicated region
        $region17: #{tpu_custom_call.1} parent=11 // pred_check
          %p684 = pneg %p136
        $region18: #{tpu_custom_call.1} parent=11 // pred_check_branch
          %686 = sbr.rel (%p684) target = $region20
        $region19: #{tpu_custom_call.1} parent=11 // pred_region
          %s688 = ssub.s32 16, 16
          %689 = vsyncadd [#allocation6], %s688
          %s691 = sshll.u32 [#allocation5], 4
          %s692 = int_to_ptr.vmem [resolvable:$true] %s691
          %694 = dma.hbm_to_vmem [thread:$0]  %s3, 16, %s692, [#allocation6]
        $region20: #{tpu_custom_call.1} parent=11 // pred_fallthru
          _
        // Predicated region
        $region21: #{tpu_custom_call.1} parent=11 // pred_check
          %p695 = pneg %p157
        $region22: #{tpu_custom_call.1} parent=11 // pred_check_branch
          %697 = sbr.rel (%p695) target = $region24
        $region23: #{tpu_custom_call.1} parent=11 // pred_region
          _
        $region24: #{tpu_custom_call.1} parent=11 // pred_fallthru
          _
        // Predicated region
        $region25: #{tpu_custom_call.1} parent=11 // pred_check
          %p698 = pneg %p178
        $region26: #{tpu_custom_call.1} parent=11 // pred_check_branch
          %700 = sbr.rel (%p698) target = $region28
        $region27: #{tpu_custom_call.1} parent=11 // pred_region
          _
        $region28: #{tpu_custom_call.1} parent=11 // pred_fallthru
          _
        // Predicated region
        $region29: #{tpu_custom_call.1} parent=11 // pred_check
          %p701 = pneg %p199
        $region30: #{tpu_custom_call.1} parent=11 // pred_check_branch
          %703 = sbr.rel (%p701) target = $region32
        $region31: #{tpu_custom_call.1} parent=11 // pred_region
          _
        $region32: #{tpu_custom_call.1} parent=11 // pred_fallthru
          _
        // Predicated region
        $region33: #{tpu_custom_call.1} parent=11 // pred_check
          %p704 = pneg %p220
        $region34: #{tpu_custom_call.1} parent=11 // pred_check_branch
          %706 = sbr.rel (%p704) target = $region36
        $region35: #{tpu_custom_call.1} parent=11 // pred_region
          _
        $region36: #{tpu_custom_call.1} parent=11 // pred_fallthru
          _
        // Predicated region
        $region37: #{tpu_custom_call.1} parent=11 // pred_check
          %p707 = pneg %p241
        $region38: #{tpu_custom_call.1} parent=11 // pred_check_branch
          %709 = sbr.rel (%p707) target = $region40
        $region39: #{tpu_custom_call.1} parent=11 // pred_region
          _
        $region40: #{tpu_custom_call.1} parent=11 // pred_fallthru
          _
        // Predicated region
        $region41: #{tpu_custom_call.1} parent=11 // pred_check
          %p710 = pneg %p262
        $region42: #{tpu_custom_call.1} parent=11 // pred_check_branch
          %712 = sbr.rel (%p710) target = $region44
        $region43: #{tpu_custom_call.1} parent=11 // pred_region
          _
        $region44: #{tpu_custom_call.1} parent=11 // pred_fallthru
          _
        // Predicated region
        $region45: #{tpu_custom_call.1} parent=11 // pred_check
          %p713 = pneg %p283
        $region46: #{tpu_custom_call.1} parent=11 // pred_check_branch
          %715 = sbr.rel (%p713) target = $region48
        $region47: #{tpu_custom_call.1} parent=11 // pred_region
          _
        $region48: #{tpu_custom_call.1} parent=11 // pred_fallthru
          _
        // Predicated region
        $region49: #{tpu_custom_call.1} parent=11 // pred_check
          %p716 = pneg %p304
        $region50: #{tpu_custom_call.1} parent=11 // pred_check_branch
          %718 = sbr.rel (%p716) target = $region52
        $region51: #{tpu_custom_call.1} parent=11 // pred_region
          _
        $region52: #{tpu_custom_call.1} parent=11 // pred_fallthru
          _
        // Predicated region
        $region53: #{tpu_custom_call.1} parent=11 // pred_check
          %p719 = pneg %p325
        $region54: #{tpu_custom_call.1} parent=11 // pred_check_branch
          %721 = sbr.rel (%p719) target = $region56
        $region55: #{tpu_custom_call.1} parent=11 // pred_region
          %s723 = ssub.s32 1024, 1024
          %724 = vsyncadd [#allocation6], %s723
          %s725 = sshll.u32 [#allocation7], 4
          %s726 = int_to_ptr.vmem [resolvable:$true] %s725
          %731 = dma.hbm_to_vmem [thread:$0]  %s12, 1024, %s726, [#allocation6], 128, 128, 8
        $region56: #{tpu_custom_call.1} parent=11 // pred_fallthru
          _
        // Predicated region
        $region57: #{tpu_custom_call.1} parent=11 // pred_check
          %p732 = pneg %p346
        $region58: #{tpu_custom_call.1} parent=11 // pred_check_branch
          %734 = sbr.rel (%p732) target = $region60
        $region59: #{tpu_custom_call.1} parent=11 // pred_region
          %s736 = ssub.s32 1024, 1024
          %737 = vsyncadd [#allocation9], %s736
          %s738 = sshll.u32 [#allocation8], 4
          %s739 = int_to_ptr.vmem [resolvable:$true] %s738
          %744 = dma.hbm_to_vmem [thread:$0]  %s13, 1024, %s739, [#allocation9], 128, 128, 8
        $region60: #{tpu_custom_call.1} parent=11 // pred_fallthru
          _
        // Predicated region
        $region61: #{tpu_custom_call.1} parent=11 // pred_check
          %p745 = pneg %p367
        $region62: #{tpu_custom_call.1} parent=11 // pred_check_branch
          %747 = sbr.rel (%p745) target = $region64
        $region63: #{tpu_custom_call.1} parent=11 // pred_region
          _
        $region64: #{tpu_custom_call.1} parent=11 // pred_fallthru
          _
        // Predicated region
        $region65: #{tpu_custom_call.1} parent=11 // pred_check
          %p748 = pneg %p388
        $region66: #{tpu_custom_call.1} parent=11 // pred_check_branch
          %750 = sbr.rel (%p748) target = $region68
        $region67: #{tpu_custom_call.1} parent=11 // pred_region
          _
        $region68: #{tpu_custom_call.1} parent=11 // pred_fallthru
          _
        // Predicated region
        $region69: #{tpu_custom_call.1} parent=11 // pred_check
          %p751 = pneg %p409
        $region70: #{tpu_custom_call.1} parent=11 // pred_check_branch
          %753 = sbr.rel (%p751) target = $region72
        $region71: #{tpu_custom_call.1} parent=11 // pred_region
          _
        $region72: #{tpu_custom_call.1} parent=11 // pred_fallthru
          _
        // Predicated region
        $region73: #{tpu_custom_call.1} parent=11 // pred_check
          %p754 = pneg %p430
        $region74: #{tpu_custom_call.1} parent=11 // pred_check_branch
          %756 = sbr.rel (%p754) target = $region76
        $region75: #{tpu_custom_call.1} parent=11 // pred_region
          _
        $region76: #{tpu_custom_call.1} parent=11 // pred_fallthru
          _
        // Predicated region
        $region77: #{tpu_custom_call.1} parent=11 // pred_check
          %p757 = pneg %p451
        $region78: #{tpu_custom_call.1} parent=11 // pred_check_branch
          %759 = sbr.rel (%p757) target = $region80
        $region79: #{tpu_custom_call.1} parent=11 // pred_region
          %s761 = ssub.s32 1024, 1024
          %762 = vsyncadd [#allocation9], %s761
          %s763 = sshll.u32 [#allocation10], 4
          %s764 = int_to_ptr.vmem [resolvable:$true] %s763
          %769 = dma.hbm_to_vmem [thread:$0]  %s18, 1024, %s764, [#allocation9], 128, 128, 8
        $region80: #{tpu_custom_call.1} parent=11 // pred_fallthru
          _
        // Predicated region
        $region81: #{tpu_custom_call.1} parent=11 // pred_check
          %p770 = pneg %p472
        $region82: #{tpu_custom_call.1} parent=11 // pred_check_branch
          %772 = sbr.rel (%p770) target = $region84
        $region83: #{tpu_custom_call.1} parent=11 // pred_region
          _
        $region84: #{tpu_custom_call.1} parent=11 // pred_fallthru
          _
        // Predicated region
        $region85: #{tpu_custom_call.1} parent=11 // pred_check
          %p773 = pneg %p493
        $region86: #{tpu_custom_call.1} parent=11 // pred_check_branch
          %775 = sbr.rel (%p773) target = $region88
        $region87: #{tpu_custom_call.1} parent=11 // pred_region
          _
        $region88: #{tpu_custom_call.1} parent=11 // pred_fallthru
          _
        // Predicated region
        $region89: #{tpu_custom_call.1} parent=11 // pred_check
          %p776 = pneg %p514
        $region90: #{tpu_custom_call.1} parent=11 // pred_check_branch
          %778 = sbr.rel (%p776) target = $region92
        $region91: #{tpu_custom_call.1} parent=11 // pred_region
          _
        $region92: #{tpu_custom_call.1} parent=11 // pred_fallthru
          _
        // Predicated region
        $region93: #{tpu_custom_call.1} parent=11 // pred_check
          %p779 = pneg %p535
        $region94: #{tpu_custom_call.1} parent=11 // pred_check_branch
          %781 = sbr.rel (%p779) target = $region96
        $region95: #{tpu_custom_call.1} parent=11 // pred_region
          _
        $region96: #{tpu_custom_call.1} parent=11 // pred_fallthru
          _
        // Predicated region
        $region97: #{tpu_custom_call.1} parent=11 // pred_check
          %p782 = pneg %p556
        $region98: #{tpu_custom_call.1} parent=11 // pred_check_branch
          %784 = sbr.rel (%p782) target = $region100
        $region99: #{tpu_custom_call.1} parent=11 // pred_region
          _
        $region100: #{tpu_custom_call.1} parent=11 // pred_fallthru
          _
        // Predicated region
        $region101: #{tpu_custom_call.1} parent=11 // pred_check
          %p785 = pneg %p577
        $region102: #{tpu_custom_call.1} parent=11 // pred_check_branch
          %787 = sbr.rel (%p785) target = $region104
        $region103: #{tpu_custom_call.1} parent=11 // pred_region
          _
        $region104: #{tpu_custom_call.1} parent=11 // pred_fallthru
          _
        // Predicated region
        $region105: #{tpu_custom_call.1} parent=11 // pred_check
          %p788 = pneg %p598
        $region106: #{tpu_custom_call.1} parent=11 // pred_check_branch
          %790 = sbr.rel (%p788) target = $region108
        $region107: #{tpu_custom_call.1} parent=11 // pred_region
          _
        $region108: #{tpu_custom_call.1} parent=11 // pred_fallthru
          _
        // Predicated region
        $region109: #{tpu_custom_call.1} parent=11 // pred_check
          %p791 = pneg %p619
        $region110: #{tpu_custom_call.1} parent=11 // pred_check_branch
          %793 = sbr.rel (%p791) target = $region112
        $region111: #{tpu_custom_call.1} parent=11 // pred_region
          _
        $region112: #{tpu_custom_call.1} parent=11 // pred_fallthru
          _
        // Predicated region
        $region113: #{tpu_custom_call.1} parent=11 // pred_check
          %p794 = pneg %p640
        $region114: #{tpu_custom_call.1} parent=11 // pred_check_branch
          %796 = sbr.rel (%p794) target = $region116
        $region115: #{tpu_custom_call.1} parent=11 // pred_region
          _
        $region116: #{tpu_custom_call.1} parent=11 // pred_fallthru
          _
      $region12: #{tpu_custom_call.1} parent=5 // pred_fallthru
        _
      %p797 = scmp.lt.s32.totalorder %s42, 2
      // Predicated region
      $region117: #{tpu_custom_call.1} parent=5 // pred_check
        %p798 = pneg %p797
      $region118: #{tpu_custom_call.1} parent=5 // pred_check_branch
        %800 = sbr.rel (%p798) target = $region120
      $region119: #{tpu_custom_call.1} parent=5 // pred_region
        // Predicated region
        $region121: #{tpu_custom_call.1} parent=119 // pred_check
          %p801 = pneg %p62
        $region122: #{tpu_custom_call.1} parent=119 // pred_check_branch
          %803 = sbr.rel (%p801) target = $region124
        $region123: #{tpu_custom_call.1} parent=119 // pred_region
          %p804 = scmp.lt.s32.totalorder %s42, 1
          %s805 = scalar_select %p804, %s42, 1
          %s806 = smul.addr %s805, 16
          %s807 = smul.addr %s806, 8
          %s808 = scalar_lea.vmem %s0, %s807
        $region124: #{tpu_custom_call.1} parent=119 // pred_fallthru
          _
        // Predicated region
        $region125: #{tpu_custom_call.1} parent=119 // pred_check
          %p809 = pneg %p88
        $region126: #{tpu_custom_call.1} parent=119 // pred_check_branch
          %811 = sbr.rel (%p809) target = $region128
        $region127: #{tpu_custom_call.1} parent=119 // pred_region
          %s812 = sand.u32 %s78, 1
          %s813 = scalar_lea.sflag [#allocation3], %s812
          %s814 = sand.u32 %s78, 1
          %s815 = smul.addr %s814, 4
          %s816 = scalar_lea.vmem [#allocation2], %s815
          %s818 = ssub.s32 64, 64
          %819 = vsyncadd %s813, %s818
          %s820 = smul.addr %s42, 64
          %s821 = scalar_lea.hbm %s1, %s820
          %s823 = sshll.u32 %s816, 4
          %s824 = int_to_ptr.vmem [resolvable:$true] %s823
          %826 = dma.hbm_to_vmem [thread:$0]  %s821, 64, %s824, %s813
        $region128: #{tpu_custom_call.1} parent=119 // pred_fallthru
          _
      $region120: #{tpu_custom_call.1} parent=5 // pred_fallthru
        _
      %p827 = scmp.le.s32.totalorder 1, %s42
      %p828 = scmp.lt.s32.totalorder %s42, 3
      %p829 = pnand %p827, %p828
      %p830 = pneg %p829
      // Predicated region
      $region129: #{tpu_custom_call.1} parent=5 // pred_check
        _
      $region130: #{tpu_custom_call.1} parent=5 // pred_check_branch
        %832 = sbr.rel (%p829) target = $region132
      $region131: #{tpu_custom_call.1} parent=5 // pred_region
        %s833 = ssub.s32 %s42, 1
        %s834 = sand.u32 %s81, 1
        %s835 = scalar_lea.sflag [#allocation3], %s834
        %s836 = sand.u32 %s81, 1
        %s837 = smul.addr %s836, 4
        %s838 = scalar_lea.vmem [#allocation2], %s837
        // Predicated region
        $region133: #{tpu_custom_call.1} parent=131 // pred_check
          %p839 = pneg %p94
        $region134: #{tpu_custom_call.1} parent=131 // pred_check_branch
          %841 = sbr.rel (%p839) target = $region136
        $region135: #{tpu_custom_call.1} parent=131 // pred_region
          %842 = dma.done %s835, 64
        $region136: #{tpu_custom_call.1} parent=131 // pred_fallthru
          _
        // Predicated region
        $region137: #{tpu_custom_call.1} parent=131 // pred_check
          %p843 = pneg %p136
        $region138: #{tpu_custom_call.1} parent=131 // pred_check_branch
          %845 = sbr.rel (%p843) target = $region140
        $region139: #{tpu_custom_call.1} parent=131 // pred_region
          %846 = dma.done [#allocation6], 16
        $region140: #{tpu_custom_call.1} parent=131 // pred_fallthru
          _
        // Predicated region
        $region141: #{tpu_custom_call.1} parent=131 // pred_check
          %p847 = pneg %p325
        $region142: #{tpu_custom_call.1} parent=131 // pred_check_branch
          %849 = sbr.rel (%p847) target = $region144
        $region143: #{tpu_custom_call.1} parent=131 // pred_region
          %850 = dma.done [#allocation6], 1024
        $region144: #{tpu_custom_call.1} parent=131 // pred_fallthru
          _
        // Predicated region
        $region145: #{tpu_custom_call.1} parent=131 // pred_check
          %p851 = pneg %p346
        $region146: #{tpu_custom_call.1} parent=131 // pred_check_branch
          %853 = sbr.rel (%p851) target = $region148
        $region147: #{tpu_custom_call.1} parent=131 // pred_region
          %854 = dma.done [#allocation9], 1024
        $region148: #{tpu_custom_call.1} parent=131 // pred_fallthru
          _
        // Predicated region
        $region149: #{tpu_custom_call.1} parent=131 // pred_check
          %p855 = pneg %p451
        $region150: #{tpu_custom_call.1} parent=131 // pred_check_branch
          %857 = sbr.rel (%p855) target = $region152
        $region151: #{tpu_custom_call.1} parent=131 // pred_region
          %858 = dma.done [#allocation9], 1024
        $region152: #{tpu_custom_call.1} parent=131 // pred_fallthru
          _
        %p859 = scmp.lt.s32.totalorder %s47, 1
        %s860 = scalar_select %p859, %s47, 1
        %s861 = smul.addr %s860, 16
        %s862 = smul.addr %s861, 8
        %s863 = scalar_lea.vmem %s0, %s862
        %p864 = pneg %p68
        %p865 = pneg %p65
        %s866 = sand.u32 %s81, 1
        %s867 = scalar_lea.sflag [#allocation3], %s866
        %s868 = sand.u32 %s81, 1
        %s869 = smul.addr %s868, 4
        %s870 = scalar_lea.vmem [#allocation2], %s869
        %p871 = pneg %p94
        %p872 = pneg %p91
        %p873 = pneg %p115
        %p874 = pneg %p112
        %p875 = pneg %p136
        %p876 = pneg %p133
        %p877 = pneg %p157
        %p878 = pneg %p154
        %p879 = pneg %p178
        %p880 = pneg %p175
        %p881 = pneg %p199
        %p882 = pneg %p196
        %p883 = pneg %p220
        %p884 = pneg %p217
        %p885 = pneg %p241
        %p886 = pneg %p238
        %p887 = pneg %p262
        %p888 = pneg %p259
        %p889 = pneg %p283
        %p890 = pneg %p280
        %p891 = pneg %p304
        %p892 = pneg %p301
        %p893 = pneg %p325
        %p894 = pneg %p322
        %p895 = pneg %p346
        %p896 = pneg %p343
        %p897 = pneg %p367
        %p898 = pneg %p364
        %p899 = pneg %p388
        %p900 = pneg %p385
        %p901 = pneg %p409
        %p902 = pneg %p406
        %p903 = pneg %p430
        %p904 = pneg %p427
        %p905 = pneg %p451
        %p906 = pneg %p448
        %p907 = pneg %p472
        %p908 = pneg %p469
        %p909 = pneg %p493
        %p910 = pneg %p490
        %p911 = pneg %p514
        %p912 = pneg %p511
        %p913 = pneg %p535
        %p914 = pneg %p532
        %p915 = pneg %p556
        %p916 = pneg %p553
        %p917 = pneg %p577
        %p918 = pneg %p574
        %p919 = pneg %p598
        %p920 = pneg %p595
        %p921 = pneg %p619
        %p922 = pneg %p616
        %p923 = pneg %p640
        %p924 = pneg %p637
        %p925 = pneg %p666
        %p926 = pneg %p663
        %s927 = sand.u32 %s653, 1
        %s928 = scalar_lea.sflag [#allocation4], %s927
        %s929 = sand.u32 %s653, 1
        %s930 = smul.addr %s929, 4
        %s931 = scalar_lea.vmem [#allocation11], %s930
        %p932 = scmp.lt.s32.totalorder %s47, 1
        %s933 = scalar_select %p932, %s47, 1
        %s934 = smul.addr %s933, 16
        %s935 = smul.addr %s934, 8
        %s936 = scalar_lea.vmem %s0, %s935
        %v937 = vld [vmem:[%s936] sm:$0xff]
        %v938 = vld [vmem:[%s936 + $0x8] sm:$0xff]
        %v939 = vld [vmem:[%s936 + $0x10] sm:$0xff]
        %v940 = vld [vmem:[%s936 + $0x18] sm:$0xff]
        %v941 = vld [vmem:[%s936 + $0x20] sm:$0xff]
        %v942 = vld [vmem:[%s936 + $0x28] sm:$0xff]
        %v943 = vld [vmem:[%s936 + $0x30] sm:$0xff]
        %v944 = vld [vmem:[%s936 + $0x38] sm:$0xff]
        %v945 = vld [vmem:[%s936 + $0x40] sm:$0xff]
        %v946 = vld [vmem:[%s936 + $0x48] sm:$0xff]
        %v947 = vld [vmem:[%s936 + $0x50] sm:$0xff]
        %v948 = vld [vmem:[%s936 + $0x58] sm:$0xff]
        %v949 = vld [vmem:[%s936 + $0x60] sm:$0xff]
        %v950 = vld [vmem:[%s936 + $0x68] sm:$0xff]
        %v951 = vld [vmem:[%s936 + $0x70] sm:$0xff]
        %v952 = vld [vmem:[%s936 + $0x78] sm:$0xff]
        %v953 = vld [vmem:[%s838] sm:$0xf]
        %v954 = vld [vmem:[%s22] sm:$0x1]
        %v955 = vld [vmem:[%s23] sm:$0x1]
        %vm956 = vcmask 523264
        %v957 = vsel %vm956, %v937, 0.0
        %958 = vadd.xlane.f32.xlu0 %v957
        %v959 = vpop.xlane.xlu0 %958
        %v960 = vsel %vm956, %v938, 0.0
        %961 = vadd.xlane.f32.xlu0 %v960
        %v962 = vpop.xlane.xlu0 %961
        %v963 = vsel %vm956, %v939, 0.0
        %964 = vadd.xlane.f32.xlu0 %v963
        %v965 = vpop.xlane.xlu0 %964
        %v966 = vsel %vm956, %v940, 0.0
        %967 = vadd.xlane.f32.xlu0 %v966
        %v968 = vpop.xlane.xlu0 %967
        %v969 = vsel %vm956, %v941, 0.0
        %970 = vadd.xlane.f32.xlu0 %v969
        %v971 = vpop.xlane.xlu0 %970
        %v972 = vsel %vm956, %v942, 0.0
        %973 = vadd.xlane.f32.xlu0 %v972
        %v974 = vpop.xlane.xlu0 %973
        %v975 = vsel %vm956, %v943, 0.0
        %976 = vadd.xlane.f32.xlu0 %v975
        %v977 = vpop.xlane.xlu0 %976
        %v978 = vsel %vm956, %v944, 0.0
        %979 = vadd.xlane.f32.xlu0 %v978
        %v980 = vpop.xlane.xlu0 %979
        %v981 = vsel %vm956, %v945, 0.0
        %982 = vadd.xlane.f32.xlu0 %v981
        %v983 = vpop.xlane.xlu0 %982
        %v984 = vsel %vm956, %v946, 0.0
        %985 = vadd.xlane.f32.xlu0 %v984
        %v986 = vpop.xlane.xlu0 %985
        %v987 = vsel %vm956, %v947, 0.0
        %988 = vadd.xlane.f32.xlu0 %v987
        %v989 = vpop.xlane.xlu0 %988
        %v990 = vsel %vm956, %v948, 0.0
        %991 = vadd.xlane.f32.xlu0 %v990
        %v992 = vpop.xlane.xlu0 %991
        %v993 = vsel %vm956, %v949, 0.0
        %994 = vadd.xlane.f32.xlu0 %v993
        %v995 = vpop.xlane.xlu0 %994
        %v996 = vsel %vm956, %v950, 0.0
        %997 = vadd.xlane.f32.xlu0 %v996
        %v998 = vpop.xlane.xlu0 %997
        %v999 = vsel %vm956, %v951, 0.0
        %1000 = vadd.xlane.f32.xlu0 %v999
        %v1001 = vpop.xlane.xlu0 %1000
        %v1002 = vsel %vm956, %v952, 0.0
        %1003 = vadd.xlane.f32.xlu0 %v1002
        %v1004 = vpop.xlane.xlu0 %1003
        %v1005 = vrcp.pop 64.0
        %v1006 = vmul.f32 %v959, %v1005
        %v1007 = vmul.f32 %v962, %v1005
        %v1008 = vmul.f32 %v965, %v1005
        %v1009 = vmul.f32 %v968, %v1005
        %v1010 = vmul.f32 %v971, %v1005
        %v1011 = vmul.f32 %v974, %v1005
        %v1012 = vmul.f32 %v977, %v1005
        %v1013 = vmul.f32 %v980, %v1005
        %v1014 = vmul.f32 %v983, %v1005
        %v1015 = vmul.f32 %v986, %v1005
        %v1016 = vmul.f32 %v989, %v1005
        %v1017 = vmul.f32 %v992, %v1005
        %v1018 = vmul.f32 %v995, %v1005
        %v1019 = vmul.f32 %v998, %v1005
        %v1020 = vmul.f32 %v1001, %v1005
        %v1021 = vmul.f32 %v1004, %v1005
        %v1022 = vsub.f32 %v937, %v1006
        %v1023 = vsub.f32 %v938, %v1007
        %v1024 = vsub.f32 %v939, %v1008
        %v1025 = vsub.f32 %v940, %v1009
        %v1026 = vsub.f32 %v941, %v1010
        %v1027 = vsub.f32 %v942, %v1011
        %v1028 = vsub.f32 %v943, %v1012
        %v1029 = vsub.f32 %v944, %v1013
        %v1030 = vsub.f32 %v945, %v1014
        %v1031 = vsub.f32 %v946, %v1015
        %v1032 = vsub.f32 %v947, %v1016
        %v1033 = vsub.f32 %v948, %v1017
        %v1034 = vsub.f32 %v949, %v1018
        %v1035 = vsub.f32 %v950, %v1019
        %v1036 = vsub.f32 %v951, %v1020
        %v1037 = vsub.f32 %v952, %v1021
        %v1038 = vmul.f32 %v1022, %v1022
        %v1039 = vmul.f32 %v1023, %v1023
        %v1040 = vmul.f32 %v1024, %v1024
        %v1041 = vmul.f32 %v1025, %v1025
        %v1042 = vmul.f32 %v1026, %v1026
        %v1043 = vmul.f32 %v1027, %v1027
        %v1044 = vmul.f32 %v1028, %v1028
        %v1045 = vmul.f32 %v1029, %v1029
        %v1046 = vmul.f32 %v1030, %v1030
        %v1047 = vmul.f32 %v1031, %v1031
        %v1048 = vmul.f32 %v1032, %v1032
        %v1049 = vmul.f32 %v1033, %v1033
        %v1050 = vmul.f32 %v1034, %v1034
        %v1051 = vmul.f32 %v1035, %v1035
        %v1052 = vmul.f32 %v1036, %v1036
        %v1053 = vmul.f32 %v1037, %v1037
        %v1054 = vsel %vm956, %v1038, 0.0
        %1055 = vadd.xlane.f32.xlu0 %v1054
        %v1056 = vpop.xlane.xlu0 %1055
        %v1057 = vsel %vm956, %v1039, 0.0
        %1058 = vadd.xlane.f32.xlu0 %v1057
        %v1059 = vpop.xlane.xlu0 %1058
        %v1060 = vsel %vm956, %v1040, 0.0
        %1061 = vadd.xlane.f32.xlu0 %v1060
        %v1062 = vpop.xlane.xlu0 %1061
        %v1063 = vsel %vm956, %v1041, 0.0
        %1064 = vadd.xlane.f32.xlu0 %v1063
        %v1065 = vpop.xlane.xlu0 %1064
        %v1066 = vsel %vm956, %v1042, 0.0
        %1067 = vadd.xlane.f32.xlu0 %v1066
        %v1068 = vpop.xlane.xlu0 %1067
        %v1069 = vsel %vm956, %v1043, 0.0
        %1070 = vadd.xlane.f32.xlu0 %v1069
        %v1071 = vpop.xlane.xlu0 %1070
        %v1072 = vsel %vm956, %v1044, 0.0
        %1073 = vadd.xlane.f32.xlu0 %v1072
        %v1074 = vpop.xlane.xlu0 %1073
        %v1075 = vsel %vm956, %v1045, 0.0
        %1076 = vadd.xlane.f32.xlu0 %v1075
        %v1077 = vpop.xlane.xlu0 %1076
        %v1078 = vsel %vm956, %v1046, 0.0
        %1079 = vadd.xlane.f32.xlu0 %v1078
        %v1080 = vpop.xlane.xlu0 %1079
        %v1081 = vsel %vm956, %v1047, 0.0
        %1082 = vadd.xlane.f32.xlu0 %v1081
        %v1083 = vpop.xlane.xlu0 %1082
        %v1084 = vsel %vm956, %v1048, 0.0
        %1085 = vadd.xlane.f32.xlu0 %v1084
        %v1086 = vpop.xlane.xlu0 %1085
        %v1087 = vsel %vm956, %v1049, 0.0
        %1088 = vadd.xlane.f32.xlu0 %v1087
        %v1089 = vpop.xlane.xlu0 %1088
        %v1090 = vsel %vm956, %v1050, 0.0
        %1091 = vadd.xlane.f32.xlu0 %v1090
        %v1092 = vpop.xlane.xlu0 %1091
        %v1093 = vsel %vm956, %v1051, 0.0
        %1094 = vadd.xlane.f32.xlu0 %v1093
        %v1095 = vpop.xlane.xlu0 %1094
        %v1096 = vsel %vm956, %v1052, 0.0
        %1097 = vadd.xlane.f32.xlu0 %v1096
        %v1098 = vpop.xlane.xlu0 %1097
        %v1099 = vsel %vm956, %v1053, 0.0
        %1100 = vadd.xlane.f32.xlu0 %v1099
        %v1101 = vpop.xlane.xlu0 %1100
        %v1102 = vmul.f32 %v1056, %v1005
        %v1103 = vmul.f32 %v1059, %v1005
        %v1104 = vmul.f32 %v1062, %v1005
        %v1105 = vmul.f32 %v1065, %v1005
        %v1106 = vmul.f32 %v1068, %v1005
        %v1107 = vmul.f32 %v1071, %v1005
        %v1108 = vmul.f32 %v1074, %v1005
        %v1109 = vmul.f32 %v1077, %v1005
        %v1110 = vmul.f32 %v1080, %v1005
        %v1111 = vmul.f32 %v1083, %v1005
        %v1112 = vmul.f32 %v1086, %v1005
        %v1113 = vmul.f32 %v1089, %v1005
        %v1114 = vmul.f32 %v1092, %v1005
        %v1115 = vmul.f32 %v1095, %v1005
        %v1116 = vmul.f32 %v1098, %v1005
        %v1117 = vmul.f32 %v1101, %v1005
        %v1118 = vadd.f32 %v1102, 1e-05
        %v1119 = vadd.f32 %v1103, 1e-05
        %v1120 = vadd.f32 %v1104, 1e-05
        %v1121 = vadd.f32 %v1105, 1e-05
        %v1122 = vadd.f32 %v1106, 1e-05
        %v1123 = vadd.f32 %v1107, 1e-05
        %v1124 = vadd.f32 %v1108, 1e-05
        %v1125 = vadd.f32 %v1109, 1e-05
        %v1126 = vadd.f32 %v1110, 1e-05
        %v1127 = vadd.f32 %v1111, 1e-05
        %v1128 = vadd.f32 %v1112, 1e-05
        %v1129 = vadd.f32 %v1113, 1e-05
        %v1130 = vadd.f32 %v1114, 1e-05
        %v1131 = vadd.f32 %v1115, 1e-05
        %v1132 = vadd.f32 %v1116, 1e-05
        %v1133 = vadd.f32 %v1117, 1e-05
        %v1134 = vrsqrt.pop %v1118
        %v1135 = vrsqrt.pop %v1119
        %v1136 = vrsqrt.pop %v1120
        %v1137 = vrsqrt.pop %v1121
        %v1138 = vrsqrt.pop %v1122
        %v1139 = vrsqrt.pop %v1123
        %v1140 = vrsqrt.pop %v1124
        %v1141 = vrsqrt.pop %v1125
        %v1142 = vrsqrt.pop %v1126
        %v1143 = vrsqrt.pop %v1127
        %v1144 = vrsqrt.pop %v1128
        %v1145 = vrsqrt.pop %v1129
        %v1146 = vrsqrt.pop %v1130
        %v1147 = vrsqrt.pop %v1131
        %v1148 = vrsqrt.pop %v1132
        %v1149 = vrsqrt.pop %v1133
        %v1150 = vmul.f32 %v1022, %v1134
        %v1151 = vmul.f32 %v1023, %v1135
        %v1152 = vmul.f32 %v1024, %v1136
        %v1153 = vmul.f32 %v1025, %v1137
        %v1154 = vmul.f32 %v1026, %v1138
        %v1155 = vmul.f32 %v1027, %v1139
        %v1156 = vmul.f32 %v1028, %v1140
        %v1157 = vmul.f32 %v1029, %v1141
        %v1158 = vmul.f32 %v1030, %v1142
        %v1159 = vmul.f32 %v1031, %v1143
        %v1160 = vmul.f32 %v1032, %v1144
        %v1161 = vmul.f32 %v1033, %v1145
        %v1162 = vmul.f32 %v1034, %v1146
        %v1163 = vmul.f32 %v1035, %v1147
        %v1164 = vmul.f32 %v1036, %v1148
        %v1165 = vmul.f32 %v1037, %v1149
        %v1167 = vlaneseq
        %v1168 = vshrl.u32 %v1167, 7
        %v1169 = vsub.s32 0, %v1168
        %v1170 = vrot.slane %v954, %v1169
        %v1172 = vmul.f32 %v1150, %v1170
        %v1173 = vmul.f32 %v1151, %v1170
        %v1174 = vmul.f32 %v1152, %v1170
        %v1175 = vmul.f32 %v1153, %v1170
        %v1176 = vmul.f32 %v1154, %v1170
        %v1177 = vmul.f32 %v1155, %v1170
        %v1178 = vmul.f32 %v1156, %v1170
        %v1179 = vmul.f32 %v1157, %v1170
        %v1180 = vmul.f32 %v1158, %v1170
        %v1181 = vmul.f32 %v1159, %v1170
        %v1182 = vmul.f32 %v1160, %v1170
        %v1183 = vmul.f32 %v1161, %v1170
        %v1184 = vmul.f32 %v1162, %v1170
        %v1185 = vmul.f32 %v1163, %v1170
        %v1186 = vmul.f32 %v1164, %v1170
        %v1187 = vmul.f32 %v1165, %v1170
        %v1189 = vlaneseq
        %v1190 = vshrl.u32 %v1189, 7
        %v1191 = vsub.s32 0, %v1190
        %v1192 = vrot.slane %v955, %v1191
        %v1194 = vadd.f32 %v1172, %v1192
        %v1195 = vadd.f32 %v1173, %v1192
        %v1196 = vadd.f32 %v1174, %v1192
        %v1197 = vadd.f32 %v1175, %v1192
        %v1198 = vadd.f32 %v1176, %v1192
        %v1199 = vadd.f32 %v1177, %v1192
        %v1200 = vadd.f32 %v1178, %v1192
        %v1201 = vadd.f32 %v1179, %v1192
        %v1202 = vadd.f32 %v1180, %v1192
        %v1203 = vadd.f32 %v1181, %v1192
        %v1204 = vadd.f32 %v1182, %v1192
        %v1205 = vadd.f32 %v1183, %v1192
        %v1206 = vadd.f32 %v1184, %v1192
        %v1207 = vadd.f32 %v1185, %v1192
        %v1208 = vadd.f32 %v1186, %v1192
        %v1209 = vadd.f32 %v1187, %v1192
        %v1210 = vld [vmem:[%s4] sm:$0xff]
        %v1211 = vld [vmem:[%s4 + $0x8] sm:$0xff]
        %v1212 = vld [vmem:[%s4 + $0x10] sm:$0xff]
        %v1213 = vld [vmem:[%s4 + $0x18] sm:$0xff]
        %v1214 = vld [vmem:[%s4 + $0x20] sm:$0xff]
        %v1215 = vld [vmem:[%s4 + $0x28] sm:$0xff]
        %v1216 = vld [vmem:[%s4 + $0x30] sm:$0xff]
        %v1217 = vld [vmem:[%s4 + $0x38] sm:$0xff]
        %v1218 = vld [vmem:[%s5] sm:$0x1]
        %v1220 = vlaneseq
        %v1221 = vshrl.u32 %v1220, 7
        %v1222 = vsub.s32 0, %v1221
        %v1223 = vrot.slane %v1218, %v1222
        %v1226 = vsel %vm956, %v1194, 0
        %v1229 = vsel %vm956, %v1195, 0
        %v1232 = vsel %vm956, %v1196, 0
        %v1235 = vsel %vm956, %v1197, 0
        %v1238 = vsel %vm956, %v1198, 0
        %v1241 = vsel %vm956, %v1199, 0
        %v1244 = vsel %vm956, %v1200, 0
        %v1247 = vsel %vm956, %v1201, 0
        %v1250 = vsel %vm956, %v1202, 0
        %v1253 = vsel %vm956, %v1203, 0
        %v1256 = vsel %vm956, %v1204, 0
        %v1259 = vsel %vm956, %v1205, 0
        %v1262 = vsel %vm956, %v1206, 0
        %v1265 = vsel %vm956, %v1207, 0
        %v1268 = vsel %vm956, %v1208, 0
        %v1271 = vsel %vm956, %v1209, 0
        %1273 = vmatprep.subr.mxu0 0.0
        %1274 = vmatpush1.msra.mxu0 0.0
        %1275 = vmatprep.subr.mxu0 0.0
        %1276 = vmatpush1.msra.mxu0 0.0
        %1277 = vmatprep.subr.mxu0 0.0
        %1278 = vmatpush1.msra.mxu0 0.0
        %1279 = vmatprep.subr.mxu0 0.0
        %1280 = vmatpush1.msra.mxu0 0.0
        %1281 = vmatprep.subr.mxu0 0.0
        %1282 = vmatpush1.msra.mxu0 0.0
        %1283 = vmatprep.subr.mxu0 0.0
        %1284 = vmatpush1.msra.mxu0 0.0
        %1285 = vmatprep.subr.mxu0 0.0
        %1286 = vmatpush1.msra.mxu0 0.0
        %1287 = vmatprep.subr.mxu0 0.0
        %1288 = vmatpush1.msra.mxu0 0.0
        %1289 = vmatprep.subr.mxu0 0.0
        %1290 = vmatpush1.msra.mxu0 %v1217
        %1291 = vmatprep.subr.mxu0 0.0
        %1292 = vmatpush1.msra.mxu0 %v1216
        %1293 = vmatprep.subr.mxu0 0.0
        %1294 = vmatpush1.msra.mxu0 %v1215
        %1295 = vmatprep.subr.mxu0 0.0
        %1296 = vmatpush1.msra.mxu0 %v1214
        %1297 = vmatprep.subr.mxu0 0.0
        %1298 = vmatpush1.msra.mxu0 %v1213
        %1299 = vmatprep.subr.mxu0 0.0
        %1300 = vmatpush1.msra.mxu0 %v1212
        %1301 = vmatprep.subr.mxu0 0.0
        %1302 = vmatpush1.msra.mxu0 %v1211
        %1303 = vmatprep.subr.mxu0 0.0
        %1304 = vmatpush1.msra.mxu0 %v1210
        %1305 = vmatprep.subr.mxu0 0.0
        %1306 = vmatpush2.msra.mxu0 0.0
        %1307 = vmatprep.subr.mxu0 0.0
        %1308 = vmatpush2.msra.mxu0 0.0
        %1309 = vmatprep.subr.mxu0 0.0
        %1310 = vmatpush2.msra.mxu0 0.0
        %1311 = vmatprep.subr.mxu0 0.0
        %1312 = vmatpush2.msra.mxu0 0.0
        %1313 = vmatprep.subr.mxu0 0.0
        %1314 = vmatpush2.msra.mxu0 0.0
        %1315 = vmatprep.subr.mxu0 0.0
        %1316 = vmatpush2.msra.mxu0 0.0
        %1317 = vmatprep.subr.mxu0 0.0
        %1318 = vmatpush2.msra.mxu0 0.0
        %1319 = vmatprep.subr.mxu0 0.0
        %1320 = vmatpush2.msra.mxu0 0.0
        %1321 = vmatprep.subr.mxu0 0.0
        %1322 = vmatpush2.msra.mxu0 0.0
        %1323 = vmatprep.subr.mxu0 0.0
        %1324 = vmatpush2.msra.mxu0 0.0
        %1325 = vmatprep.subr.mxu0 0.0
        %1326 = vmatpush2.msra.mxu0 0.0
        %1327 = vmatprep.subr.mxu0 0.0
        %1328 = vmatpush2.msra.mxu0 0.0
        %1329 = vmatprep.subr.mxu0 0.0
        %1330 = vmatpush2.msra.mxu0 0.0
        %1331 = vmatprep.subr.mxu0 0.0
        %1332 = vmatpush2.msra.mxu0 0.0
        %1333 = vmatprep.subr.mxu0 0.0
        %1334 = vmatpush2.msra.mxu0 0.0
        %1335 = vmatprep.subr.mxu0 0.0
        %1336 = vmatpush2.msra.mxu0 0.0
        %1337 = vmatprep.mubr.f32.mxu0 0.0
        %1338 = vmatmul.mubr.f32.gmra.mxu0 %v1226
        %v1339 = vpop.f32.mrf.mxu0
        %v1340 = vadd.f32 %v1223, %v1339
        %v1341 = vpop.f32.mrf.mxu0
        %1342 = vmatprep.mubr.f32.mxu0 0.0
        %1343 = vmatmul.mubr.f32.gmra.mxu0 %v1229
        %v1344 = vpop.f32.mrf.mxu0
        %v1345 = vadd.f32 %v1223, %v1344
        %v1346 = vpop.f32.mrf.mxu0
        %1347 = vmatprep.mubr.f32.mxu0 0.0
        %1348 = vmatmul.mubr.f32.gmra.mxu0 %v1232
        %v1349 = vpop.f32.mrf.mxu0
        %v1350 = vadd.f32 %v1223, %v1349
        %v1351 = vpop.f32.mrf.mxu0
        %1352 = vmatprep.mubr.f32.mxu0 0.0
        %1353 = vmatmul.mubr.f32.gmra.mxu0 %v1235
        %v1354 = vpop.f32.mrf.mxu0
        %v1355 = vadd.f32 %v1223, %v1354
        %v1356 = vpop.f32.mrf.mxu0
        %1357 = vmatprep.mubr.f32.mxu0 0.0
        %1358 = vmatmul.mubr.f32.gmra.mxu0 %v1238
        %v1359 = vpop.f32.mrf.mxu0
        %v1360 = vadd.f32 %v1223, %v1359
        %v1361 = vpop.f32.mrf.mxu0
        %1362 = vmatprep.mubr.f32.mxu0 0.0
        %1363 = vmatmul.mubr.f32.gmra.mxu0 %v1241
        %v1364 = vpop.f32.mrf.mxu0
        %v1365 = vadd.f32 %v1223, %v1364
        %v1366 = vpop.f32.mrf.mxu0
        %1367 = vmatprep.mubr.f32.mxu0 0.0
        %1368 = vmatmul.mubr.f32.gmra.mxu0 %v1244
        %v1369 = vpop.f32.mrf.mxu0
        %v1370 = vadd.f32 %v1223, %v1369
        %v1371 = vpop.f32.mrf.mxu0
        %1372 = vmatprep.mubr.f32.mxu0 0.0
        %1373 = vmatmul.mubr.f32.gmra.mxu0 %v1247
        %v1374 = vpop.f32.mrf.mxu0
        %v1375 = vadd.f32 %v1223, %v1374
        %v1376 = vpop.f32.mrf.mxu0
        %1377 = vmatprep.mubr.f32.mxu0 0.0
        %1378 = vmatmul.mubr.f32.gmra.mxu0 %v1250
        %v1379 = vpop.f32.mrf.mxu0
        %v1380 = vadd.f32 %v1223, %v1379
        %v1381 = vpop.f32.mrf.mxu0
        %1382 = vmatprep.mubr.f32.mxu0 0.0
        %1383 = vmatmul.mubr.f32.gmra.mxu0 %v1253
        %v1384 = vpop.f32.mrf.mxu0
        %v1385 = vadd.f32 %v1223, %v1384
        %v1386 = vpop.f32.mrf.mxu0
        %1387 = vmatprep.mubr.f32.mxu0 0.0
        %1388 = vmatmul.mubr.f32.gmra.mxu0 %v1256
        %v1389 = vpop.f32.mrf.mxu0
        %v1390 = vadd.f32 %v1223, %v1389
        %v1391 = vpop.f32.mrf.mxu0
        %1392 = vmatprep.mubr.f32.mxu0 0.0
        %1393 = vmatmul.mubr.f32.gmra.mxu0 %v1259
        %v1394 = vpop.f32.mrf.mxu0
        %v1395 = vadd.f32 %v1223, %v1394
        %v1396 = vpop.f32.mrf.mxu0
        %1397 = vmatprep.mubr.f32.mxu0 0.0
        %1398 = vmatmul.mubr.f32.gmra.mxu0 %v1262
        %v1399 = vpop.f32.mrf.mxu0
        %v1400 = vadd.f32 %v1223, %v1399
        %v1401 = vpop.f32.mrf.mxu0
        %1402 = vmatprep.mubr.f32.mxu0 0.0
        %1403 = vmatmul.mubr.f32.gmra.mxu0 %v1265
        %v1404 = vpop.f32.mrf.mxu0
        %v1405 = vadd.f32 %v1223, %v1404
        %v1406 = vpop.f32.mrf.mxu0
        %1407 = vmatprep.mubr.f32.mxu0 0.0
        %1408 = vmatmul.mubr.f32.gmra.mxu0 %v1268
        %v1409 = vpop.f32.mrf.mxu0
        %v1410 = vadd.f32 %v1223, %v1409
        %v1411 = vpop.f32.mrf.mxu0
        %1412 = vmatprep.mubr.f32.mxu0 0.0
        %1413 = vmatmul.mubr.f32.gmra.mxu0 %v1271
        %v1414 = vpop.f32.mrf.mxu0
        %v1415 = vadd.f32 %v1223, %v1414
        %v1416 = vpop.f32.mrf.mxu0
        %1417 = vdwg.mxu0
        %v1418 = vld [vmem:[%s6] sm:$0xff]
        %v1419 = vld [vmem:[%s6 + $0x8] sm:$0xff]
        %v1420 = vld [vmem:[%s6 + $0x10] sm:$0xff]
        %v1421 = vld [vmem:[%s6 + $0x18] sm:$0xff]
        %v1422 = vld [vmem:[%s6 + $0x20] sm:$0xff]
        %v1423 = vld [vmem:[%s6 + $0x28] sm:$0xff]
        %v1424 = vld [vmem:[%s6 + $0x30] sm:$0xff]
        %v1425 = vld [vmem:[%s6 + $0x38] sm:$0xff]
        %v1426 = vld [vmem:[%s7] sm:$0x1]
        %v1428 = vlaneseq
        %v1429 = vshrl.u32 %v1428, 7
        %v1430 = vsub.s32 0, %v1429
        %v1431 = vrot.slane %v1426, %v1430
        %1433 = vmatprep.subr.mxu0 0.0
        %1434 = vmatpush1.msra.mxu0 0.0
        %1435 = vmatprep.subr.mxu0 0.0
        %1436 = vmatpush1.msra.mxu0 0.0
        %1437 = vmatprep.subr.mxu0 0.0
        %1438 = vmatpush1.msra.mxu0 0.0
        %1439 = vmatprep.subr.mxu0 0.0
        %1440 = vmatpush1.msra.mxu0 0.0
        %1441 = vmatprep.subr.mxu0 0.0
        %1442 = vmatpush1.msra.mxu0 0.0
        %1443 = vmatprep.subr.mxu0 0.0
        %1444 = vmatpush1.msra.mxu0 0.0
        %1445 = vmatprep.subr.mxu0 0.0
        %1446 = vmatpush1.msra.mxu0 0.0
        %1447 = vmatprep.subr.mxu0 0.0
        %1448 = vmatpush1.msra.mxu0 0.0
        %1449 = vmatprep.subr.mxu0 0.0
        %1450 = vmatpush1.msra.mxu0 %v1425
        %1451 = vmatprep.subr.mxu0 0.0
        %1452 = vmatpush1.msra.mxu0 %v1424
        %1453 = vmatprep.subr.mxu0 0.0
        %1454 = vmatpush1.msra.mxu0 %v1423
        %1455 = vmatprep.subr.mxu0 0.0
        %1456 = vmatpush1.msra.mxu0 %v1422
        %1457 = vmatprep.subr.mxu0 0.0
        %1458 = vmatpush1.msra.mxu0 %v1421
        %1459 = vmatprep.subr.mxu0 0.0
        %1460 = vmatpush1.msra.mxu0 %v1420
        %1461 = vmatprep.subr.mxu0 0.0
        %1462 = vmatpush1.msra.mxu0 %v1419
        %1463 = vmatprep.subr.mxu0 0.0
        %1464 = vmatpush1.msra.mxu0 %v1418
        %1465 = vmatprep.subr.mxu0 0.0
        %1466 = vmatpush2.msra.mxu0 0.0
        %1467 = vmatprep.subr.mxu0 0.0
        %1468 = vmatpush2.msra.mxu0 0.0
        %1469 = vmatprep.subr.mxu0 0.0
        %1470 = vmatpush2.msra.mxu0 0.0
        %1471 = vmatprep.subr.mxu0 0.0
        %1472 = vmatpush2.msra.mxu0 0.0
        %1473 = vmatprep.subr.mxu0 0.0
        %1474 = vmatpush2.msra.mxu0 0.0
        %1475 = vmatprep.subr.mxu0 0.0
        %1476 = vmatpush2.msra.mxu0 0.0
        %1477 = vmatprep.subr.mxu0 0.0
        %1478 = vmatpush2.msra.mxu0 0.0
        %1479 = vmatprep.subr.mxu0 0.0
        %1480 = vmatpush2.msra.mxu0 0.0
        %1481 = vmatprep.subr.mxu0 0.0
        %1482 = vmatpush2.msra.mxu0 0.0
        %1483 = vmatprep.subr.mxu0 0.0
        %1484 = vmatpush2.msra.mxu0 0.0
        %1485 = vmatprep.subr.mxu0 0.0
        %1486 = vmatpush2.msra.mxu0 0.0
        %1487 = vmatprep.subr.mxu0 0.0
        %1488 = vmatpush2.msra.mxu0 0.0
        %1489 = vmatprep.subr.mxu0 0.0
        %1490 = vmatpush2.msra.mxu0 0.0
        %1491 = vmatprep.subr.mxu0 0.0
        %1492 = vmatpush2.msra.mxu0 0.0
        %1493 = vmatprep.subr.mxu0 0.0
        %1494 = vmatpush2.msra.mxu0 0.0
        %1495 = vmatprep.subr.mxu0 0.0
        %1496 = vmatpush2.msra.mxu0 0.0
        %1497 = vmatprep.mubr.f32.mxu0 0.0
        %1498 = vmatmul.mubr.f32.gmra.mxu0 %v1226
        %v1499 = vpop.f32.mrf.mxu0
        %v1500 = vadd.f32 %v1431, %v1499
        %v1501 = vpop.f32.mrf.mxu0
        %1502 = vmatprep.mubr.f32.mxu0 0.0
        %1503 = vmatmul.mubr.f32.gmra.mxu0 %v1229
        %v1504 = vpop.f32.mrf.mxu0
        %v1505 = vadd.f32 %v1431, %v1504
        %v1506 = vpop.f32.mrf.mxu0
        %1507 = vmatprep.mubr.f32.mxu0 0.0
        %1508 = vmatmul.mubr.f32.gmra.mxu0 %v1232
        %v1509 = vpop.f32.mrf.mxu0
        %v1510 = vadd.f32 %v1431, %v1509
        %v1511 = vpop.f32.mrf.mxu0
        %1512 = vmatprep.mubr.f32.mxu0 0.0
        %1513 = vmatmul.mubr.f32.gmra.mxu0 %v1235
        %v1514 = vpop.f32.mrf.mxu0
        %v1515 = vadd.f32 %v1431, %v1514
        %v1516 = vpop.f32.mrf.mxu0
        %1517 = vmatprep.mubr.f32.mxu0 0.0
        %1518 = vmatmul.mubr.f32.gmra.mxu0 %v1238
        %v1519 = vpop.f32.mrf.mxu0
        %v1520 = vadd.f32 %v1431, %v1519
        %v1521 = vpop.f32.mrf.mxu0
        %1522 = vmatprep.mubr.f32.mxu0 0.0
        %1523 = vmatmul.mubr.f32.gmra.mxu0 %v1241
        %v1524 = vpop.f32.mrf.mxu0
        %v1525 = vadd.f32 %v1431, %v1524
        %v1526 = vpop.f32.mrf.mxu0
        %1527 = vmatprep.mubr.f32.mxu0 0.0
        %1528 = vmatmul.mubr.f32.gmra.mxu0 %v1244
        %v1529 = vpop.f32.mrf.mxu0
        %v1530 = vadd.f32 %v1431, %v1529
        %v1531 = vpop.f32.mrf.mxu0
        %1532 = vmatprep.mubr.f32.mxu0 0.0
        %1533 = vmatmul.mubr.f32.gmra.mxu0 %v1247
        %v1534 = vpop.f32.mrf.mxu0
        %v1535 = vadd.f32 %v1431, %v1534
        %v1536 = vpop.f32.mrf.mxu0
        %1537 = vmatprep.mubr.f32.mxu0 0.0
        %1538 = vmatmul.mubr.f32.gmra.mxu0 %v1250
        %v1539 = vpop.f32.mrf.mxu0
        %v1540 = vadd.f32 %v1431, %v1539
        %v1541 = vpop.f32.mrf.mxu0
        %1542 = vmatprep.mubr.f32.mxu0 0.0
        %1543 = vmatmul.mubr.f32.gmra.mxu0 %v1253
        %v1544 = vpop.f32.mrf.mxu0
        %v1545 = vadd.f32 %v1431, %v1544
        %v1546 = vpop.f32.mrf.mxu0
        %1547 = vmatprep.mubr.f32.mxu0 0.0
        %1548 = vmatmul.mubr.f32.gmra.mxu0 %v1256
        %v1549 = vpop.f32.mrf.mxu0
        %v1550 = vadd.f32 %v1431, %v1549
        %v1551 = vpop.f32.mrf.mxu0
        %1552 = vmatprep.mubr.f32.mxu0 0.0
        %1553 = vmatmul.mubr.f32.gmra.mxu0 %v1259
        %v1554 = vpop.f32.mrf.mxu0
        %v1555 = vadd.f32 %v1431, %v1554
        %v1556 = vpop.f32.mrf.mxu0
        %1557 = vmatprep.mubr.f32.mxu0 0.0
        %1558 = vmatmul.mubr.f32.gmra.mxu0 %v1262
        %v1559 = vpop.f32.mrf.mxu0
        %v1560 = vadd.f32 %v1431, %v1559
        %v1561 = vpop.f32.mrf.mxu0
        %1562 = vmatprep.mubr.f32.mxu0 0.0
        %1563 = vmatmul.mubr.f32.gmra.mxu0 %v1265
        %v1564 = vpop.f32.mrf.mxu0
        %v1565 = vadd.f32 %v1431, %v1564
        %v1566 = vpop.f32.mrf.mxu0
        %1567 = vmatprep.mubr.f32.mxu0 0.0
        %1568 = vmatmul.mubr.f32.gmra.mxu0 %v1268
        %v1569 = vpop.f32.mrf.mxu0
        %v1570 = vadd.f32 %v1431, %v1569
        %v1571 = vpop.f32.mrf.mxu0
        %1572 = vmatprep.mubr.f32.mxu0 0.0
        %1573 = vmatmul.mubr.f32.gmra.mxu0 %v1271
        %v1574 = vpop.f32.mrf.mxu0
        %v1575 = vadd.f32 %v1431, %v1574
        %v1576 = vpop.f32.mrf.mxu0
        %1577 = vdwg.mxu0
        %v1578 = vld [vmem:[%s24] sm:$0x1]
        %v1579 = vld [vmem:[%s25] sm:$0x1]
        %vm1580 = vcmask 519168
        %v1581 = vsel %vm1580, %v953, 0.0
        %1582 = vadd.xlane.f32.xlu0 %v1581
        %v1583 = vpop.xlane.xlu0 %1582
        %v1584 = vmul.f32 %v1583, %v1005
        %v1585 = vsub.f32 %v953, %v1584
        %v1586 = vmul.f32 %v1585, %v1585
        %v1587 = vsel %vm1580, %v1586, 0.0
        %1588 = vadd.xlane.f32.xlu0 %v1587
        %v1589 = vpop.xlane.xlu0 %1588
        %v1590 = vmul.f32 %v1589, %v1005
        %v1591 = vadd.f32 %v1590, 1e-05
        %v1592 = vrsqrt.pop %v1591
        %v1593 = vmul.f32 %v1585, %v1592
        %v1595 = vlaneseq
        %v1596 = vshrl.u32 %v1595, 7
        %v1597 = vsub.s32 0, %v1596
        %v1598 = vrot.slane %v1578, %v1597
        %v1600 = vmul.f32 %v1593, %v1598
        %v1602 = vlaneseq
        %v1603 = vshrl.u32 %v1602, 7
        %v1604 = vsub.s32 0, %v1603
        %v1605 = vrot.slane %v1579, %v1604
        %v1607 = vadd.f32 %v1600, %v1605
        %v1608 = vld [vmem:[%s2] sm:$0xff]
        %v1609 = vld [vmem:[%s2 + $0x8] sm:$0xff]
        %v1610 = vld [vmem:[%s2 + $0x10] sm:$0xff]
        %v1611 = vld [vmem:[%s2 + $0x18] sm:$0xff]
        %v1612 = vld [vmem:[%s2 + $0x20] sm:$0xff]
        %v1613 = vld [vmem:[%s2 + $0x28] sm:$0xff]
        %v1614 = vld [vmem:[%s2 + $0x30] sm:$0xff]
        %v1615 = vld [vmem:[%s2 + $0x38] sm:$0xff]
        %v1616 = vld [vmem:[#allocation5] sm:$0x1]
        %v1618 = vlaneseq
        %v1619 = vshrl.u32 %v1618, 7
        %v1620 = vsub.s32 0, %v1619
        %v1621 = vrot.slane %v1616, %v1620
        %v1624 = vsel %vm956, %v1607, 0
        %1626 = vmatprep.subr.mxu0 0.0
        %1627 = vmatpush1.msra.mxu0 0.0
        %1628 = vmatprep.subr.mxu0 0.0
        %1629 = vmatpush1.msra.mxu0 0.0
        %1630 = vmatprep.subr.mxu0 0.0
        %1631 = vmatpush1.msra.mxu0 0.0
        %1632 = vmatprep.subr.mxu0 0.0
        %1633 = vmatpush1.msra.mxu0 0.0
        %1634 = vmatprep.subr.mxu0 0.0
        %1635 = vmatpush1.msra.mxu0 0.0
        %1636 = vmatprep.subr.mxu0 0.0
        %1637 = vmatpush1.msra.mxu0 0.0
        %1638 = vmatprep.subr.mxu0 0.0
        %1639 = vmatpush1.msra.mxu0 0.0
        %1640 = vmatprep.subr.mxu0 0.0
        %1641 = vmatpush1.msra.mxu0 0.0
        %1642 = vmatprep.subr.mxu0 0.0
        %1643 = vmatpush1.msra.mxu0 %v1615
        %1644 = vmatprep.subr.mxu0 0.0
        %1645 = vmatpush1.msra.mxu0 %v1614
        %1646 = vmatprep.subr.mxu0 0.0
        %1647 = vmatpush1.msra.mxu0 %v1613
        %1648 = vmatprep.subr.mxu0 0.0
        %1649 = vmatpush1.msra.mxu0 %v1612
        %1650 = vmatprep.subr.mxu0 0.0
        %1651 = vmatpush1.msra.mxu0 %v1611
        %1652 = vmatprep.subr.mxu0 0.0
        %1653 = vmatpush1.msra.mxu0 %v1610
        %1654 = vmatprep.subr.mxu0 0.0
        %1655 = vmatpush1.msra.mxu0 %v1609
        %1656 = vmatprep.subr.mxu0 0.0
        %1657 = vmatpush1.msra.mxu0 %v1608
        %1658 = vmatprep.subr.mxu0 0.0
        %1659 = vmatpush2.msra.mxu0 0.0
        %1660 = vmatprep.subr.mxu0 0.0
        %1661 = vmatpush2.msra.mxu0 0.0
        %1662 = vmatprep.subr.mxu0 0.0
        %1663 = vmatpush2.msra.mxu0 0.0
        %1664 = vmatprep.subr.mxu0 0.0
        %1665 = vmatpush2.msra.mxu0 0.0
        %1666 = vmatprep.subr.mxu0 0.0
        %1667 = vmatpush2.msra.mxu0 0.0
        %1668 = vmatprep.subr.mxu0 0.0
        %1669 = vmatpush2.msra.mxu0 0.0
        %1670 = vmatprep.subr.mxu0 0.0
        %1671 = vmatpush2.msra.mxu0 0.0
        %1672 = vmatprep.subr.mxu0 0.0
        %1673 = vmatpush2.msra.mxu0 0.0
        %1674 = vmatprep.subr.mxu0 0.0
        %1675 = vmatpush2.msra.mxu0 0.0
        %1676 = vmatprep.subr.mxu0 0.0
        %1677 = vmatpush2.msra.mxu0 0.0
        %1678 = vmatprep.subr.mxu0 0.0
        %1679 = vmatpush2.msra.mxu0 0.0
        %1680 = vmatprep.subr.mxu0 0.0
        %1681 = vmatpush2.msra.mxu0 0.0
        %1682 = vmatprep.subr.mxu0 0.0
        %1683 = vmatpush2.msra.mxu0 0.0
        %1684 = vmatprep.subr.mxu0 0.0
        %1685 = vmatpush2.msra.mxu0 0.0
        %1686 = vmatprep.subr.mxu0 0.0
        %1687 = vmatpush2.msra.mxu0 0.0
        %1688 = vmatprep.subr.mxu0 0.0
        %1689 = vmatpush2.msra.mxu0 0.0
        %1690 = vmatprep.mubr.f32.mxu0 0.0
        %1691 = vmatmul.mubr.f32.gmra.mxu0 %v1624
        %v1692 = vpop.f32.mrf.mxu0
        %v1693 = vadd.f32 %v1621, %v1692
        %v1694 = vpop.f32.mrf.mxu0
        %1695 = vdwg.mxu0
        %v1697 = vsel %vm956, %v1693, 0
        %v1700 = vsel %vm956, %v1340, 0
        %v1703 = vsel %vm956, %v1345, 0
        %v1706 = vsel %vm956, %v1350, 0
        %v1709 = vsel %vm956, %v1355, 0
        %v1712 = vsel %vm956, %v1360, 0
        %v1715 = vsel %vm956, %v1365, 0
        %v1718 = vsel %vm956, %v1370, 0
        %v1721 = vsel %vm956, %v1375, 0
        %v1724 = vsel %vm956, %v1380, 0
        %v1727 = vsel %vm956, %v1385, 0
        %v1730 = vsel %vm956, %v1390, 0
        %v1733 = vsel %vm956, %v1395, 0
        %v1736 = vsel %vm956, %v1400, 0
        %v1739 = vsel %vm956, %v1405, 0
        %v1742 = vsel %vm956, %v1410, 0
        %v1745 = vsel %vm956, %v1415, 0
        %1747 = vmatprep.subr.mxu0 0.0
        %1748 = vmatpush1.xpose.msra.mxu0 %v1745
        %1749 = vmatprep.subr.mxu0 0.0
        %1750 = vmatpush1.xpose.msra.mxu0 %v1742
        %1751 = vmatprep.subr.mxu0 0.0
        %1752 = vmatpush1.xpose.msra.mxu0 %v1739
        %1753 = vmatprep.subr.mxu0 0.0
        %1754 = vmatpush1.xpose.msra.mxu0 %v1736
        %1755 = vmatprep.subr.mxu0 0.0
        %1756 = vmatpush1.xpose.msra.mxu0 %v1733
        %1757 = vmatprep.subr.mxu0 0.0
        %1758 = vmatpush1.xpose.msra.mxu0 %v1730
        %1759 = vmatprep.subr.mxu0 0.0
        %1760 = vmatpush1.xpose.msra.mxu0 %v1727
        %1761 = vmatprep.subr.mxu0 0.0
        %1762 = vmatpush1.xpose.msra.mxu0 %v1724
        %1763 = vmatprep.subr.mxu0 0.0
        %1764 = vmatpush1.xpose.msra.mxu0 %v1721
        %1765 = vmatprep.subr.mxu0 0.0
        %1766 = vmatpush1.xpose.msra.mxu0 %v1718
        %1767 = vmatprep.subr.mxu0 0.0
        %1768 = vmatpush1.xpose.msra.mxu0 %v1715
        %1769 = vmatprep.subr.mxu0 0.0
        %1770 = vmatpush1.xpose.msra.mxu0 %v1712
        %1771 = vmatprep.subr.mxu0 0.0
        %1772 = vmatpush1.xpose.msra.mxu0 %v1709
        %1773 = vmatprep.subr.mxu0 0.0
        %1774 = vmatpush1.xpose.msra.mxu0 %v1706
        %1775 = vmatprep.subr.mxu0 0.0
        %1776 = vmatpush1.xpose.msra.mxu0 %v1703
        %1777 = vmatprep.subr.mxu0 0.0
        %1778 = vmatpush1.xpose.msra.mxu0 %v1700
        %1779 = vmatprep.subr.mxu0 0.0
        %1780 = vmatpush2.xpose.msra.mxu0 0.0
        %1781 = vmatprep.subr.mxu0 0.0
        %1782 = vmatpush2.xpose.msra.mxu0 0.0
        %1783 = vmatprep.subr.mxu0 0.0
        %1784 = vmatpush2.xpose.msra.mxu0 0.0
        %1785 = vmatprep.subr.mxu0 0.0
        %1786 = vmatpush2.xpose.msra.mxu0 0.0
        %1787 = vmatprep.subr.mxu0 0.0
        %1788 = vmatpush2.xpose.msra.mxu0 0.0
        %1789 = vmatprep.subr.mxu0 0.0
        %1790 = vmatpush2.xpose.msra.mxu0 0.0
        %1791 = vmatprep.subr.mxu0 0.0
        %1792 = vmatpush2.xpose.msra.mxu0 0.0
        %1793 = vmatprep.subr.mxu0 0.0
        %1794 = vmatpush2.xpose.msra.mxu0 0.0
        %1795 = vmatprep.subr.mxu0 0.0
        %1796 = vmatpush2.xpose.msra.mxu0 0.0
        %1797 = vmatprep.subr.mxu0 0.0
        %1798 = vmatpush2.xpose.msra.mxu0 0.0
        %1799 = vmatprep.subr.mxu0 0.0
        %1800 = vmatpush2.xpose.msra.mxu0 0.0
        %1801 = vmatprep.subr.mxu0 0.0
        %1802 = vmatpush2.xpose.msra.mxu0 0.0
        %1803 = vmatprep.subr.mxu0 0.0
        %1804 = vmatpush2.xpose.msra.mxu0 0.0
        %1805 = vmatprep.subr.mxu0 0.0
        %1806 = vmatpush2.xpose.msra.mxu0 0.0
        %1807 = vmatprep.subr.mxu0 0.0
        %1808 = vmatpush2.xpose.msra.mxu0 0.0
        %1809 = vmatprep.subr.mxu0 0.0
        %1810 = vmatpush2.xpose.msra.mxu0 0.0
        %1811 = vmatprep.mubr.f32.mxu0 0.0
        %1812 = vmatmul.mubr.f32.gmra.mxu0 %v1697
        %v1813 = vpop.f32.mrf.mxu0
        %v1814 = vadd.f32 0.0, %v1813
        %v1815 = vpop.f32.mrf.mxu0
        %1816 = vdwg.mxu0
        %v1817 = vmul.f32 %v1814, 0.125
        %vm1818 = vcmask 1043456
        %v1819 = vsel %vm1818, %v1817, -inf
        %v1820 = vrot.slane %v1819, 4
        %v1821 = vmax.f32 %v1819, %v1820
        %v1822 = vrot.slane %v1821, 2
        %v1823 = vmax.f32 %v1821, %v1822
        %v1824 = vrot.slane %v1823, 1
        %v1825 = vmax.f32 %v1823, %v1824
        %v1826 = vsub.f32 %v1817, %v1825
        %v1827 = vmul.f32 %v1826, 1.442695
        %v1828 = vpow.pop %v1827
        %v1829 = vsel %vm1818, %v1828, 0.0
        %v1830 = vrot.slane %v1829, 4
        %v1831 = vadd.f32 %v1829, %v1830
        %v1832 = vrot.slane %v1831, 2
        %v1833 = vadd.f32 %v1831, %v1832
        %v1834 = vrot.slane %v1833, 1
        %v1835 = vadd.f32 %v1833, %v1834
        %v1836 = vrcp.pop %v1835
        %v1837 = vmul.f32 %v1828, %v1836
        %v1838 = vadd.f32 %v1837, 1e-08
        %v1839 = vsel %vm1818, %v1838, 0.0
        %1840 = vadd.xlane.f32.xlu0 %v1839
        %v1841 = vpop.xlane.xlu0 %1840
        %v1842 = vrcp.pop %v1841
        %v1843 = vmul.f32 %v1838, %v1842
        %1844 = vmatprep.subr.mxu0 0.0
        %1845 = vmatpush1.msra.mxu0 %v1575
        %1846 = vmatprep.subr.mxu0 0.0
        %1847 = vmatpush1.msra.mxu0 %v1570
        %1848 = vmatprep.subr.mxu0 0.0
        %1849 = vmatpush1.msra.mxu0 %v1565
        %1850 = vmatprep.subr.mxu0 0.0
        %1851 = vmatpush1.msra.mxu0 %v1560
        %1852 = vmatprep.subr.mxu0 0.0
        %1853 = vmatpush1.msra.mxu0 %v1555
        %1854 = vmatprep.subr.mxu0 0.0
        %1855 = vmatpush1.msra.mxu0 %v1550
        %1856 = vmatprep.subr.mxu0 0.0
        %1857 = vmatpush1.msra.mxu0 %v1545
        %1858 = vmatprep.subr.mxu0 0.0
        %1859 = vmatpush1.msra.mxu0 %v1540
        %1860 = vmatprep.subr.mxu0 0.0
        %1861 = vmatpush1.msra.mxu0 %v1535
        %1862 = vmatprep.subr.mxu0 0.0
        %1863 = vmatpush1.msra.mxu0 %v1530
        %1864 = vmatprep.subr.mxu0 0.0
        %1865 = vmatpush1.msra.mxu0 %v1525
        %1866 = vmatprep.subr.mxu0 0.0
        %1867 = vmatpush1.msra.mxu0 %v1520
        %1868 = vmatprep.subr.mxu0 0.0
        %1869 = vmatpush1.msra.mxu0 %v1515
        %1870 = vmatprep.subr.mxu0 0.0
        %1871 = vmatpush1.msra.mxu0 %v1510
        %1872 = vmatprep.subr.mxu0 0.0
        %1873 = vmatpush1.msra.mxu0 %v1505
        %1874 = vmatprep.subr.mxu0 0.0
        %1875 = vmatpush1.msra.mxu0 %v1500
        %1876 = vmatprep.subr.mxu0 0.0
        %1877 = vmatpush2.msra.mxu0 0.0
        %1878 = vmatprep.subr.mxu0 0.0
        %1879 = vmatpush2.msra.mxu0 0.0
        %1880 = vmatprep.subr.mxu0 0.0
        %1881 = vmatpush2.msra.mxu0 0.0
        %1882 = vmatprep.subr.mxu0 0.0
        %1883 = vmatpush2.msra.mxu0 0.0
        %1884 = vmatprep.subr.mxu0 0.0
        %1885 = vmatpush2.msra.mxu0 0.0
        %1886 = vmatprep.subr.mxu0 0.0
        %1887 = vmatpush2.msra.mxu0 0.0
        %1888 = vmatprep.subr.mxu0 0.0
        %1889 = vmatpush2.msra.mxu0 0.0
        %1890 = vmatprep.subr.mxu0 0.0
        %1891 = vmatpush2.msra.mxu0 0.0
        %1892 = vmatprep.subr.mxu0 0.0
        %1893 = vmatpush2.msra.mxu0 0.0
        %1894 = vmatprep.subr.mxu0 0.0
        %1895 = vmatpush2.msra.mxu0 0.0
        %1896 = vmatprep.subr.mxu0 0.0
        %1897 = vmatpush2.msra.mxu0 0.0
        %1898 = vmatprep.subr.mxu0 0.0
        %1899 = vmatpush2.msra.mxu0 0.0
        %1900 = vmatprep.subr.mxu0 0.0
        %1901 = vmatpush2.msra.mxu0 0.0
        %1902 = vmatprep.subr.mxu0 0.0
        %1903 = vmatpush2.msra.mxu0 0.0
        %1904 = vmatprep.subr.mxu0 0.0
        %1905 = vmatpush2.msra.mxu0 0.0
        %1906 = vmatprep.subr.mxu0 0.0
        %1907 = vmatpush2.msra.mxu0 0.0
        %1908 = vmatprep.mubr.f32.mxu0 0.0
        %1909 = vmatmul.mubr.f32.gmra.mxu0 %v1843
        %v1910 = vpop.f32.mrf.mxu0
        %v1911 = vadd.f32 0.0, %v1910
        %v1912 = vpop.f32.mrf.mxu0
        %1913 = vdwg.mxu0
        %v1914 = vld [vmem:[%s8] sm:$0xff]
        %v1915 = vld [vmem:[%s8 + $0x8] sm:$0xff]
        %v1916 = vld [vmem:[%s8 + $0x10] sm:$0xff]
        %v1917 = vld [vmem:[%s8 + $0x18] sm:$0xff]
        %v1918 = vld [vmem:[%s8 + $0x20] sm:$0xff]
        %v1919 = vld [vmem:[%s8 + $0x28] sm:$0xff]
        %v1920 = vld [vmem:[%s8 + $0x30] sm:$0xff]
        %v1921 = vld [vmem:[%s8 + $0x38] sm:$0xff]
        %v1922 = vld [vmem:[%s11] sm:$0xff]
        %v1923 = vld [vmem:[%s11 + $0x8] sm:$0xff]
        %v1924 = vld [vmem:[%s11 + $0x10] sm:$0xff]
        %v1925 = vld [vmem:[%s11 + $0x18] sm:$0xff]
        %v1926 = vld [vmem:[%s11 + $0x20] sm:$0xff]
        %v1927 = vld [vmem:[%s11 + $0x28] sm:$0xff]
        %v1928 = vld [vmem:[%s11 + $0x30] sm:$0xff]
        %v1929 = vld [vmem:[%s11 + $0x38] sm:$0xff]
        %v1931 = vsel %vm956, %v953, 0
        %1933 = vmatprep.subr.mxu0 0.0
        %1934 = vmatpush1.msra.mxu0 0.0
        %1935 = vmatprep.subr.mxu0 0.0
        %1936 = vmatpush1.msra.mxu0 0.0
        %1937 = vmatprep.subr.mxu0 0.0
        %1938 = vmatpush1.msra.mxu0 0.0
        %1939 = vmatprep.subr.mxu0 0.0
        %1940 = vmatpush1.msra.mxu0 0.0
        %1941 = vmatprep.subr.mxu0 0.0
        %1942 = vmatpush1.msra.mxu0 0.0
        %1943 = vmatprep.subr.mxu0 0.0
        %1944 = vmatpush1.msra.mxu0 0.0
        %1945 = vmatprep.subr.mxu0 0.0
        %1946 = vmatpush1.msra.mxu0 0.0
        %1947 = vmatprep.subr.mxu0 0.0
        %1948 = vmatpush1.msra.mxu0 0.0
        %1949 = vmatprep.subr.mxu0 0.0
        %1950 = vmatpush1.msra.mxu0 %v1929
        %1951 = vmatprep.subr.mxu0 0.0
        %1952 = vmatpush1.msra.mxu0 %v1928
        %1953 = vmatprep.subr.mxu0 0.0
        %1954 = vmatpush1.msra.mxu0 %v1927
        %1955 = vmatprep.subr.mxu0 0.0
        %1956 = vmatpush1.msra.mxu0 %v1926
        %1957 = vmatprep.subr.mxu0 0.0
        %1958 = vmatpush1.msra.mxu0 %v1925
        %1959 = vmatprep.subr.mxu0 0.0
        %1960 = vmatpush1.msra.mxu0 %v1924
        %1961 = vmatprep.subr.mxu0 0.0
        %1962 = vmatpush1.msra.mxu0 %v1923
        %1963 = vmatprep.subr.mxu0 0.0
        %1964 = vmatpush1.msra.mxu0 %v1922
        %1965 = vmatprep.subr.mxu0 0.0
        %1966 = vmatpush2.msra.mxu0 0.0
        %1967 = vmatprep.subr.mxu0 0.0
        %1968 = vmatpush2.msra.mxu0 0.0
        %1969 = vmatprep.subr.mxu0 0.0
        %1970 = vmatpush2.msra.mxu0 0.0
        %1971 = vmatprep.subr.mxu0 0.0
        %1972 = vmatpush2.msra.mxu0 0.0
        %1973 = vmatprep.subr.mxu0 0.0
        %1974 = vmatpush2.msra.mxu0 0.0
        %1975 = vmatprep.subr.mxu0 0.0
        %1976 = vmatpush2.msra.mxu0 0.0
        %1977 = vmatprep.subr.mxu0 0.0
        %1978 = vmatpush2.msra.mxu0 0.0
        %1979 = vmatprep.subr.mxu0 0.0
        %1980 = vmatpush2.msra.mxu0 0.0
        %1981 = vmatprep.subr.mxu0 0.0
        %1982 = vmatpush2.msra.mxu0 0.0
        %1983 = vmatprep.subr.mxu0 0.0
        %1984 = vmatpush2.msra.mxu0 0.0
        %1985 = vmatprep.subr.mxu0 0.0
        %1986 = vmatpush2.msra.mxu0 0.0
        %1987 = vmatprep.subr.mxu0 0.0
        %1988 = vmatpush2.msra.mxu0 0.0
        %1989 = vmatprep.subr.mxu0 0.0
        %1990 = vmatpush2.msra.mxu0 0.0
        %1991 = vmatprep.subr.mxu0 0.0
        %1992 = vmatpush2.msra.mxu0 0.0
        %1993 = vmatprep.subr.mxu0 0.0
        %1994 = vmatpush2.msra.mxu0 0.0
        %1995 = vmatprep.subr.mxu0 0.0
        %1996 = vmatpush2.msra.mxu0 0.0
        %1997 = vmatprep.mubr.f32.mxu0 0.0
        %1998 = vmatmul.mubr.f32.gmra.mxu0 %v1931
        %v1999 = vpop.f32.mrf.mxu0
        %v2000 = vadd.f32 0.0, %v1999
        %v2001 = vpop.f32.mrf.mxu0
        %2002 = vdwg.mxu0
        %v2004 = vsel %vm956, %v1911, 0
        %2006 = vmatprep.subr.mxu0 0.0
        %2007 = vmatpush1.msra.mxu0 0.0
        %2008 = vmatprep.subr.mxu0 0.0
        %2009 = vmatpush1.msra.mxu0 0.0
        %2010 = vmatprep.subr.mxu0 0.0
        %2011 = vmatpush1.msra.mxu0 0.0
        %2012 = vmatprep.subr.mxu0 0.0
        %2013 = vmatpush1.msra.mxu0 0.0
        %2014 = vmatprep.subr.mxu0 0.0
        %2015 = vmatpush1.msra.mxu0 0.0
        %2016 = vmatprep.subr.mxu0 0.0
        %2017 = vmatpush1.msra.mxu0 0.0
        %2018 = vmatprep.subr.mxu0 0.0
        %2019 = vmatpush1.msra.mxu0 0.0
        %2020 = vmatprep.subr.mxu0 0.0
        %2021 = vmatpush1.msra.mxu0 0.0
        %2022 = vmatprep.subr.mxu0 0.0
        %2023 = vmatpush1.msra.mxu0 %v1921
        %2024 = vmatprep.subr.mxu0 0.0
        %2025 = vmatpush1.msra.mxu0 %v1920
        %2026 = vmatprep.subr.mxu0 0.0
        %2027 = vmatpush1.msra.mxu0 %v1919
        %2028 = vmatprep.subr.mxu0 0.0
        %2029 = vmatpush1.msra.mxu0 %v1918
        %2030 = vmatprep.subr.mxu0 0.0
        %2031 = vmatpush1.msra.mxu0 %v1917
        %2032 = vmatprep.subr.mxu0 0.0
        %2033 = vmatpush1.msra.mxu0 %v1916
        %2034 = vmatprep.subr.mxu0 0.0
        %2035 = vmatpush1.msra.mxu0 %v1915
        %2036 = vmatprep.subr.mxu0 0.0
        %2037 = vmatpush1.msra.mxu0 %v1914
        %2038 = vmatprep.subr.mxu0 0.0
        %2039 = vmatpush2.msra.mxu0 0.0
        %2040 = vmatprep.subr.mxu0 0.0
        %2041 = vmatpush2.msra.mxu0 0.0
        %2042 = vmatprep.subr.mxu0 0.0
        %2043 = vmatpush2.msra.mxu0 0.0
        %2044 = vmatprep.subr.mxu0 0.0
        %2045 = vmatpush2.msra.mxu0 0.0
        %2046 = vmatprep.subr.mxu0 0.0
        %2047 = vmatpush2.msra.mxu0 0.0
        %2048 = vmatprep.subr.mxu0 0.0
        %2049 = vmatpush2.msra.mxu0 0.0
        %2050 = vmatprep.subr.mxu0 0.0
        %2051 = vmatpush2.msra.mxu0 0.0
        %2052 = vmatprep.subr.mxu0 0.0
        %2053 = vmatpush2.msra.mxu0 0.0
        %2054 = vmatprep.subr.mxu0 0.0
        %2055 = vmatpush2.msra.mxu0 0.0
        %2056 = vmatprep.subr.mxu0 0.0
        %2057 = vmatpush2.msra.mxu0 0.0
        %2058 = vmatprep.subr.mxu0 0.0
        %2059 = vmatpush2.msra.mxu0 0.0
        %2060 = vmatprep.subr.mxu0 0.0
        %2061 = vmatpush2.msra.mxu0 0.0
        %2062 = vmatprep.subr.mxu0 0.0
        %2063 = vmatpush2.msra.mxu0 0.0
        %2064 = vmatprep.subr.mxu0 0.0
        %2065 = vmatpush2.msra.mxu0 0.0
        %2066 = vmatprep.subr.mxu0 0.0
        %2067 = vmatpush2.msra.mxu0 0.0
        %2068 = vmatprep.subr.mxu0 0.0
        %2069 = vmatpush2.msra.mxu0 0.0
        %2070 = vmatprep.mubr.f32.mxu0 0.0
        %2071 = vmatmul.mubr.f32.gmra.mxu0 %v2004
        %v2072 = vpop.f32.mrf.mxu0
        %v2073 = vadd.f32 %v2000, %v2072
        %v2074 = vpop.f32.mrf.mxu0
        %2075 = vdwg.mxu0
        %v2076 = vld [vmem:[%s14] sm:$0x1]
        %v2078 = vlaneseq
        %v2079 = vshrl.u32 %v2078, 7
        %v2080 = vsub.s32 0, %v2079
        %v2081 = vrot.slane %v2076, %v2080
        %v2083 = vadd.f32 %v2073, %v2081
        %v2084 = vxor.u32 %v2083, 2147483648
        %v2085 = vmul.f32 %v2084, 1.442695
        %v2086 = vpow.pop %v2085
        %v2087 = vadd.f32 %v2086, 1.0
        %v2088 = vrcp.pop %v2087
        %v2089 = vmul.f32 1.0, %v2088
        %v2090 = vld [vmem:[%s9] sm:$0xff]
        %v2091 = vld [vmem:[%s9 + $0x8] sm:$0xff]
        %v2092 = vld [vmem:[%s9 + $0x10] sm:$0xff]
        %v2093 = vld [vmem:[%s9 + $0x18] sm:$0xff]
        %v2094 = vld [vmem:[%s9 + $0x20] sm:$0xff]
        %v2095 = vld [vmem:[%s9 + $0x28] sm:$0xff]
        %v2096 = vld [vmem:[%s9 + $0x30] sm:$0xff]
        %v2097 = vld [vmem:[%s9 + $0x38] sm:$0xff]
        %v2098 = vld [vmem:[#allocation7] sm:$0xff]
        %v2099 = vld [vmem:[#allocation7 + $0x8] sm:$0xff]
        %v2100 = vld [vmem:[#allocation7 + $0x10] sm:$0xff]
        %v2101 = vld [vmem:[#allocation7 + $0x18] sm:$0xff]
        %v2102 = vld [vmem:[#allocation7 + $0x20] sm:$0xff]
        %v2103 = vld [vmem:[#allocation7 + $0x28] sm:$0xff]
        %v2104 = vld [vmem:[#allocation7 + $0x30] sm:$0xff]
        %v2105 = vld [vmem:[#allocation7 + $0x38] sm:$0xff]
        %2106 = vmatprep.subr.mxu0 0.0
        %2107 = vmatpush1.msra.mxu0 0.0
        %2108 = vmatprep.subr.mxu0 0.0
        %2109 = vmatpush1.msra.mxu0 0.0
        %2110 = vmatprep.subr.mxu0 0.0
        %2111 = vmatpush1.msra.mxu0 0.0
        %2112 = vmatprep.subr.mxu0 0.0
        %2113 = vmatpush1.msra.mxu0 0.0
        %2114 = vmatprep.subr.mxu0 0.0
        %2115 = vmatpush1.msra.mxu0 0.0
        %2116 = vmatprep.subr.mxu0 0.0
        %2117 = vmatpush1.msra.mxu0 0.0
        %2118 = vmatprep.subr.mxu0 0.0
        %2119 = vmatpush1.msra.mxu0 0.0
        %2120 = vmatprep.subr.mxu0 0.0
        %2121 = vmatpush1.msra.mxu0 0.0
        %2122 = vmatprep.subr.mxu0 0.0
        %2123 = vmatpush1.msra.mxu0 %v2105
        %2124 = vmatprep.subr.mxu0 0.0
        %2125 = vmatpush1.msra.mxu0 %v2104
        %2126 = vmatprep.subr.mxu0 0.0
        %2127 = vmatpush1.msra.mxu0 %v2103
        %2128 = vmatprep.subr.mxu0 0.0
        %2129 = vmatpush1.msra.mxu0 %v2102
        %2130 = vmatprep.subr.mxu0 0.0
        %2131 = vmatpush1.msra.mxu0 %v2101
        %2132 = vmatprep.subr.mxu0 0.0
        %2133 = vmatpush1.msra.mxu0 %v2100
        %2134 = vmatprep.subr.mxu0 0.0
        %2135 = vmatpush1.msra.mxu0 %v2099
        %2136 = vmatprep.subr.mxu0 0.0
        %2137 = vmatpush1.msra.mxu0 %v2098
        %2138 = vmatprep.subr.mxu0 0.0
        %2139 = vmatpush2.msra.mxu0 0.0
        %2140 = vmatprep.subr.mxu0 0.0
        %2141 = vmatpush2.msra.mxu0 0.0
        %2142 = vmatprep.subr.mxu0 0.0
        %2143 = vmatpush2.msra.mxu0 0.0
        %2144 = vmatprep.subr.mxu0 0.0
        %2145 = vmatpush2.msra.mxu0 0.0
        %2146 = vmatprep.subr.mxu0 0.0
        %2147 = vmatpush2.msra.mxu0 0.0
        %2148 = vmatprep.subr.mxu0 0.0
        %2149 = vmatpush2.msra.mxu0 0.0
        %2150 = vmatprep.subr.mxu0 0.0
        %2151 = vmatpush2.msra.mxu0 0.0
        %2152 = vmatprep.subr.mxu0 0.0
        %2153 = vmatpush2.msra.mxu0 0.0
        %2154 = vmatprep.subr.mxu0 0.0
        %2155 = vmatpush2.msra.mxu0 0.0
        %2156 = vmatprep.subr.mxu0 0.0
        %2157 = vmatpush2.msra.mxu0 0.0
        %2158 = vmatprep.subr.mxu0 0.0
        %2159 = vmatpush2.msra.mxu0 0.0
        %2160 = vmatprep.subr.mxu0 0.0
        %2161 = vmatpush2.msra.mxu0 0.0
        %2162 = vmatprep.subr.mxu0 0.0
        %2163 = vmatpush2.msra.mxu0 0.0
        %2164 = vmatprep.subr.mxu0 0.0
        %2165 = vmatpush2.msra.mxu0 0.0
        %2166 = vmatprep.subr.mxu0 0.0
        %2167 = vmatpush2.msra.mxu0 0.0
        %2168 = vmatprep.subr.mxu0 0.0
        %2169 = vmatpush2.msra.mxu0 0.0
        %2170 = vmatprep.mubr.f32.mxu0 0.0
        %2171 = vmatmul.mubr.f32.gmra.mxu0 %v1931
        %v2172 = vpop.f32.mrf.mxu0
        %v2173 = vadd.f32 0.0, %v2172
        %v2174 = vpop.f32.mrf.mxu0
        %2175 = vdwg.mxu0
        %2176 = vmatprep.subr.mxu0 0.0
        %2177 = vmatpush1.msra.mxu0 0.0
        %2178 = vmatprep.subr.mxu0 0.0
        %2179 = vmatpush1.msra.mxu0 0.0
        %2180 = vmatprep.subr.mxu0 0.0
        %2181 = vmatpush1.msra.mxu0 0.0
        %2182 = vmatprep.subr.mxu0 0.0
        %2183 = vmatpush1.msra.mxu0 0.0
        %2184 = vmatprep.subr.mxu0 0.0
        %2185 = vmatpush1.msra.mxu0 0.0
        %2186 = vmatprep.subr.mxu0 0.0
        %2187 = vmatpush1.msra.mxu0 0.0
        %2188 = vmatprep.subr.mxu0 0.0
        %2189 = vmatpush1.msra.mxu0 0.0
        %2190 = vmatprep.subr.mxu0 0.0
        %2191 = vmatpush1.msra.mxu0 0.0
        %2192 = vmatprep.subr.mxu0 0.0
        %2193 = vmatpush1.msra.mxu0 %v2097
        %2194 = vmatprep.subr.mxu0 0.0
        %2195 = vmatpush1.msra.mxu0 %v2096
        %2196 = vmatprep.subr.mxu0 0.0
        %2197 = vmatpush1.msra.mxu0 %v2095
        %2198 = vmatprep.subr.mxu0 0.0
        %2199 = vmatpush1.msra.mxu0 %v2094
        %2200 = vmatprep.subr.mxu0 0.0
        %2201 = vmatpush1.msra.mxu0 %v2093
        %2202 = vmatprep.subr.mxu0 0.0
        %2203 = vmatpush1.msra.mxu0 %v2092
        %2204 = vmatprep.subr.mxu0 0.0
        %2205 = vmatpush1.msra.mxu0 %v2091
        %2206 = vmatprep.subr.mxu0 0.0
        %2207 = vmatpush1.msra.mxu0 %v2090
        %2208 = vmatprep.subr.mxu0 0.0
        %2209 = vmatpush2.msra.mxu0 0.0
        %2210 = vmatprep.subr.mxu0 0.0
        %2211 = vmatpush2.msra.mxu0 0.0
        %2212 = vmatprep.subr.mxu0 0.0
        %2213 = vmatpush2.msra.mxu0 0.0
        %2214 = vmatprep.subr.mxu0 0.0
        %2215 = vmatpush2.msra.mxu0 0.0
        %2216 = vmatprep.subr.mxu0 0.0
        %2217 = vmatpush2.msra.mxu0 0.0
        %2218 = vmatprep.subr.mxu0 0.0
        %2219 = vmatpush2.msra.mxu0 0.0
        %2220 = vmatprep.subr.mxu0 0.0
        %2221 = vmatpush2.msra.mxu0 0.0
        %2222 = vmatprep.subr.mxu0 0.0
        %2223 = vmatpush2.msra.mxu0 0.0
        %2224 = vmatprep.subr.mxu0 0.0
        %2225 = vmatpush2.msra.mxu0 0.0
        %2226 = vmatprep.subr.mxu0 0.0
        %2227 = vmatpush2.msra.mxu0 0.0
        %2228 = vmatprep.subr.mxu0 0.0
        %2229 = vmatpush2.msra.mxu0 0.0
        %2230 = vmatprep.subr.mxu0 0.0
        %2231 = vmatpush2.msra.mxu0 0.0
        %2232 = vmatprep.subr.mxu0 0.0
        %2233 = vmatpush2.msra.mxu0 0.0
        %2234 = vmatprep.subr.mxu0 0.0
        %2235 = vmatpush2.msra.mxu0 0.0
        %2236 = vmatprep.subr.mxu0 0.0
        %2237 = vmatpush2.msra.mxu0 0.0
        %2238 = vmatprep.subr.mxu0 0.0
        %2239 = vmatpush2.msra.mxu0 0.0
        %2240 = vmatprep.mubr.f32.mxu0 0.0
        %2241 = vmatmul.mubr.f32.gmra.mxu0 %v2004
        %v2242 = vpop.f32.mrf.mxu0
        %v2243 = vadd.f32 %v2173, %v2242
        %v2244 = vpop.f32.mrf.mxu0
        %2245 = vdwg.mxu0
        %v2246 = vld [vmem:[%s15] sm:$0x1]
        %v2248 = vlaneseq
        %v2249 = vshrl.u32 %v2248, 7
        %v2250 = vsub.s32 0, %v2249
        %v2251 = vrot.slane %v2246, %v2250
        %v2253 = vadd.f32 %v2243, %v2251
        %v2254 = vxor.u32 %v2253, 2147483648
        %v2255 = vmul.f32 %v2254, 1.442695
        %v2256 = vpow.pop %v2255
        %v2257 = vadd.f32 %v2256, 1.0
        %v2258 = vrcp.pop %v2257
        %v2259 = vmul.f32 1.0, %v2258
        %v2260 = vld [vmem:[%s10] sm:$0xff]
        %v2261 = vld [vmem:[%s10 + $0x8] sm:$0xff]
        %v2262 = vld [vmem:[%s10 + $0x10] sm:$0xff]
        %v2263 = vld [vmem:[%s10 + $0x18] sm:$0xff]
        %v2264 = vld [vmem:[%s10 + $0x20] sm:$0xff]
        %v2265 = vld [vmem:[%s10 + $0x28] sm:$0xff]
        %v2266 = vld [vmem:[%s10 + $0x30] sm:$0xff]
        %v2267 = vld [vmem:[%s10 + $0x38] sm:$0xff]
        %v2268 = vld [vmem:[%s16] sm:$0x1]
        %v2270 = vlaneseq
        %v2271 = vshrl.u32 %v2270, 7
        %v2272 = vsub.s32 0, %v2271
        %v2273 = vrot.slane %v2268, %v2272
        %2275 = vmatprep.subr.mxu0 0.0
        %2276 = vmatpush1.msra.mxu0 0.0
        %2277 = vmatprep.subr.mxu0 0.0
        %2278 = vmatpush1.msra.mxu0 0.0
        %2279 = vmatprep.subr.mxu0 0.0
        %2280 = vmatpush1.msra.mxu0 0.0
        %2281 = vmatprep.subr.mxu0 0.0
        %2282 = vmatpush1.msra.mxu0 0.0
        %2283 = vmatprep.subr.mxu0 0.0
        %2284 = vmatpush1.msra.mxu0 0.0
        %2285 = vmatprep.subr.mxu0 0.0
        %2286 = vmatpush1.msra.mxu0 0.0
        %2287 = vmatprep.subr.mxu0 0.0
        %2288 = vmatpush1.msra.mxu0 0.0
        %2289 = vmatprep.subr.mxu0 0.0
        %2290 = vmatpush1.msra.mxu0 0.0
        %2291 = vmatprep.subr.mxu0 0.0
        %2292 = vmatpush1.msra.mxu0 %v2267
        %2293 = vmatprep.subr.mxu0 0.0
        %2294 = vmatpush1.msra.mxu0 %v2266
        %2295 = vmatprep.subr.mxu0 0.0
        %2296 = vmatpush1.msra.mxu0 %v2265
        %2297 = vmatprep.subr.mxu0 0.0
        %2298 = vmatpush1.msra.mxu0 %v2264
        %2299 = vmatprep.subr.mxu0 0.0
        %2300 = vmatpush1.msra.mxu0 %v2263
        %2301 = vmatprep.subr.mxu0 0.0
        %2302 = vmatpush1.msra.mxu0 %v2262
        %2303 = vmatprep.subr.mxu0 0.0
        %2304 = vmatpush1.msra.mxu0 %v2261
        %2305 = vmatprep.subr.mxu0 0.0
        %2306 = vmatpush1.msra.mxu0 %v2260
        %2307 = vmatprep.subr.mxu0 0.0
        %2308 = vmatpush2.msra.mxu0 0.0
        %2309 = vmatprep.subr.mxu0 0.0
        %2310 = vmatpush2.msra.mxu0 0.0
        %2311 = vmatprep.subr.mxu0 0.0
        %2312 = vmatpush2.msra.mxu0 0.0
        %2313 = vmatprep.subr.mxu0 0.0
        %2314 = vmatpush2.msra.mxu0 0.0
        %2315 = vmatprep.subr.mxu0 0.0
        %2316 = vmatpush2.msra.mxu0 0.0
        %2317 = vmatprep.subr.mxu0 0.0
        %2318 = vmatpush2.msra.mxu0 0.0
        %2319 = vmatprep.subr.mxu0 0.0
        %2320 = vmatpush2.msra.mxu0 0.0
        %2321 = vmatprep.subr.mxu0 0.0
        %2322 = vmatpush2.msra.mxu0 0.0
        %2323 = vmatprep.subr.mxu0 0.0
        %2324 = vmatpush2.msra.mxu0 0.0
        %2325 = vmatprep.subr.mxu0 0.0
        %2326 = vmatpush2.msra.mxu0 0.0
        %2327 = vmatprep.subr.mxu0 0.0
        %2328 = vmatpush2.msra.mxu0 0.0
        %2329 = vmatprep.subr.mxu0 0.0
        %2330 = vmatpush2.msra.mxu0 0.0
        %2331 = vmatprep.subr.mxu0 0.0
        %2332 = vmatpush2.msra.mxu0 0.0
        %2333 = vmatprep.subr.mxu0 0.0
        %2334 = vmatpush2.msra.mxu0 0.0
        %2335 = vmatprep.subr.mxu0 0.0
        %2336 = vmatpush2.msra.mxu0 0.0
        %2337 = vmatprep.subr.mxu0 0.0
        %2338 = vmatpush2.msra.mxu0 0.0
        %2339 = vmatprep.mubr.f32.mxu0 0.0
        %2340 = vmatmul.mubr.f32.gmra.mxu0 %v2004
        %v2341 = vpop.f32.mrf.mxu0
        %v2342 = vadd.f32 %v2273, %v2341
        %v2343 = vpop.f32.mrf.mxu0
        %2344 = vdwg.mxu0
        %v2345 = vld [vmem:[#allocation8] sm:$0xff]
        %v2346 = vld [vmem:[#allocation8 + $0x8] sm:$0xff]
        %v2347 = vld [vmem:[#allocation8 + $0x10] sm:$0xff]
        %v2348 = vld [vmem:[#allocation8 + $0x18] sm:$0xff]
        %v2349 = vld [vmem:[#allocation8 + $0x20] sm:$0xff]
        %v2350 = vld [vmem:[#allocation8 + $0x28] sm:$0xff]
        %v2351 = vld [vmem:[#allocation8 + $0x30] sm:$0xff]
        %v2352 = vld [vmem:[#allocation8 + $0x38] sm:$0xff]
        %v2353 = vld [vmem:[%s17] sm:$0x1]
        %v2355 = vlaneseq
        %v2356 = vshrl.u32 %v2355, 7
        %v2357 = vsub.s32 0, %v2356
        %v2358 = vrot.slane %v2353, %v2357
        %2360 = vmatprep.subr.mxu0 0.0
        %2361 = vmatpush1.msra.mxu0 0.0
        %2362 = vmatprep.subr.mxu0 0.0
        %2363 = vmatpush1.msra.mxu0 0.0
        %2364 = vmatprep.subr.mxu0 0.0
        %2365 = vmatpush1.msra.mxu0 0.0
        %2366 = vmatprep.subr.mxu0 0.0
        %2367 = vmatpush1.msra.mxu0 0.0
        %2368 = vmatprep.subr.mxu0 0.0
        %2369 = vmatpush1.msra.mxu0 0.0
        %2370 = vmatprep.subr.mxu0 0.0
        %2371 = vmatpush1.msra.mxu0 0.0
        %2372 = vmatprep.subr.mxu0 0.0
        %2373 = vmatpush1.msra.mxu0 0.0
        %2374 = vmatprep.subr.mxu0 0.0
        %2375 = vmatpush1.msra.mxu0 0.0
        %2376 = vmatprep.subr.mxu0 0.0
        %2377 = vmatpush1.msra.mxu0 %v2352
        %2378 = vmatprep.subr.mxu0 0.0
        %2379 = vmatpush1.msra.mxu0 %v2351
        %2380 = vmatprep.subr.mxu0 0.0
        %2381 = vmatpush1.msra.mxu0 %v2350
        %2382 = vmatprep.subr.mxu0 0.0
        %2383 = vmatpush1.msra.mxu0 %v2349
        %2384 = vmatprep.subr.mxu0 0.0
        %2385 = vmatpush1.msra.mxu0 %v2348
        %2386 = vmatprep.subr.mxu0 0.0
        %2387 = vmatpush1.msra.mxu0 %v2347
        %2388 = vmatprep.subr.mxu0 0.0
        %2389 = vmatpush1.msra.mxu0 %v2346
        %2390 = vmatprep.subr.mxu0 0.0
        %2391 = vmatpush1.msra.mxu0 %v2345
        %2392 = vmatprep.subr.mxu0 0.0
        %2393 = vmatpush2.msra.mxu0 0.0
        %2394 = vmatprep.subr.mxu0 0.0
        %2395 = vmatpush2.msra.mxu0 0.0
        %2396 = vmatprep.subr.mxu0 0.0
        %2397 = vmatpush2.msra.mxu0 0.0
        %2398 = vmatprep.subr.mxu0 0.0
        %2399 = vmatpush2.msra.mxu0 0.0
        %2400 = vmatprep.subr.mxu0 0.0
        %2401 = vmatpush2.msra.mxu0 0.0
        %2402 = vmatprep.subr.mxu0 0.0
        %2403 = vmatpush2.msra.mxu0 0.0
        %2404 = vmatprep.subr.mxu0 0.0
        %2405 = vmatpush2.msra.mxu0 0.0
        %2406 = vmatprep.subr.mxu0 0.0
        %2407 = vmatpush2.msra.mxu0 0.0
        %2408 = vmatprep.subr.mxu0 0.0
        %2409 = vmatpush2.msra.mxu0 0.0
        %2410 = vmatprep.subr.mxu0 0.0
        %2411 = vmatpush2.msra.mxu0 0.0
        %2412 = vmatprep.subr.mxu0 0.0
        %2413 = vmatpush2.msra.mxu0 0.0
        %2414 = vmatprep.subr.mxu0 0.0
        %2415 = vmatpush2.msra.mxu0 0.0
        %2416 = vmatprep.subr.mxu0 0.0
        %2417 = vmatpush2.msra.mxu0 0.0
        %2418 = vmatprep.subr.mxu0 0.0
        %2419 = vmatpush2.msra.mxu0 0.0
        %2420 = vmatprep.subr.mxu0 0.0
        %2421 = vmatpush2.msra.mxu0 0.0
        %2422 = vmatprep.subr.mxu0 0.0
        %2423 = vmatpush2.msra.mxu0 0.0
        %2424 = vmatprep.mubr.f32.mxu0 0.0
        %2425 = vmatmul.mubr.f32.gmra.mxu0 %v1931
        %v2426 = vpop.f32.mrf.mxu0
        %v2427 = vadd.f32 %v2358, %v2426
        %v2428 = vpop.f32.mrf.mxu0
        %2429 = vdwg.mxu0
        %v2430 = vmul.f32 %v2089, %v2427
        %v2431 = vadd.f32 %v2342, %v2430
        %v2432 = vtanh.pop %v2431
        %v2433 = vsub.f32 1.0, %v2259
        %v2434 = vmul.f32 %v2433, %v2432
        %v2435 = vmul.f32 %v2259, %v953
        %v2436 = vadd.f32 %v2434, %v2435
        %v2437 = vld [vmem:[%s26] sm:$0x1]
        %v2438 = vld [vmem:[%s27] sm:$0x1]
        %v2439 = vsel %vm1580, %v2436, 0.0
        %2440 = vadd.xlane.f32.xlu0 %v2439
        %v2441 = vpop.xlane.xlu0 %2440
        %v2442 = vmul.f32 %v2441, %v1005
        %v2443 = vsub.f32 %v2436, %v2442
        %v2444 = vmul.f32 %v2443, %v2443
        %v2445 = vsel %vm1580, %v2444, 0.0
        %2446 = vadd.xlane.f32.xlu0 %v2445
        %v2447 = vpop.xlane.xlu0 %2446
        %v2448 = vmul.f32 %v2447, %v1005
        %v2449 = vadd.f32 %v2448, 1e-05
        %v2450 = vrsqrt.pop %v2449
        %v2451 = vmul.f32 %v2443, %v2450
        %v2453 = vlaneseq
        %v2454 = vshrl.u32 %v2453, 7
        %v2455 = vsub.s32 0, %v2454
        %v2456 = vrot.slane %v2437, %v2455
        %v2458 = vmul.f32 %v2451, %v2456
        %v2460 = vlaneseq
        %v2461 = vshrl.u32 %v2460, 7
        %v2462 = vsub.s32 0, %v2461
        %v2463 = vrot.slane %v2438, %v2462
        %v2465 = vadd.f32 %v2458, %v2463
        %v2466 = vld [vmem:[#allocation10] sm:$0xff]
        %v2467 = vld [vmem:[#allocation10 + $0x8] sm:$0xff]
        %v2468 = vld [vmem:[#allocation10 + $0x10] sm:$0xff]
        %v2469 = vld [vmem:[#allocation10 + $0x18] sm:$0xff]
        %v2470 = vld [vmem:[#allocation10 + $0x20] sm:$0xff]
        %v2471 = vld [vmem:[#allocation10 + $0x28] sm:$0xff]
        %v2472 = vld [vmem:[#allocation10 + $0x30] sm:$0xff]
        %v2473 = vld [vmem:[#allocation10 + $0x38] sm:$0xff]
        %v2474 = vld [vmem:[%s19] sm:$0x1]
        %v2476 = vlaneseq
        %v2477 = vshrl.u32 %v2476, 7
        %v2478 = vsub.s32 0, %v2477
        %v2479 = vrot.slane %v2474, %v2478
        %v2482 = vsel %vm956, %v2465, 0
        %2484 = vmatprep.subr.mxu0 0.0
        %2485 = vmatpush1.msra.mxu0 0.0
        %2486 = vmatprep.subr.mxu0 0.0
        %2487 = vmatpush1.msra.mxu0 0.0
        %2488 = vmatprep.subr.mxu0 0.0
        %2489 = vmatpush1.msra.mxu0 0.0
        %2490 = vmatprep.subr.mxu0 0.0
        %2491 = vmatpush1.msra.mxu0 0.0
        %2492 = vmatprep.subr.mxu0 0.0
        %2493 = vmatpush1.msra.mxu0 0.0
        %2494 = vmatprep.subr.mxu0 0.0
        %2495 = vmatpush1.msra.mxu0 0.0
        %2496 = vmatprep.subr.mxu0 0.0
        %2497 = vmatpush1.msra.mxu0 0.0
        %2498 = vmatprep.subr.mxu0 0.0
        %2499 = vmatpush1.msra.mxu0 0.0
        %2500 = vmatprep.subr.mxu0 0.0
        %2501 = vmatpush1.msra.mxu0 %v2473
        %2502 = vmatprep.subr.mxu0 0.0
        %2503 = vmatpush1.msra.mxu0 %v2472
        %2504 = vmatprep.subr.mxu0 0.0
        %2505 = vmatpush1.msra.mxu0 %v2471
        %2506 = vmatprep.subr.mxu0 0.0
        %2507 = vmatpush1.msra.mxu0 %v2470
        %2508 = vmatprep.subr.mxu0 0.0
        %2509 = vmatpush1.msra.mxu0 %v2469
        %2510 = vmatprep.subr.mxu0 0.0
        %2511 = vmatpush1.msra.mxu0 %v2468
        %2512 = vmatprep.subr.mxu0 0.0
        %2513 = vmatpush1.msra.mxu0 %v2467
        %2514 = vmatprep.subr.mxu0 0.0
        %2515 = vmatpush1.msra.mxu0 %v2466
        %2516 = vmatprep.subr.mxu0 0.0
        %2517 = vmatpush2.msra.mxu0 0.0
        %2518 = vmatprep.subr.mxu0 0.0
        %2519 = vmatpush2.msra.mxu0 0.0
        %2520 = vmatprep.subr.mxu0 0.0
        %2521 = vmatpush2.msra.mxu0 0.0
        %2522 = vmatprep.subr.mxu0 0.0
        %2523 = vmatpush2.msra.mxu0 0.0
        %2524 = vmatprep.subr.mxu0 0.0
        %2525 = vmatpush2.msra.mxu0 0.0
        %2526 = vmatprep.subr.mxu0 0.0
        %2527 = vmatpush2.msra.mxu0 0.0
        %2528 = vmatprep.subr.mxu0 0.0
        %2529 = vmatpush2.msra.mxu0 0.0
        %2530 = vmatprep.subr.mxu0 0.0
        %2531 = vmatpush2.msra.mxu0 0.0
        %2532 = vmatprep.subr.mxu0 0.0
        %2533 = vmatpush2.msra.mxu0 0.0
        %2534 = vmatprep.subr.mxu0 0.0
        %2535 = vmatpush2.msra.mxu0 0.0
        %2536 = vmatprep.subr.mxu0 0.0
        %2537 = vmatpush2.msra.mxu0 0.0
        %2538 = vmatprep.subr.mxu0 0.0
        %2539 = vmatpush2.msra.mxu0 0.0
        %2540 = vmatprep.subr.mxu0 0.0
        %2541 = vmatpush2.msra.mxu0 0.0
        %2542 = vmatprep.subr.mxu0 0.0
        %2543 = vmatpush2.msra.mxu0 0.0
        %2544 = vmatprep.subr.mxu0 0.0
        %2545 = vmatpush2.msra.mxu0 0.0
        %2546 = vmatprep.subr.mxu0 0.0
        %2547 = vmatpush2.msra.mxu0 0.0
        %2548 = vmatprep.mubr.f32.mxu0 0.0
        %2549 = vmatmul.mubr.f32.gmra.mxu0 %v2482
        %v2550 = vpop.f32.mrf.mxu0
        %v2551 = vadd.f32 %v2479, %v2550
        %v2552 = vpop.f32.mrf.mxu0
        %2553 = vdwg.mxu0
        %v2554 = vmax.f32 %v2551, 0.0
        %v2555 = vld [vmem:[%s20] sm:$0xff]
        %v2556 = vld [vmem:[%s20 + $0x8] sm:$0xff]
        %v2557 = vld [vmem:[%s20 + $0x10] sm:$0xff]
        %v2558 = vld [vmem:[%s20 + $0x18] sm:$0xff]
        %v2559 = vld [vmem:[%s20 + $0x20] sm:$0xff]
        %v2560 = vld [vmem:[%s20 + $0x28] sm:$0xff]
        %v2561 = vld [vmem:[%s20 + $0x30] sm:$0xff]
        %v2562 = vld [vmem:[%s20 + $0x38] sm:$0xff]
        %v2563 = vld [vmem:[%s20 + $0x40] sm:$0xff]
        %v2564 = vld [vmem:[%s20 + $0x48] sm:$0xff]
        %v2565 = vld [vmem:[%s20 + $0x50] sm:$0xff]
        %v2566 = vld [vmem:[%s20 + $0x58] sm:$0xff]
        %v2567 = vld [vmem:[%s20 + $0x60] sm:$0xff]
        %v2568 = vld [vmem:[%s20 + $0x68] sm:$0xff]
        %v2569 = vld [vmem:[%s20 + $0x70] sm:$0xff]
        %v2570 = vld [vmem:[%s20 + $0x78] sm:$0xff]
        %2571 = vmatprep.subr.mxu0 0.0
        %2572 = vmatpush1.msra.mxu0 %v2570
        %2573 = vmatprep.subr.mxu0 0.0
        %2574 = vmatpush1.msra.mxu0 %v2569
        %2575 = vmatprep.subr.mxu0 0.0
        %2576 = vmatpush1.msra.mxu0 %v2568
        %2577 = vmatprep.subr.mxu0 0.0
        %2578 = vmatpush1.msra.mxu0 %v2567
        %2579 = vmatprep.subr.mxu0 0.0
        %2580 = vmatpush1.msra.mxu0 %v2566
        %2581 = vmatprep.subr.mxu0 0.0
        %2582 = vmatpush1.msra.mxu0 %v2565
        %2583 = vmatprep.subr.mxu0 0.0
        %2584 = vmatpush1.msra.mxu0 %v2564
        %2585 = vmatprep.subr.mxu0 0.0
        %2586 = vmatpush1.msra.mxu0 %v2563
        %2587 = vmatprep.subr.mxu0 0.0
        %2588 = vmatpush1.msra.mxu0 %v2562
        %2589 = vmatprep.subr.mxu0 0.0
        %2590 = vmatpush1.msra.mxu0 %v2561
        %2591 = vmatprep.subr.mxu0 0.0
        %2592 = vmatpush1.msra.mxu0 %v2560
        %2593 = vmatprep.subr.mxu0 0.0
        %2594 = vmatpush1.msra.mxu0 %v2559
        %2595 = vmatprep.subr.mxu0 0.0
        %2596 = vmatpush1.msra.mxu0 %v2558
        %2597 = vmatprep.subr.mxu0 0.0
        %2598 = vmatpush1.msra.mxu0 %v2557
        %2599 = vmatprep.subr.mxu0 0.0
        %2600 = vmatpush1.msra.mxu0 %v2556
        %2601 = vmatprep.subr.mxu0 0.0
        %2602 = vmatpush1.msra.mxu0 %v2555
        %2603 = vmatprep.subr.mxu0 0.0
        %2604 = vmatpush2.msra.mxu0 0.0
        %2605 = vmatprep.subr.mxu0 0.0
        %2606 = vmatpush2.msra.mxu0 0.0
        %2607 = vmatprep.subr.mxu0 0.0
        %2608 = vmatpush2.msra.mxu0 0.0
        %2609 = vmatprep.subr.mxu0 0.0
        %2610 = vmatpush2.msra.mxu0 0.0
        %2611 = vmatprep.subr.mxu0 0.0
        %2612 = vmatpush2.msra.mxu0 0.0
        %2613 = vmatprep.subr.mxu0 0.0
        %2614 = vmatpush2.msra.mxu0 0.0
        %2615 = vmatprep.subr.mxu0 0.0
        %2616 = vmatpush2.msra.mxu0 0.0
        %2617 = vmatprep.subr.mxu0 0.0
        %2618 = vmatpush2.msra.mxu0 0.0
        %2619 = vmatprep.subr.mxu0 0.0
        %2620 = vmatpush2.msra.mxu0 0.0
        %2621 = vmatprep.subr.mxu0 0.0
        %2622 = vmatpush2.msra.mxu0 0.0
        %2623 = vmatprep.subr.mxu0 0.0
        %2624 = vmatpush2.msra.mxu0 0.0
        %2625 = vmatprep.subr.mxu0 0.0
        %2626 = vmatpush2.msra.mxu0 0.0
        %2627 = vmatprep.subr.mxu0 0.0
        %2628 = vmatpush2.msra.mxu0 0.0
        %2629 = vmatprep.subr.mxu0 0.0
        %2630 = vmatpush2.msra.mxu0 0.0
        %2631 = vmatprep.subr.mxu0 0.0
        %2632 = vmatpush2.msra.mxu0 0.0
        %2633 = vmatprep.subr.mxu0 0.0
        %2634 = vmatpush2.msra.mxu0 0.0
        %2635 = vmatprep.mubr.f32.mxu0 0.0
        %2636 = vmatmul.mubr.f32.gmra.mxu0 %v2554
        %v2637 = vpop.f32.mrf.mxu0
        %v2638 = vadd.f32 0.0, %v2637
        %v2639 = vpop.f32.mrf.mxu0
        %2640 = vdwg.mxu0
        %v2641 = vadd.f32 %v2436, %v2638
        %v2642 = vld [vmem:[%s21] sm:$0x1]
        %v2644 = vlaneseq
        %v2645 = vshrl.u32 %v2644, 7
        %v2646 = vsub.s32 0, %v2645
        %v2647 = vrot.slane %v2642, %v2646
        %v2649 = vadd.f32 %v2641, %v2647
        %v2650 = vsel %vm1580, %v2649, 0.0
        %2651 = vadd.xlane.f32.xlu0 %v2650
        %v2652 = vpop.xlane.xlu0 %2651
        %v2653 = vmul.f32 %v2652, %v1005
        %v2654 = vsub.f32 %v2649, %v2653
        %v2655 = vmul.f32 %v2654, %v2654
        %v2656 = vsel %vm1580, %v2655, 0.0
        %2657 = vadd.xlane.f32.xlu0 %v2656
        %v2658 = vpop.xlane.xlu0 %2657
        %v2659 = vmul.f32 %v2658, %v1005
        %v2660 = vadd.f32 %v2659, 1e-05
        %v2661 = vrsqrt.pop %v2660
        %v2662 = vmul.f32 %v2654, %v2661
        %v2663 = vmul.f32 %v2662, %v1598
        %v2664 = vadd.f32 %v2663, %v1605
        %v2666 = vsel %vm956, %v2664, 0
        %2668 = vmatprep.subr.mxu0 0.0
        %2669 = vmatpush1.msra.mxu0 0.0
        %2670 = vmatprep.subr.mxu0 0.0
        %2671 = vmatpush1.msra.mxu0 0.0
        %2672 = vmatprep.subr.mxu0 0.0
        %2673 = vmatpush1.msra.mxu0 0.0
        %2674 = vmatprep.subr.mxu0 0.0
        %2675 = vmatpush1.msra.mxu0 0.0
        %2676 = vmatprep.subr.mxu0 0.0
        %2677 = vmatpush1.msra.mxu0 0.0
        %2678 = vmatprep.subr.mxu0 0.0
        %2679 = vmatpush1.msra.mxu0 0.0
        %2680 = vmatprep.subr.mxu0 0.0
        %2681 = vmatpush1.msra.mxu0 0.0
        %2682 = vmatprep.subr.mxu0 0.0
        %2683 = vmatpush1.msra.mxu0 0.0
        %2684 = vmatprep.subr.mxu0 0.0
        %2685 = vmatpush1.msra.mxu0 %v1615
        %2686 = vmatprep.subr.mxu0 0.0
        %2687 = vmatpush1.msra.mxu0 %v1614
        %2688 = vmatprep.subr.mxu0 0.0
        %2689 = vmatpush1.msra.mxu0 %v1613
        %2690 = vmatprep.subr.mxu0 0.0
        %2691 = vmatpush1.msra.mxu0 %v1612
        %2692 = vmatprep.subr.mxu0 0.0
        %2693 = vmatpush1.msra.mxu0 %v1611
        %2694 = vmatprep.subr.mxu0 0.0
        %2695 = vmatpush1.msra.mxu0 %v1610
        %2696 = vmatprep.subr.mxu0 0.0
        %2697 = vmatpush1.msra.mxu0 %v1609
        %2698 = vmatprep.subr.mxu0 0.0
        %2699 = vmatpush1.msra.mxu0 %v1608
        %2700 = vmatprep.subr.mxu0 0.0
        %2701 = vmatpush2.msra.mxu0 0.0
        %2702 = vmatprep.subr.mxu0 0.0
        %2703 = vmatpush2.msra.mxu0 0.0
        %2704 = vmatprep.subr.mxu0 0.0
        %2705 = vmatpush2.msra.mxu0 0.0
        %2706 = vmatprep.subr.mxu0 0.0
        %2707 = vmatpush2.msra.mxu0 0.0
        %2708 = vmatprep.subr.mxu0 0.0
        %2709 = vmatpush2.msra.mxu0 0.0
        %2710 = vmatprep.subr.mxu0 0.0
        %2711 = vmatpush2.msra.mxu0 0.0
        %2712 = vmatprep.subr.mxu0 0.0
        %2713 = vmatpush2.msra.mxu0 0.0
        %2714 = vmatprep.subr.mxu0 0.0
        %2715 = vmatpush2.msra.mxu0 0.0
        %2716 = vmatprep.subr.mxu0 0.0
        %2717 = vmatpush2.msra.mxu0 0.0
        %2718 = vmatprep.subr.mxu0 0.0
        %2719 = vmatpush2.msra.mxu0 0.0
        %2720 = vmatprep.subr.mxu0 0.0
        %2721 = vmatpush2.msra.mxu0 0.0
        %2722 = vmatprep.subr.mxu0 0.0
        %2723 = vmatpush2.msra.mxu0 0.0
        %2724 = vmatprep.subr.mxu0 0.0
        %2725 = vmatpush2.msra.mxu0 0.0
        %2726 = vmatprep.subr.mxu0 0.0
        %2727 = vmatpush2.msra.mxu0 0.0
        %2728 = vmatprep.subr.mxu0 0.0
        %2729 = vmatpush2.msra.mxu0 0.0
        %2730 = vmatprep.subr.mxu0 0.0
        %2731 = vmatpush2.msra.mxu0 0.0
        %2732 = vmatprep.mubr.f32.mxu0 0.0
        %2733 = vmatmul.mubr.f32.gmra.mxu0 %v2666
        %v2734 = vpop.f32.mrf.mxu0
        %v2735 = vadd.f32 %v1621, %v2734
        %v2736 = vpop.f32.mrf.mxu0
        %2737 = vdwg.mxu0
        %v2739 = vsel %vm956, %v2735, 0
        %2741 = vmatprep.subr.mxu0 0.0
        %2742 = vmatpush1.xpose.msra.mxu0 %v1745
        %2743 = vmatprep.subr.mxu0 0.0
        %2744 = vmatpush1.xpose.msra.mxu0 %v1742
        %2745 = vmatprep.subr.mxu0 0.0
        %2746 = vmatpush1.xpose.msra.mxu0 %v1739
        %2747 = vmatprep.subr.mxu0 0.0
        %2748 = vmatpush1.xpose.msra.mxu0 %v1736
        %2749 = vmatprep.subr.mxu0 0.0
        %2750 = vmatpush1.xpose.msra.mxu0 %v1733
        %2751 = vmatprep.subr.mxu0 0.0
        %2752 = vmatpush1.xpose.msra.mxu0 %v1730
        %2753 = vmatprep.subr.mxu0 0.0
        %2754 = vmatpush1.xpose.msra.mxu0 %v1727
        %2755 = vmatprep.subr.mxu0 0.0
        %2756 = vmatpush1.xpose.msra.mxu0 %v1724
        %2757 = vmatprep.subr.mxu0 0.0
        %2758 = vmatpush1.xpose.msra.mxu0 %v1721
        %2759 = vmatprep.subr.mxu0 0.0
        %2760 = vmatpush1.xpose.msra.mxu0 %v1718
        %2761 = vmatprep.subr.mxu0 0.0
        %2762 = vmatpush1.xpose.msra.mxu0 %v1715
        %2763 = vmatprep.subr.mxu0 0.0
        %2764 = vmatpush1.xpose.msra.mxu0 %v1712
        %2765 = vmatprep.subr.mxu0 0.0
        %2766 = vmatpush1.xpose.msra.mxu0 %v1709
        %2767 = vmatprep.subr.mxu0 0.0
        %2768 = vmatpush1.xpose.msra.mxu0 %v1706
        %2769 = vmatprep.subr.mxu0 0.0
        %2770 = vmatpush1.xpose.msra.mxu0 %v1703
        %2771 = vmatprep.subr.mxu0 0.0
        %2772 = vmatpush1.xpose.msra.mxu0 %v1700
        %2773 = vmatprep.subr.mxu0 0.0
        %2774 = vmatpush2.xpose.msra.mxu0 0.0
        %2775 = vmatprep.subr.mxu0 0.0
        %2776 = vmatpush2.xpose.msra.mxu0 0.0
        %2777 = vmatprep.subr.mxu0 0.0
        %2778 = vmatpush2.xpose.msra.mxu0 0.0
        %2779 = vmatprep.subr.mxu0 0.0
        %2780 = vmatpush2.xpose.msra.mxu0 0.0
        %2781 = vmatprep.subr.mxu0 0.0
        %2782 = vmatpush2.xpose.msra.mxu0 0.0
        %2783 = vmatprep.subr.mxu0 0.0
        %2784 = vmatpush2.xpose.msra.mxu0 0.0
        %2785 = vmatprep.subr.mxu0 0.0
        %2786 = vmatpush2.xpose.msra.mxu0 0.0
        %2787 = vmatprep.subr.mxu0 0.0
        %2788 = vmatpush2.xpose.msra.mxu0 0.0
        %2789 = vmatprep.subr.mxu0 0.0
        %2790 = vmatpush2.xpose.msra.mxu0 0.0
        %2791 = vmatprep.subr.mxu0 0.0
        %2792 = vmatpush2.xpose.msra.mxu0 0.0
        %2793 = vmatprep.subr.mxu0 0.0
        %2794 = vmatpush2.xpose.msra.mxu0 0.0
        %2795 = vmatprep.subr.mxu0 0.0
        %2796 = vmatpush2.xpose.msra.mxu0 0.0
        %2797 = vmatprep.subr.mxu0 0.0
        %2798 = vmatpush2.xpose.msra.mxu0 0.0
        %2799 = vmatprep.subr.mxu0 0.0
        %2800 = vmatpush2.xpose.msra.mxu0 0.0
        %2801 = vmatprep.subr.mxu0 0.0
        %2802 = vmatpush2.xpose.msra.mxu0 0.0
        %2803 = vmatprep.subr.mxu0 0.0
        %2804 = vmatpush2.xpose.msra.mxu0 0.0
        %2805 = vmatprep.mubr.f32.mxu0 0.0
        %2806 = vmatmul.mubr.f32.gmra.mxu0 %v2739
        %v2807 = vpop.f32.mrf.mxu0
        %v2808 = vadd.f32 0.0, %v2807
        %v2809 = vpop.f32.mrf.mxu0
        %2810 = vdwg.mxu0
        %v2811 = vmul.f32 %v2808, 0.125
        %v2812 = vsel %vm1818, %v2811, -inf
        %v2813 = vrot.slane %v2812, 4
        %v2814 = vmax.f32 %v2812, %v2813
        %v2815 = vrot.slane %v2814, 2
        %v2816 = vmax.f32 %v2814, %v2815
        %v2817 = vrot.slane %v2816, 1
        %v2818 = vmax.f32 %v2816, %v2817
        %v2819 = vsub.f32 %v2811, %v2818
        %v2820 = vmul.f32 %v2819, 1.442695
        %v2821 = vpow.pop %v2820
        %v2822 = vsel %vm1818, %v2821, 0.0
        %v2823 = vrot.slane %v2822, 4
        %v2824 = vadd.f32 %v2822, %v2823
        %v2825 = vrot.slane %v2824, 2
        %v2826 = vadd.f32 %v2824, %v2825
        %v2827 = vrot.slane %v2826, 1
        %v2828 = vadd.f32 %v2826, %v2827
        %v2829 = vrcp.pop %v2828
        %v2830 = vmul.f32 %v2821, %v2829
        %v2831 = vadd.f32 %v2830, 1e-08
        %v2832 = vsel %vm1818, %v2831, 0.0
        %2833 = vadd.xlane.f32.xlu0 %v2832
        %v2834 = vpop.xlane.xlu0 %2833
        %v2835 = vrcp.pop %v2834
        %v2836 = vmul.f32 %v2831, %v2835
        %2837 = vmatprep.subr.mxu0 0.0
        %2838 = vmatpush1.msra.mxu0 %v1575
        %2839 = vmatprep.subr.mxu0 0.0
        %2840 = vmatpush1.msra.mxu0 %v1570
        %2841 = vmatprep.subr.mxu0 0.0
        %2842 = vmatpush1.msra.mxu0 %v1565
        %2843 = vmatprep.subr.mxu0 0.0
        %2844 = vmatpush1.msra.mxu0 %v1560
        %2845 = vmatprep.subr.mxu0 0.0
        %2846 = vmatpush1.msra.mxu0 %v1555
        %2847 = vmatprep.subr.mxu0 0.0
        %2848 = vmatpush1.msra.mxu0 %v1550
        %2849 = vmatprep.subr.mxu0 0.0
        %2850 = vmatpush1.msra.mxu0 %v1545
        %2851 = vmatprep.subr.mxu0 0.0
        %2852 = vmatpush1.msra.mxu0 %v1540
        %2853 = vmatprep.subr.mxu0 0.0
        %2854 = vmatpush1.msra.mxu0 %v1535
        %2855 = vmatprep.subr.mxu0 0.0
        %2856 = vmatpush1.msra.mxu0 %v1530
        %2857 = vmatprep.subr.mxu0 0.0
        %2858 = vmatpush1.msra.mxu0 %v1525
        %2859 = vmatprep.subr.mxu0 0.0
        %2860 = vmatpush1.msra.mxu0 %v1520
        %2861 = vmatprep.subr.mxu0 0.0
        %2862 = vmatpush1.msra.mxu0 %v1515
        %2863 = vmatprep.subr.mxu0 0.0
        %2864 = vmatpush1.msra.mxu0 %v1510
        %2865 = vmatprep.subr.mxu0 0.0
        %2866 = vmatpush1.msra.mxu0 %v1505
        %2867 = vmatprep.subr.mxu0 0.0
        %2868 = vmatpush1.msra.mxu0 %v1500
        %2869 = vmatprep.subr.mxu0 0.0
        %2870 = vmatpush2.msra.mxu0 0.0
        %2871 = vmatprep.subr.mxu0 0.0
        %2872 = vmatpush2.msra.mxu0 0.0
        %2873 = vmatprep.subr.mxu0 0.0
        %2874 = vmatpush2.msra.mxu0 0.0
        %2875 = vmatprep.subr.mxu0 0.0
        %2876 = vmatpush2.msra.mxu0 0.0
        %2877 = vmatprep.subr.mxu0 0.0
        %2878 = vmatpush2.msra.mxu0 0.0
        %2879 = vmatprep.subr.mxu0 0.0
        %2880 = vmatpush2.msra.mxu0 0.0
        %2881 = vmatprep.subr.mxu0 0.0
        %2882 = vmatpush2.msra.mxu0 0.0
        %2883 = vmatprep.subr.mxu0 0.0
        %2884 = vmatpush2.msra.mxu0 0.0
        %2885 = vmatprep.subr.mxu0 0.0
        %2886 = vmatpush2.msra.mxu0 0.0
        %2887 = vmatprep.subr.mxu0 0.0
        %2888 = vmatpush2.msra.mxu0 0.0
        %2889 = vmatprep.subr.mxu0 0.0
        %2890 = vmatpush2.msra.mxu0 0.0
        %2891 = vmatprep.subr.mxu0 0.0
        %2892 = vmatpush2.msra.mxu0 0.0
        %2893 = vmatprep.subr.mxu0 0.0
        %2894 = vmatpush2.msra.mxu0 0.0
        %2895 = vmatprep.subr.mxu0 0.0
        %2896 = vmatpush2.msra.mxu0 0.0
        %2897 = vmatprep.subr.mxu0 0.0
        %2898 = vmatpush2.msra.mxu0 0.0
        %2899 = vmatprep.subr.mxu0 0.0
        %2900 = vmatpush2.msra.mxu0 0.0
        %2901 = vmatprep.mubr.f32.mxu0 0.0
        %2902 = vmatmul.mubr.f32.gmra.mxu0 %v2836
        %v2903 = vpop.f32.mrf.mxu0
        %v2904 = vadd.f32 0.0, %v2903
        %v2905 = vpop.f32.mrf.mxu0
        %2906 = vdwg.mxu0
        %v2908 = vsel %vm956, %v2649, 0
        %2910 = vmatprep.subr.mxu0 0.0
        %2911 = vmatpush1.msra.mxu0 0.0
        %2912 = vmatprep.subr.mxu0 0.0
        %2913 = vmatpush1.msra.mxu0 0.0
        %2914 = vmatprep.subr.mxu0 0.0
        %2915 = vmatpush1.msra.mxu0 0.0
        %2916 = vmatprep.subr.mxu0 0.0
        %2917 = vmatpush1.msra.mxu0 0.0
        %2918 = vmatprep.subr.mxu0 0.0
        %2919 = vmatpush1.msra.mxu0 0.0
        %2920 = vmatprep.subr.mxu0 0.0
        %2921 = vmatpush1.msra.mxu0 0.0
        %2922 = vmatprep.subr.mxu0 0.0
        %2923 = vmatpush1.msra.mxu0 0.0
        %2924 = vmatprep.subr.mxu0 0.0
        %2925 = vmatpush1.msra.mxu0 0.0
        %2926 = vmatprep.subr.mxu0 0.0
        %2927 = vmatpush1.msra.mxu0 %v1929
        %2928 = vmatprep.subr.mxu0 0.0
        %2929 = vmatpush1.msra.mxu0 %v1928
        %2930 = vmatprep.subr.mxu0 0.0
        %2931 = vmatpush1.msra.mxu0 %v1927
        %2932 = vmatprep.subr.mxu0 0.0
        %2933 = vmatpush1.msra.mxu0 %v1926
        %2934 = vmatprep.subr.mxu0 0.0
        %2935 = vmatpush1.msra.mxu0 %v1925
        %2936 = vmatprep.subr.mxu0 0.0
        %2937 = vmatpush1.msra.mxu0 %v1924
        %2938 = vmatprep.subr.mxu0 0.0
        %2939 = vmatpush1.msra.mxu0 %v1923
        %2940 = vmatprep.subr.mxu0 0.0
        %2941 = vmatpush1.msra.mxu0 %v1922
        %2942 = vmatprep.subr.mxu0 0.0
        %2943 = vmatpush2.msra.mxu0 0.0
        %2944 = vmatprep.subr.mxu0 0.0
        %2945 = vmatpush2.msra.mxu0 0.0
        %2946 = vmatprep.subr.mxu0 0.0
        %2947 = vmatpush2.msra.mxu0 0.0
        %2948 = vmatprep.subr.mxu0 0.0
        %2949 = vmatpush2.msra.mxu0 0.0
        %2950 = vmatprep.subr.mxu0 0.0
        %2951 = vmatpush2.msra.mxu0 0.0
        %2952 = vmatprep.subr.mxu0 0.0
        %2953 = vmatpush2.msra.mxu0 0.0
        %2954 = vmatprep.subr.mxu0 0.0
        %2955 = vmatpush2.msra.mxu0 0.0
        %2956 = vmatprep.subr.mxu0 0.0
        %2957 = vmatpush2.msra.mxu0 0.0
        %2958 = vmatprep.subr.mxu0 0.0
        %2959 = vmatpush2.msra.mxu0 0.0
        %2960 = vmatprep.subr.mxu0 0.0
        %2961 = vmatpush2.msra.mxu0 0.0
        %2962 = vmatprep.subr.mxu0 0.0
        %2963 = vmatpush2.msra.mxu0 0.0
        %2964 = vmatprep.subr.mxu0 0.0
        %2965 = vmatpush2.msra.mxu0 0.0
        %2966 = vmatprep.subr.mxu0 0.0
        %2967 = vmatpush2.msra.mxu0 0.0
        %2968 = vmatprep.subr.mxu0 0.0
        %2969 = vmatpush2.msra.mxu0 0.0
        %2970 = vmatprep.subr.mxu0 0.0
        %2971 = vmatpush2.msra.mxu0 0.0
        %2972 = vmatprep.subr.mxu0 0.0
        %2973 = vmatpush2.msra.mxu0 0.0
        %2974 = vmatprep.mubr.f32.mxu0 0.0
        %2975 = vmatmul.mubr.f32.gmra.mxu0 %v2908
        %v2976 = vpop.f32.mrf.mxu0
        %v2977 = vadd.f32 0.0, %v2976
        %v2978 = vpop.f32.mrf.mxu0
        %2979 = vdwg.mxu0
        %v2981 = vsel %vm956, %v2904, 0
        %2983 = vmatprep.subr.mxu0 0.0
        %2984 = vmatpush1.msra.mxu0 0.0
        %2985 = vmatprep.subr.mxu0 0.0
        %2986 = vmatpush1.msra.mxu0 0.0
        %2987 = vmatprep.subr.mxu0 0.0
        %2988 = vmatpush1.msra.mxu0 0.0
        %2989 = vmatprep.subr.mxu0 0.0
        %2990 = vmatpush1.msra.mxu0 0.0
        %2991 = vmatprep.subr.mxu0 0.0
        %2992 = vmatpush1.msra.mxu0 0.0
        %2993 = vmatprep.subr.mxu0 0.0
        %2994 = vmatpush1.msra.mxu0 0.0
        %2995 = vmatprep.subr.mxu0 0.0
        %2996 = vmatpush1.msra.mxu0 0.0
        %2997 = vmatprep.subr.mxu0 0.0
        %2998 = vmatpush1.msra.mxu0 0.0
        %2999 = vmatprep.subr.mxu0 0.0
        %3000 = vmatpush1.msra.mxu0 %v1921
        %3001 = vmatprep.subr.mxu0 0.0
        %3002 = vmatpush1.msra.mxu0 %v1920
        %3003 = vmatprep.subr.mxu0 0.0
        %3004 = vmatpush1.msra.mxu0 %v1919
        %3005 = vmatprep.subr.mxu0 0.0
        %3006 = vmatpush1.msra.mxu0 %v1918
        %3007 = vmatprep.subr.mxu0 0.0
        %3008 = vmatpush1.msra.mxu0 %v1917
        %3009 = vmatprep.subr.mxu0 0.0
        %3010 = vmatpush1.msra.mxu0 %v1916
        %3011 = vmatprep.subr.mxu0 0.0
        %3012 = vmatpush1.msra.mxu0 %v1915
        %3013 = vmatprep.subr.mxu0 0.0
        %3014 = vmatpush1.msra.mxu0 %v1914
        %3015 = vmatprep.subr.mxu0 0.0
        %3016 = vmatpush2.msra.mxu0 0.0
        %3017 = vmatprep.subr.mxu0 0.0
        %3018 = vmatpush2.msra.mxu0 0.0
        %3019 = vmatprep.subr.mxu0 0.0
        %3020 = vmatpush2.msra.mxu0 0.0
        %3021 = vmatprep.subr.mxu0 0.0
        %3022 = vmatpush2.msra.mxu0 0.0
        %3023 = vmatprep.subr.mxu0 0.0
        %3024 = vmatpush2.msra.mxu0 0.0
        %3025 = vmatprep.subr.mxu0 0.0
        %3026 = vmatpush2.msra.mxu0 0.0
        %3027 = vmatprep.subr.mxu0 0.0
        %3028 = vmatpush2.msra.mxu0 0.0
        %3029 = vmatprep.subr.mxu0 0.0
        %3030 = vmatpush2.msra.mxu0 0.0
        %3031 = vmatprep.subr.mxu0 0.0
        %3032 = vmatpush2.msra.mxu0 0.0
        %3033 = vmatprep.subr.mxu0 0.0
        %3034 = vmatpush2.msra.mxu0 0.0
        %3035 = vmatprep.subr.mxu0 0.0
        %3036 = vmatpush2.msra.mxu0 0.0
        %3037 = vmatprep.subr.mxu0 0.0
        %3038 = vmatpush2.msra.mxu0 0.0
        %3039 = vmatprep.subr.mxu0 0.0
        %3040 = vmatpush2.msra.mxu0 0.0
        %3041 = vmatprep.subr.mxu0 0.0
        %3042 = vmatpush2.msra.mxu0 0.0
        %3043 = vmatprep.subr.mxu0 0.0
        %3044 = vmatpush2.msra.mxu0 0.0
        %3045 = vmatprep.subr.mxu0 0.0
        %3046 = vmatpush2.msra.mxu0 0.0
        %3047 = vmatprep.mubr.f32.mxu0 0.0
        %3048 = vmatmul.mubr.f32.gmra.mxu0 %v2981
        %v3049 = vpop.f32.mrf.mxu0
        %v3050 = vadd.f32 %v2977, %v3049
        %v3051 = vpop.f32.mrf.mxu0
        %3052 = vdwg.mxu0
        %v3053 = vadd.f32 %v3050, %v2081
        %v3054 = vxor.u32 %v3053, 2147483648
        %v3055 = vmul.f32 %v3054, 1.442695
        %v3056 = vpow.pop %v3055
        %v3057 = vadd.f32 %v3056, 1.0
        %v3058 = vrcp.pop %v3057
        %v3059 = vmul.f32 1.0, %v3058
        %3060 = vmatprep.subr.mxu0 0.0
        %3061 = vmatpush1.msra.mxu0 0.0
        %3062 = vmatprep.subr.mxu0 0.0
        %3063 = vmatpush1.msra.mxu0 0.0
        %3064 = vmatprep.subr.mxu0 0.0
        %3065 = vmatpush1.msra.mxu0 0.0
        %3066 = vmatprep.subr.mxu0 0.0
        %3067 = vmatpush1.msra.mxu0 0.0
        %3068 = vmatprep.subr.mxu0 0.0
        %3069 = vmatpush1.msra.mxu0 0.0
        %3070 = vmatprep.subr.mxu0 0.0
        %3071 = vmatpush1.msra.mxu0 0.0
        %3072 = vmatprep.subr.mxu0 0.0
        %3073 = vmatpush1.msra.mxu0 0.0
        %3074 = vmatprep.subr.mxu0 0.0
        %3075 = vmatpush1.msra.mxu0 0.0
        %3076 = vmatprep.subr.mxu0 0.0
        %3077 = vmatpush1.msra.mxu0 %v2105
        %3078 = vmatprep.subr.mxu0 0.0
        %3079 = vmatpush1.msra.mxu0 %v2104
        %3080 = vmatprep.subr.mxu0 0.0
        %3081 = vmatpush1.msra.mxu0 %v2103
        %3082 = vmatprep.subr.mxu0 0.0
        %3083 = vmatpush1.msra.mxu0 %v2102
        %3084 = vmatprep.subr.mxu0 0.0
        %3085 = vmatpush1.msra.mxu0 %v2101
        %3086 = vmatprep.subr.mxu0 0.0
        %3087 = vmatpush1.msra.mxu0 %v2100
        %3088 = vmatprep.subr.mxu0 0.0
        %3089 = vmatpush1.msra.mxu0 %v2099
        %3090 = vmatprep.subr.mxu0 0.0
        %3091 = vmatpush1.msra.mxu0 %v2098
        %3092 = vmatprep.subr.mxu0 0.0
        %3093 = vmatpush2.msra.mxu0 0.0
        %3094 = vmatprep.subr.mxu0 0.0
        %3095 = vmatpush2.msra.mxu0 0.0
        %3096 = vmatprep.subr.mxu0 0.0
        %3097 = vmatpush2.msra.mxu0 0.0
        %3098 = vmatprep.subr.mxu0 0.0
        %3099 = vmatpush2.msra.mxu0 0.0
        %3100 = vmatprep.subr.mxu0 0.0
        %3101 = vmatpush2.msra.mxu0 0.0
        %3102 = vmatprep.subr.mxu0 0.0
        %3103 = vmatpush2.msra.mxu0 0.0
        %3104 = vmatprep.subr.mxu0 0.0
        %3105 = vmatpush2.msra.mxu0 0.0
        %3106 = vmatprep.subr.mxu0 0.0
        %3107 = vmatpush2.msra.mxu0 0.0
        %3108 = vmatprep.subr.mxu0 0.0
        %3109 = vmatpush2.msra.mxu0 0.0
        %3110 = vmatprep.subr.mxu0 0.0
        %3111 = vmatpush2.msra.mxu0 0.0
        %3112 = vmatprep.subr.mxu0 0.0
        %3113 = vmatpush2.msra.mxu0 0.0
        %3114 = vmatprep.subr.mxu0 0.0
        %3115 = vmatpush2.msra.mxu0 0.0
        %3116 = vmatprep.subr.mxu0 0.0
        %3117 = vmatpush2.msra.mxu0 0.0
        %3118 = vmatprep.subr.mxu0 0.0
        %3119 = vmatpush2.msra.mxu0 0.0
        %3120 = vmatprep.subr.mxu0 0.0
        %3121 = vmatpush2.msra.mxu0 0.0
        %3122 = vmatprep.subr.mxu0 0.0
        %3123 = vmatpush2.msra.mxu0 0.0
        %3124 = vmatprep.mubr.f32.mxu0 0.0
        %3125 = vmatmul.mubr.f32.gmra.mxu0 %v2908
        %v3126 = vpop.f32.mrf.mxu0
        %v3127 = vadd.f32 0.0, %v3126
        %v3128 = vpop.f32.mrf.mxu0
        %3129 = vdwg.mxu0
        %3130 = vmatprep.subr.mxu0 0.0
        %3131 = vmatpush1.msra.mxu0 0.0
        %3132 = vmatprep.subr.mxu0 0.0
        %3133 = vmatpush1.msra.mxu0 0.0
        %3134 = vmatprep.subr.mxu0 0.0
        %3135 = vmatpush1.msra.mxu0 0.0
        %3136 = vmatprep.subr.mxu0 0.0
        %3137 = vmatpush1.msra.mxu0 0.0
        %3138 = vmatprep.subr.mxu0 0.0
        %3139 = vmatpush1.msra.mxu0 0.0
        %3140 = vmatprep.subr.mxu0 0.0
        %3141 = vmatpush1.msra.mxu0 0.0
        %3142 = vmatprep.subr.mxu0 0.0
        %3143 = vmatpush1.msra.mxu0 0.0
        %3144 = vmatprep.subr.mxu0 0.0
        %3145 = vmatpush1.msra.mxu0 0.0
        %3146 = vmatprep.subr.mxu0 0.0
        %3147 = vmatpush1.msra.mxu0 %v2097
        %3148 = vmatprep.subr.mxu0 0.0
        %3149 = vmatpush1.msra.mxu0 %v2096
        %3150 = vmatprep.subr.mxu0 0.0
        %3151 = vmatpush1.msra.mxu0 %v2095
        %3152 = vmatprep.subr.mxu0 0.0
        %3153 = vmatpush1.msra.mxu0 %v2094
        %3154 = vmatprep.subr.mxu0 0.0
        %3155 = vmatpush1.msra.mxu0 %v2093
        %3156 = vmatprep.subr.mxu0 0.0
        %3157 = vmatpush1.msra.mxu0 %v2092
        %3158 = vmatprep.subr.mxu0 0.0
        %3159 = vmatpush1.msra.mxu0 %v2091
        %3160 = vmatprep.subr.mxu0 0.0
        %3161 = vmatpush1.msra.mxu0 %v2090
        %3162 = vmatprep.subr.mxu0 0.0
        %3163 = vmatpush2.msra.mxu0 0.0
        %3164 = vmatprep.subr.mxu0 0.0
        %3165 = vmatpush2.msra.mxu0 0.0
        %3166 = vmatprep.subr.mxu0 0.0
        %3167 = vmatpush2.msra.mxu0 0.0
        %3168 = vmatprep.subr.mxu0 0.0
        %3169 = vmatpush2.msra.mxu0 0.0
        %3170 = vmatprep.subr.mxu0 0.0
        %3171 = vmatpush2.msra.mxu0 0.0
        %3172 = vmatprep.subr.mxu0 0.0
        %3173 = vmatpush2.msra.mxu0 0.0
        %3174 = vmatprep.subr.mxu0 0.0
        %3175 = vmatpush2.msra.mxu0 0.0
        %3176 = vmatprep.subr.mxu0 0.0
        %3177 = vmatpush2.msra.mxu0 0.0
        %3178 = vmatprep.subr.mxu0 0.0
        %3179 = vmatpush2.msra.mxu0 0.0
        %3180 = vmatprep.subr.mxu0 0.0
        %3181 = vmatpush2.msra.mxu0 0.0
        %3182 = vmatprep.subr.mxu0 0.0
        %3183 = vmatpush2.msra.mxu0 0.0
        %3184 = vmatprep.subr.mxu0 0.0
        %3185 = vmatpush2.msra.mxu0 0.0
        %3186 = vmatprep.subr.mxu0 0.0
        %3187 = vmatpush2.msra.mxu0 0.0
        %3188 = vmatprep.subr.mxu0 0.0
        %3189 = vmatpush2.msra.mxu0 0.0
        %3190 = vmatprep.subr.mxu0 0.0
        %3191 = vmatpush2.msra.mxu0 0.0
        %3192 = vmatprep.subr.mxu0 0.0
        %3193 = vmatpush2.msra.mxu0 0.0
        %3194 = vmatprep.mubr.f32.mxu0 0.0
        %3195 = vmatmul.mubr.f32.gmra.mxu0 %v2981
        %v3196 = vpop.f32.mrf.mxu0
        %v3197 = vadd.f32 %v3127, %v3196
        %v3198 = vpop.f32.mrf.mxu0
        %3199 = vdwg.mxu0
        %v3200 = vadd.f32 %v3197, %v2251
        %v3201 = vxor.u32 %v3200, 2147483648
        %v3202 = vmul.f32 %v3201, 1.442695
        %v3203 = vpow.pop %v3202
        %v3204 = vadd.f32 %v3203, 1.0
        %v3205 = vrcp.pop %v3204
        %v3206 = vmul.f32 1.0, %v3205
        %3207 = vmatprep.subr.mxu0 0.0
        %3208 = vmatpush1.msra.mxu0 0.0
        %3209 = vmatprep.subr.mxu0 0.0
        %3210 = vmatpush1.msra.mxu0 0.0
        %3211 = vmatprep.subr.mxu0 0.0
        %3212 = vmatpush1.msra.mxu0 0.0
        %3213 = vmatprep.subr.mxu0 0.0
        %3214 = vmatpush1.msra.mxu0 0.0
        %3215 = vmatprep.subr.mxu0 0.0
        %3216 = vmatpush1.msra.mxu0 0.0
        %3217 = vmatprep.subr.mxu0 0.0
        %3218 = vmatpush1.msra.mxu0 0.0
        %3219 = vmatprep.subr.mxu0 0.0
        %3220 = vmatpush1.msra.mxu0 0.0
        %3221 = vmatprep.subr.mxu0 0.0
        %3222 = vmatpush1.msra.mxu0 0.0
        %3223 = vmatprep.subr.mxu0 0.0
        %3224 = vmatpush1.msra.mxu0 %v2267
        %3225 = vmatprep.subr.mxu0 0.0
        %3226 = vmatpush1.msra.mxu0 %v2266
        %3227 = vmatprep.subr.mxu0 0.0
        %3228 = vmatpush1.msra.mxu0 %v2265
        %3229 = vmatprep.subr.mxu0 0.0
        %3230 = vmatpush1.msra.mxu0 %v2264
        %3231 = vmatprep.subr.mxu0 0.0
        %3232 = vmatpush1.msra.mxu0 %v2263
        %3233 = vmatprep.subr.mxu0 0.0
        %3234 = vmatpush1.msra.mxu0 %v2262
        %3235 = vmatprep.subr.mxu0 0.0
        %3236 = vmatpush1.msra.mxu0 %v2261
        %3237 = vmatprep.subr.mxu0 0.0
        %3238 = vmatpush1.msra.mxu0 %v2260
        %3239 = vmatprep.subr.mxu0 0.0
        %3240 = vmatpush2.msra.mxu0 0.0
        %3241 = vmatprep.subr.mxu0 0.0
        %3242 = vmatpush2.msra.mxu0 0.0
        %3243 = vmatprep.subr.mxu0 0.0
        %3244 = vmatpush2.msra.mxu0 0.0
        %3245 = vmatprep.subr.mxu0 0.0
        %3246 = vmatpush2.msra.mxu0 0.0
        %3247 = vmatprep.subr.mxu0 0.0
        %3248 = vmatpush2.msra.mxu0 0.0
        %3249 = vmatprep.subr.mxu0 0.0
        %3250 = vmatpush2.msra.mxu0 0.0
        %3251 = vmatprep.subr.mxu0 0.0
        %3252 = vmatpush2.msra.mxu0 0.0
        %3253 = vmatprep.subr.mxu0 0.0
        %3254 = vmatpush2.msra.mxu0 0.0
        %3255 = vmatprep.subr.mxu0 0.0
        %3256 = vmatpush2.msra.mxu0 0.0
        %3257 = vmatprep.subr.mxu0 0.0
        %3258 = vmatpush2.msra.mxu0 0.0
        %3259 = vmatprep.subr.mxu0 0.0
        %3260 = vmatpush2.msra.mxu0 0.0
        %3261 = vmatprep.subr.mxu0 0.0
        %3262 = vmatpush2.msra.mxu0 0.0
        %3263 = vmatprep.subr.mxu0 0.0
        %3264 = vmatpush2.msra.mxu0 0.0
        %3265 = vmatprep.subr.mxu0 0.0
        %3266 = vmatpush2.msra.mxu0 0.0
        %3267 = vmatprep.subr.mxu0 0.0
        %3268 = vmatpush2.msra.mxu0 0.0
        %3269 = vmatprep.subr.mxu0 0.0
        %3270 = vmatpush2.msra.mxu0 0.0
        %3271 = vmatprep.mubr.f32.mxu0 0.0
        %3272 = vmatmul.mubr.f32.gmra.mxu0 %v2981
        %v3273 = vpop.f32.mrf.mxu0
        %v3274 = vadd.f32 %v2273, %v3273
        %v3275 = vpop.f32.mrf.mxu0
        %3276 = vdwg.mxu0
        %3277 = vmatprep.subr.mxu0 0.0
        %3278 = vmatpush1.msra.mxu0 0.0
        %3279 = vmatprep.subr.mxu0 0.0
        %3280 = vmatpush1.msra.mxu0 0.0
        %3281 = vmatprep.subr.mxu0 0.0
        %3282 = vmatpush1.msra.mxu0 0.0
        %3283 = vmatprep.subr.mxu0 0.0
        %3284 = vmatpush1.msra.mxu0 0.0
        %3285 = vmatprep.subr.mxu0 0.0
        %3286 = vmatpush1.msra.mxu0 0.0
        %3287 = vmatprep.subr.mxu0 0.0
        %3288 = vmatpush1.msra.mxu0 0.0
        %3289 = vmatprep.subr.mxu0 0.0
        %3290 = vmatpush1.msra.mxu0 0.0
        %3291 = vmatprep.subr.mxu0 0.0
        %3292 = vmatpush1.msra.mxu0 0.0
        %3293 = vmatprep.subr.mxu0 0.0
        %3294 = vmatpush1.msra.mxu0 %v2352
        %3295 = vmatprep.subr.mxu0 0.0
        %3296 = vmatpush1.msra.mxu0 %v2351
        %3297 = vmatprep.subr.mxu0 0.0
        %3298 = vmatpush1.msra.mxu0 %v2350
        %3299 = vmatprep.subr.mxu0 0.0
        %3300 = vmatpush1.msra.mxu0 %v2349
        %3301 = vmatprep.subr.mxu0 0.0
        %3302 = vmatpush1.msra.mxu0 %v2348
        %3303 = vmatprep.subr.mxu0 0.0
        %3304 = vmatpush1.msra.mxu0 %v2347
        %3305 = vmatprep.subr.mxu0 0.0
        %3306 = vmatpush1.msra.mxu0 %v2346
        %3307 = vmatprep.subr.mxu0 0.0
        %3308 = vmatpush1.msra.mxu0 %v2345
        %3309 = vmatprep.subr.mxu0 0.0
        %3310 = vmatpush2.msra.mxu0 0.0
        %3311 = vmatprep.subr.mxu0 0.0
        %3312 = vmatpush2.msra.mxu0 0.0
        %3313 = vmatprep.subr.mxu0 0.0
        %3314 = vmatpush2.msra.mxu0 0.0
        %3315 = vmatprep.subr.mxu0 0.0
        %3316 = vmatpush2.msra.mxu0 0.0
        %3317 = vmatprep.subr.mxu0 0.0
        %3318 = vmatpush2.msra.mxu0 0.0
        %3319 = vmatprep.subr.mxu0 0.0
        %3320 = vmatpush2.msra.mxu0 0.0
        %3321 = vmatprep.subr.mxu0 0.0
        %3322 = vmatpush2.msra.mxu0 0.0
        %3323 = vmatprep.subr.mxu0 0.0
        %3324 = vmatpush2.msra.mxu0 0.0
        %3325 = vmatprep.subr.mxu0 0.0
        %3326 = vmatpush2.msra.mxu0 0.0
        %3327 = vmatprep.subr.mxu0 0.0
        %3328 = vmatpush2.msra.mxu0 0.0
        %3329 = vmatprep.subr.mxu0 0.0
        %3330 = vmatpush2.msra.mxu0 0.0
        %3331 = vmatprep.subr.mxu0 0.0
        %3332 = vmatpush2.msra.mxu0 0.0
        %3333 = vmatprep.subr.mxu0 0.0
        %3334 = vmatpush2.msra.mxu0 0.0
        %3335 = vmatprep.subr.mxu0 0.0
        %3336 = vmatpush2.msra.mxu0 0.0
        %3337 = vmatprep.subr.mxu0 0.0
        %3338 = vmatpush2.msra.mxu0 0.0
        %3339 = vmatprep.subr.mxu0 0.0
        %3340 = vmatpush2.msra.mxu0 0.0
        %3341 = vmatprep.mubr.f32.mxu0 0.0
        %3342 = vmatmul.mubr.f32.gmra.mxu0 %v2908
        %v3343 = vpop.f32.mrf.mxu0
        %v3344 = vadd.f32 %v2358, %v3343
        %v3345 = vpop.f32.mrf.mxu0
        %3346 = vdwg.mxu0
        %v3347 = vmul.f32 %v3059, %v3344
        %v3348 = vadd.f32 %v3274, %v3347
        %v3349 = vtanh.pop %v3348
        %v3350 = vsub.f32 1.0, %v3206
        %v3351 = vmul.f32 %v3350, %v3349
        %v3352 = vmul.f32 %v3206, %v2649
        %v3353 = vadd.f32 %v3351, %v3352
        %v3354 = vsel %vm1580, %v3353, 0.0
        %3355 = vadd.xlane.f32.xlu0 %v3354
        %v3356 = vpop.xlane.xlu0 %3355
        %v3357 = vmul.f32 %v3356, %v1005
        %v3358 = vsub.f32 %v3353, %v3357
        %v3359 = vmul.f32 %v3358, %v3358
        %v3360 = vsel %vm1580, %v3359, 0.0
        %3361 = vadd.xlane.f32.xlu0 %v3360
        %v3362 = vpop.xlane.xlu0 %3361
        %v3363 = vmul.f32 %v3362, %v1005
        %v3364 = vadd.f32 %v3363, 1e-05
        %v3365 = vrsqrt.pop %v3364
        %v3366 = vmul.f32 %v3358, %v3365
        %v3367 = vmul.f32 %v3366, %v2456
        %v3368 = vadd.f32 %v3367, %v2463
        %v3370 = vsel %vm956, %v3368, 0
        %3372 = vmatprep.subr.mxu0 0.0
        %3373 = vmatpush1.msra.mxu0 0.0
        %3374 = vmatprep.subr.mxu0 0.0
        %3375 = vmatpush1.msra.mxu0 0.0
        %3376 = vmatprep.subr.mxu0 0.0
        %3377 = vmatpush1.msra.mxu0 0.0
        %3378 = vmatprep.subr.mxu0 0.0
        %3379 = vmatpush1.msra.mxu0 0.0
        %3380 = vmatprep.subr.mxu0 0.0
        %3381 = vmatpush1.msra.mxu0 0.0
        %3382 = vmatprep.subr.mxu0 0.0
        %3383 = vmatpush1.msra.mxu0 0.0
        %3384 = vmatprep.subr.mxu0 0.0
        %3385 = vmatpush1.msra.mxu0 0.0
        %3386 = vmatprep.subr.mxu0 0.0
        %3387 = vmatpush1.msra.mxu0 0.0
        %3388 = vmatprep.subr.mxu0 0.0
        %3389 = vmatpush1.msra.mxu0 %v2473
        %3390 = vmatprep.subr.mxu0 0.0
        %3391 = vmatpush1.msra.mxu0 %v2472
        %3392 = vmatprep.subr.mxu0 0.0
        %3393 = vmatpush1.msra.mxu0 %v2471
        %3394 = vmatprep.subr.mxu0 0.0
        %3395 = vmatpush1.msra.mxu0 %v2470
        %3396 = vmatprep.subr.mxu0 0.0
        %3397 = vmatpush1.msra.mxu0 %v2469
        %3398 = vmatprep.subr.mxu0 0.0
        %3399 = vmatpush1.msra.mxu0 %v2468
        %3400 = vmatprep.subr.mxu0 0.0
        %3401 = vmatpush1.msra.mxu0 %v2467
        %3402 = vmatprep.subr.mxu0 0.0
        %3403 = vmatpush1.msra.mxu0 %v2466
        %3404 = vmatprep.subr.mxu0 0.0
        %3405 = vmatpush2.msra.mxu0 0.0
        %3406 = vmatprep.subr.mxu0 0.0
        %3407 = vmatpush2.msra.mxu0 0.0
        %3408 = vmatprep.subr.mxu0 0.0
        %3409 = vmatpush2.msra.mxu0 0.0
        %3410 = vmatprep.subr.mxu0 0.0
        %3411 = vmatpush2.msra.mxu0 0.0
        %3412 = vmatprep.subr.mxu0 0.0
        %3413 = vmatpush2.msra.mxu0 0.0
        %3414 = vmatprep.subr.mxu0 0.0
        %3415 = vmatpush2.msra.mxu0 0.0
        %3416 = vmatprep.subr.mxu0 0.0
        %3417 = vmatpush2.msra.mxu0 0.0
        %3418 = vmatprep.subr.mxu0 0.0
        %3419 = vmatpush2.msra.mxu0 0.0
        %3420 = vmatprep.subr.mxu0 0.0
        %3421 = vmatpush2.msra.mxu0 0.0
        %3422 = vmatprep.subr.mxu0 0.0
        %3423 = vmatpush2.msra.mxu0 0.0
        %3424 = vmatprep.subr.mxu0 0.0
        %3425 = vmatpush2.msra.mxu0 0.0
        %3426 = vmatprep.subr.mxu0 0.0
        %3427 = vmatpush2.msra.mxu0 0.0
        %3428 = vmatprep.subr.mxu0 0.0
        %3429 = vmatpush2.msra.mxu0 0.0
        %3430 = vmatprep.subr.mxu0 0.0
        %3431 = vmatpush2.msra.mxu0 0.0
        %3432 = vmatprep.subr.mxu0 0.0
        %3433 = vmatpush2.msra.mxu0 0.0
        %3434 = vmatprep.subr.mxu0 0.0
        %3435 = vmatpush2.msra.mxu0 0.0
        %3436 = vmatprep.mubr.f32.mxu0 0.0
        %3437 = vmatmul.mubr.f32.gmra.mxu0 %v3370
        %v3438 = vpop.f32.mrf.mxu0
        %v3439 = vadd.f32 %v2479, %v3438
        %v3440 = vpop.f32.mrf.mxu0
        %3441 = vdwg.mxu0
        %v3442 = vmax.f32 %v3439, 0.0
        %3443 = vmatprep.subr.mxu0 0.0
        %3444 = vmatpush1.msra.mxu0 %v2570
        %3445 = vmatprep.subr.mxu0 0.0
        %3446 = vmatpush1.msra.mxu0 %v2569
        %3447 = vmatprep.subr.mxu0 0.0
        %3448 = vmatpush1.msra.mxu0 %v2568
        %3449 = vmatprep.subr.mxu0 0.0
        %3450 = vmatpush1.msra.mxu0 %v2567
        %3451 = vmatprep.subr.mxu0 0.0
        %3452 = vmatpush1.msra.mxu0 %v2566
        %3453 = vmatprep.subr.mxu0 0.0
        %3454 = vmatpush1.msra.mxu0 %v2565
        %3455 = vmatprep.subr.mxu0 0.0
        %3456 = vmatpush1.msra.mxu0 %v2564
        %3457 = vmatprep.subr.mxu0 0.0
        %3458 = vmatpush1.msra.mxu0 %v2563
        %3459 = vmatprep.subr.mxu0 0.0
        %3460 = vmatpush1.msra.mxu0 %v2562
        %3461 = vmatprep.subr.mxu0 0.0
        %3462 = vmatpush1.msra.mxu0 %v2561
        %3463 = vmatprep.subr.mxu0 0.0
        %3464 = vmatpush1.msra.mxu0 %v2560
        %3465 = vmatprep.subr.mxu0 0.0
        %3466 = vmatpush1.msra.mxu0 %v2559
        %3467 = vmatprep.subr.mxu0 0.0
        %3468 = vmatpush1.msra.mxu0 %v2558
        %3469 = vmatprep.subr.mxu0 0.0
        %3470 = vmatpush1.msra.mxu0 %v2557
        %3471 = vmatprep.subr.mxu0 0.0
        %3472 = vmatpush1.msra.mxu0 %v2556
        %3473 = vmatprep.subr.mxu0 0.0
        %3474 = vmatpush1.msra.mxu0 %v2555
        %3475 = vmatprep.subr.mxu0 0.0
        %3476 = vmatpush2.msra.mxu0 0.0
        %3477 = vmatprep.subr.mxu0 0.0
        %3478 = vmatpush2.msra.mxu0 0.0
        %3479 = vmatprep.subr.mxu0 0.0
        %3480 = vmatpush2.msra.mxu0 0.0
        %3481 = vmatprep.subr.mxu0 0.0
        %3482 = vmatpush2.msra.mxu0 0.0
        %3483 = vmatprep.subr.mxu0 0.0
        %3484 = vmatpush2.msra.mxu0 0.0
        %3485 = vmatprep.subr.mxu0 0.0
        %3486 = vmatpush2.msra.mxu0 0.0
        %3487 = vmatprep.subr.mxu0 0.0
        %3488 = vmatpush2.msra.mxu0 0.0
        %3489 = vmatprep.subr.mxu0 0.0
        %3490 = vmatpush2.msra.mxu0 0.0
        %3491 = vmatprep.subr.mxu0 0.0
        %3492 = vmatpush2.msra.mxu0 0.0
        %3493 = vmatprep.subr.mxu0 0.0
        %3494 = vmatpush2.msra.mxu0 0.0
        %3495 = vmatprep.subr.mxu0 0.0
        %3496 = vmatpush2.msra.mxu0 0.0
        %3497 = vmatprep.subr.mxu0 0.0
        %3498 = vmatpush2.msra.mxu0 0.0
        %3499 = vmatprep.subr.mxu0 0.0
        %3500 = vmatpush2.msra.mxu0 0.0
        %3501 = vmatprep.subr.mxu0 0.0
        %3502 = vmatpush2.msra.mxu0 0.0
        %3503 = vmatprep.subr.mxu0 0.0
        %3504 = vmatpush2.msra.mxu0 0.0
        %3505 = vmatprep.subr.mxu0 0.0
        %3506 = vmatpush2.msra.mxu0 0.0
        %3507 = vmatprep.mubr.f32.mxu0 0.0
        %3508 = vmatmul.mubr.f32.gmra.mxu0 %v3442
        %v3509 = vpop.f32.mrf.mxu0
        %v3510 = vadd.f32 0.0, %v3509
        %v3511 = vpop.f32.mrf.mxu0
        %3512 = vdwg.mxu0
        %v3513 = vadd.f32 %v3353, %v3510
        %v3514 = vadd.f32 %v3513, %v2647
        %v3515 = vsel %vm1580, %v3514, 0.0
        %3516 = vadd.xlane.f32.xlu0 %v3515
        %v3517 = vpop.xlane.xlu0 %3516
        %v3518 = vmul.f32 %v3517, %v1005
        %v3519 = vsub.f32 %v3514, %v3518
        %v3520 = vmul.f32 %v3519, %v3519
        %v3521 = vsel %vm1580, %v3520, 0.0
        %3522 = vadd.xlane.f32.xlu0 %v3521
        %v3523 = vpop.xlane.xlu0 %3522
        %v3524 = vmul.f32 %v3523, %v1005
        %v3525 = vadd.f32 %v3524, 1e-05
        %v3526 = vrsqrt.pop %v3525
        %v3527 = vmul.f32 %v3519, %v3526
        %v3528 = vmul.f32 %v3527, %v1598
        %v3529 = vadd.f32 %v3528, %v1605
        %v3531 = vsel %vm956, %v3529, 0
        %3533 = vmatprep.subr.mxu0 0.0
        %3534 = vmatpush1.msra.mxu0 0.0
        %3535 = vmatprep.subr.mxu0 0.0
        %3536 = vmatpush1.msra.mxu0 0.0
        %3537 = vmatprep.subr.mxu0 0.0
        %3538 = vmatpush1.msra.mxu0 0.0
        %3539 = vmatprep.subr.mxu0 0.0
        %3540 = vmatpush1.msra.mxu0 0.0
        %3541 = vmatprep.subr.mxu0 0.0
        %3542 = vmatpush1.msra.mxu0 0.0
        %3543 = vmatprep.subr.mxu0 0.0
        %3544 = vmatpush1.msra.mxu0 0.0
        %3545 = vmatprep.subr.mxu0 0.0
        %3546 = vmatpush1.msra.mxu0 0.0
        %3547 = vmatprep.subr.mxu0 0.0
        %3548 = vmatpush1.msra.mxu0 0.0
        %3549 = vmatprep.subr.mxu0 0.0
        %3550 = vmatpush1.msra.mxu0 %v1615
        %3551 = vmatprep.subr.mxu0 0.0
        %3552 = vmatpush1.msra.mxu0 %v1614
        %3553 = vmatprep.subr.mxu0 0.0
        %3554 = vmatpush1.msra.mxu0 %v1613
        %3555 = vmatprep.subr.mxu0 0.0
        %3556 = vmatpush1.msra.mxu0 %v1612
        %3557 = vmatprep.subr.mxu0 0.0
        %3558 = vmatpush1.msra.mxu0 %v1611
        %3559 = vmatprep.subr.mxu0 0.0
        %3560 = vmatpush1.msra.mxu0 %v1610
        %3561 = vmatprep.subr.mxu0 0.0
        %3562 = vmatpush1.msra.mxu0 %v1609
        %3563 = vmatprep.subr.mxu0 0.0
        %3564 = vmatpush1.msra.mxu0 %v1608
        %3565 = vmatprep.subr.mxu0 0.0
        %3566 = vmatpush2.msra.mxu0 0.0
        %3567 = vmatprep.subr.mxu0 0.0
        %3568 = vmatpush2.msra.mxu0 0.0
        %3569 = vmatprep.subr.mxu0 0.0
        %3570 = vmatpush2.msra.mxu0 0.0
        %3571 = vmatprep.subr.mxu0 0.0
        %3572 = vmatpush2.msra.mxu0 0.0
        %3573 = vmatprep.subr.mxu0 0.0
        %3574 = vmatpush2.msra.mxu0 0.0
        %3575 = vmatprep.subr.mxu0 0.0
        %3576 = vmatpush2.msra.mxu0 0.0
        %3577 = vmatprep.subr.mxu0 0.0
        %3578 = vmatpush2.msra.mxu0 0.0
        %3579 = vmatprep.subr.mxu0 0.0
        %3580 = vmatpush2.msra.mxu0 0.0
        %3581 = vmatprep.subr.mxu0 0.0
        %3582 = vmatpush2.msra.mxu0 0.0
        %3583 = vmatprep.subr.mxu0 0.0
        %3584 = vmatpush2.msra.mxu0 0.0
        %3585 = vmatprep.subr.mxu0 0.0
        %3586 = vmatpush2.msra.mxu0 0.0
        %3587 = vmatprep.subr.mxu0 0.0
        %3588 = vmatpush2.msra.mxu0 0.0
        %3589 = vmatprep.subr.mxu0 0.0
        %3590 = vmatpush2.msra.mxu0 0.0
        %3591 = vmatprep.subr.mxu0 0.0
        %3592 = vmatpush2.msra.mxu0 0.0
        %3593 = vmatprep.subr.mxu0 0.0
        %3594 = vmatpush2.msra.mxu0 0.0
        %3595 = vmatprep.subr.mxu0 0.0
        %3596 = vmatpush2.msra.mxu0 0.0
        %3597 = vmatprep.mubr.f32.mxu0 0.0
        %3598 = vmatmul.mubr.f32.gmra.mxu0 %v3531
        %v3599 = vpop.f32.mrf.mxu0
        %v3600 = vadd.f32 %v1621, %v3599
        %v3601 = vpop.f32.mrf.mxu0
        %3602 = vdwg.mxu0
        %v3604 = vsel %vm956, %v3600, 0
        %3606 = vmatprep.subr.mxu0 0.0
        %3607 = vmatpush1.xpose.msra.mxu0 %v1745
        %3608 = vmatprep.subr.mxu0 0.0
        %3609 = vmatpush1.xpose.msra.mxu0 %v1742
        %3610 = vmatprep.subr.mxu0 0.0
        %3611 = vmatpush1.xpose.msra.mxu0 %v1739
        %3612 = vmatprep.subr.mxu0 0.0
        %3613 = vmatpush1.xpose.msra.mxu0 %v1736
        %3614 = vmatprep.subr.mxu0 0.0
        %3615 = vmatpush1.xpose.msra.mxu0 %v1733
        %3616 = vmatprep.subr.mxu0 0.0
        %3617 = vmatpush1.xpose.msra.mxu0 %v1730
        %3618 = vmatprep.subr.mxu0 0.0
        %3619 = vmatpush1.xpose.msra.mxu0 %v1727
        %3620 = vmatprep.subr.mxu0 0.0
        %3621 = vmatpush1.xpose.msra.mxu0 %v1724
        %3622 = vmatprep.subr.mxu0 0.0
        %3623 = vmatpush1.xpose.msra.mxu0 %v1721
        %3624 = vmatprep.subr.mxu0 0.0
        %3625 = vmatpush1.xpose.msra.mxu0 %v1718
        %3626 = vmatprep.subr.mxu0 0.0
        %3627 = vmatpush1.xpose.msra.mxu0 %v1715
        %3628 = vmatprep.subr.mxu0 0.0
        %3629 = vmatpush1.xpose.msra.mxu0 %v1712
        %3630 = vmatprep.subr.mxu0 0.0
        %3631 = vmatpush1.xpose.msra.mxu0 %v1709
        %3632 = vmatprep.subr.mxu0 0.0
        %3633 = vmatpush1.xpose.msra.mxu0 %v1706
        %3634 = vmatprep.subr.mxu0 0.0
        %3635 = vmatpush1.xpose.msra.mxu0 %v1703
        %3636 = vmatprep.subr.mxu0 0.0
        %3637 = vmatpush1.xpose.msra.mxu0 %v1700
        %3638 = vmatprep.subr.mxu0 0.0
        %3639 = vmatpush2.xpose.msra.mxu0 0.0
        %3640 = vmatprep.subr.mxu0 0.0
        %3641 = vmatpush2.xpose.msra.mxu0 0.0
        %3642 = vmatprep.subr.mxu0 0.0
        %3643 = vmatpush2.xpose.msra.mxu0 0.0
        %3644 = vmatprep.subr.mxu0 0.0
        %3645 = vmatpush2.xpose.msra.mxu0 0.0
        %3646 = vmatprep.subr.mxu0 0.0
        %3647 = vmatpush2.xpose.msra.mxu0 0.0
        %3648 = vmatprep.subr.mxu0 0.0
        %3649 = vmatpush2.xpose.msra.mxu0 0.0
        %3650 = vmatprep.subr.mxu0 0.0
        %3651 = vmatpush2.xpose.msra.mxu0 0.0
        %3652 = vmatprep.subr.mxu0 0.0
        %3653 = vmatpush2.xpose.msra.mxu0 0.0
        %3654 = vmatprep.subr.mxu0 0.0
        %3655 = vmatpush2.xpose.msra.mxu0 0.0
        %3656 = vmatprep.subr.mxu0 0.0
        %3657 = vmatpush2.xpose.msra.mxu0 0.0
        %3658 = vmatprep.subr.mxu0 0.0
        %3659 = vmatpush2.xpose.msra.mxu0 0.0
        %3660 = vmatprep.subr.mxu0 0.0
        %3661 = vmatpush2.xpose.msra.mxu0 0.0
        %3662 = vmatprep.subr.mxu0 0.0
        %3663 = vmatpush2.xpose.msra.mxu0 0.0
        %3664 = vmatprep.subr.mxu0 0.0
        %3665 = vmatpush2.xpose.msra.mxu0 0.0
        %3666 = vmatprep.subr.mxu0 0.0
        %3667 = vmatpush2.xpose.msra.mxu0 0.0
        %3668 = vmatprep.subr.mxu0 0.0
        %3669 = vmatpush2.xpose.msra.mxu0 0.0
        %3670 = vmatprep.mubr.f32.mxu0 0.0
        %3671 = vmatmul.mubr.f32.gmra.mxu0 %v3604
        %v3672 = vpop.f32.mrf.mxu0
        %v3673 = vadd.f32 0.0, %v3672
        %v3674 = vpop.f32.mrf.mxu0
        %3675 = vdwg.mxu0
        %v3676 = vmul.f32 %v3673, 0.125
        %v3677 = vsel %vm1818, %v3676, -inf
        %v3678 = vrot.slane %v3677, 4
        %v3679 = vmax.f32 %v3677, %v3678
        %v3680 = vrot.slane %v3679, 2
        %v3681 = vmax.f32 %v3679, %v3680
        %v3682 = vrot.slane %v3681, 1
        %v3683 = vmax.f32 %v3681, %v3682
        %v3684 = vsub.f32 %v3676, %v3683
        %v3685 = vmul.f32 %v3684, 1.442695
        %v3686 = vpow.pop %v3685
        %v3687 = vsel %vm1818, %v3686, 0.0
        %v3688 = vrot.slane %v3687, 4
        %v3689 = vadd.f32 %v3687, %v3688
        %v3690 = vrot.slane %v3689, 2
        %v3691 = vadd.f32 %v3689, %v3690
        %v3692 = vrot.slane %v3691, 1
        %v3693 = vadd.f32 %v3691, %v3692
        %v3694 = vrcp.pop %v3693
        %v3695 = vmul.f32 %v3686, %v3694
        %v3696 = vadd.f32 %v3695, 1e-08
        %v3697 = vsel %vm1818, %v3696, 0.0
        %3698 = vadd.xlane.f32.xlu0 %v3697
        %v3699 = vpop.xlane.xlu0 %3698
        %v3700 = vrcp.pop %v3699
        %v3701 = vmul.f32 %v3696, %v3700
        %3702 = vmatprep.subr.mxu0 0.0
        %3703 = vmatpush1.msra.mxu0 %v1575
        %3704 = vmatprep.subr.mxu0 0.0
        %3705 = vmatpush1.msra.mxu0 %v1570
        %3706 = vmatprep.subr.mxu0 0.0
        %3707 = vmatpush1.msra.mxu0 %v1565
        %3708 = vmatprep.subr.mxu0 0.0
        %3709 = vmatpush1.msra.mxu0 %v1560
        %3710 = vmatprep.subr.mxu0 0.0
        %3711 = vmatpush1.msra.mxu0 %v1555
        %3712 = vmatprep.subr.mxu0 0.0
        %3713 = vmatpush1.msra.mxu0 %v1550
        %3714 = vmatprep.subr.mxu0 0.0
        %3715 = vmatpush1.msra.mxu0 %v1545
        %3716 = vmatprep.subr.mxu0 0.0
        %3717 = vmatpush1.msra.mxu0 %v1540
        %3718 = vmatprep.subr.mxu0 0.0
        %3719 = vmatpush1.msra.mxu0 %v1535
        %3720 = vmatprep.subr.mxu0 0.0
        %3721 = vmatpush1.msra.mxu0 %v1530
        %3722 = vmatprep.subr.mxu0 0.0
        %3723 = vmatpush1.msra.mxu0 %v1525
        %3724 = vmatprep.subr.mxu0 0.0
        %3725 = vmatpush1.msra.mxu0 %v1520
        %3726 = vmatprep.subr.mxu0 0.0
        %3727 = vmatpush1.msra.mxu0 %v1515
        %3728 = vmatprep.subr.mxu0 0.0
        %3729 = vmatpush1.msra.mxu0 %v1510
        %3730 = vmatprep.subr.mxu0 0.0
        %3731 = vmatpush1.msra.mxu0 %v1505
        %3732 = vmatprep.subr.mxu0 0.0
        %3733 = vmatpush1.msra.mxu0 %v1500
        %3734 = vmatprep.subr.mxu0 0.0
        %3735 = vmatpush2.msra.mxu0 0.0
        %3736 = vmatprep.subr.mxu0 0.0
        %3737 = vmatpush2.msra.mxu0 0.0
        %3738 = vmatprep.subr.mxu0 0.0
        %3739 = vmatpush2.msra.mxu0 0.0
        %3740 = vmatprep.subr.mxu0 0.0
        %3741 = vmatpush2.msra.mxu0 0.0
        %3742 = vmatprep.subr.mxu0 0.0
        %3743 = vmatpush2.msra.mxu0 0.0
        %3744 = vmatprep.subr.mxu0 0.0
        %3745 = vmatpush2.msra.mxu0 0.0
        %3746 = vmatprep.subr.mxu0 0.0
        %3747 = vmatpush2.msra.mxu0 0.0
        %3748 = vmatprep.subr.mxu0 0.0
        %3749 = vmatpush2.msra.mxu0 0.0
        %3750 = vmatprep.subr.mxu0 0.0
        %3751 = vmatpush2.msra.mxu0 0.0
        %3752 = vmatprep.subr.mxu0 0.0
        %3753 = vmatpush2.msra.mxu0 0.0
        %3754 = vmatprep.subr.mxu0 0.0
        %3755 = vmatpush2.msra.mxu0 0.0
        %3756 = vmatprep.subr.mxu0 0.0
        %3757 = vmatpush2.msra.mxu0 0.0
        %3758 = vmatprep.subr.mxu0 0.0
        %3759 = vmatpush2.msra.mxu0 0.0
        %3760 = vmatprep.subr.mxu0 0.0
        %3761 = vmatpush2.msra.mxu0 0.0
        %3762 = vmatprep.subr.mxu0 0.0
        %3763 = vmatpush2.msra.mxu0 0.0
        %3764 = vmatprep.subr.mxu0 0.0
        %3765 = vmatpush2.msra.mxu0 0.0
        %3766 = vmatprep.mubr.f32.mxu0 0.0
        %3767 = vmatmul.mubr.f32.gmra.mxu0 %v3701
        %v3768 = vpop.f32.mrf.mxu0
        %v3769 = vadd.f32 0.0, %v3768
        %v3770 = vpop.f32.mrf.mxu0
        %3771 = vdwg.mxu0
        %v3773 = vsel %vm956, %v3514, 0
        %3775 = vmatprep.subr.mxu0 0.0
        %3776 = vmatpush1.msra.mxu0 0.0
        %3777 = vmatprep.subr.mxu0 0.0
        %3778 = vmatpush1.msra.mxu0 0.0
        %3779 = vmatprep.subr.mxu0 0.0
        %3780 = vmatpush1.msra.mxu0 0.0
        %3781 = vmatprep.subr.mxu0 0.0
        %3782 = vmatpush1.msra.mxu0 0.0
        %3783 = vmatprep.subr.mxu0 0.0
        %3784 = vmatpush1.msra.mxu0 0.0
        %3785 = vmatprep.subr.mxu0 0.0
        %3786 = vmatpush1.msra.mxu0 0.0
        %3787 = vmatprep.subr.mxu0 0.0
        %3788 = vmatpush1.msra.mxu0 0.0
        %3789 = vmatprep.subr.mxu0 0.0
        %3790 = vmatpush1.msra.mxu0 0.0
        %3791 = vmatprep.subr.mxu0 0.0
        %3792 = vmatpush1.msra.mxu0 %v1929
        %3793 = vmatprep.subr.mxu0 0.0
        %3794 = vmatpush1.msra.mxu0 %v1928
        %3795 = vmatprep.subr.mxu0 0.0
        %3796 = vmatpush1.msra.mxu0 %v1927
        %3797 = vmatprep.subr.mxu0 0.0
        %3798 = vmatpush1.msra.mxu0 %v1926
        %3799 = vmatprep.subr.mxu0 0.0
        %3800 = vmatpush1.msra.mxu0 %v1925
        %3801 = vmatprep.subr.mxu0 0.0
        %3802 = vmatpush1.msra.mxu0 %v1924
        %3803 = vmatprep.subr.mxu0 0.0
        %3804 = vmatpush1.msra.mxu0 %v1923
        %3805 = vmatprep.subr.mxu0 0.0
        %3806 = vmatpush1.msra.mxu0 %v1922
        %3807 = vmatprep.subr.mxu0 0.0
        %3808 = vmatpush2.msra.mxu0 0.0
        %3809 = vmatprep.subr.mxu0 0.0
        %3810 = vmatpush2.msra.mxu0 0.0
        %3811 = vmatprep.subr.mxu0 0.0
        %3812 = vmatpush2.msra.mxu0 0.0
        %3813 = vmatprep.subr.mxu0 0.0
        %3814 = vmatpush2.msra.mxu0 0.0
        %3815 = vmatprep.subr.mxu0 0.0
        %3816 = vmatpush2.msra.mxu0 0.0
        %3817 = vmatprep.subr.mxu0 0.0
        %3818 = vmatpush2.msra.mxu0 0.0
        %3819 = vmatprep.subr.mxu0 0.0
        %3820 = vmatpush2.msra.mxu0 0.0
        %3821 = vmatprep.subr.mxu0 0.0
        %3822 = vmatpush2.msra.mxu0 0.0
        %3823 = vmatprep.subr.mxu0 0.0
        %3824 = vmatpush2.msra.mxu0 0.0
        %3825 = vmatprep.subr.mxu0 0.0
        %3826 = vmatpush2.msra.mxu0 0.0
        %3827 = vmatprep.subr.mxu0 0.0
        %3828 = vmatpush2.msra.mxu0 0.0
        %3829 = vmatprep.subr.mxu0 0.0
        %3830 = vmatpush2.msra.mxu0 0.0
        %3831 = vmatprep.subr.mxu0 0.0
        %3832 = vmatpush2.msra.mxu0 0.0
        %3833 = vmatprep.subr.mxu0 0.0
        %3834 = vmatpush2.msra.mxu0 0.0
        %3835 = vmatprep.subr.mxu0 0.0
        %3836 = vmatpush2.msra.mxu0 0.0
        %3837 = vmatprep.subr.mxu0 0.0
        %3838 = vmatpush2.msra.mxu0 0.0
        %3839 = vmatprep.mubr.f32.mxu0 0.0
        %3840 = vmatmul.mubr.f32.gmra.mxu0 %v3773
        %v3841 = vpop.f32.mrf.mxu0
        %v3842 = vadd.f32 0.0, %v3841
        %v3843 = vpop.f32.mrf.mxu0
        %3844 = vdwg.mxu0
        %v3846 = vsel %vm956, %v3769, 0
        %3848 = vmatprep.subr.mxu0 0.0
        %3849 = vmatpush1.msra.mxu0 0.0
        %3850 = vmatprep.subr.mxu0 0.0
        %3851 = vmatpush1.msra.mxu0 0.0
        %3852 = vmatprep.subr.mxu0 0.0
        %3853 = vmatpush1.msra.mxu0 0.0
        %3854 = vmatprep.subr.mxu0 0.0
        %3855 = vmatpush1.msra.mxu0 0.0
        %3856 = vmatprep.subr.mxu0 0.0
        %3857 = vmatpush1.msra.mxu0 0.0
        %3858 = vmatprep.subr.mxu0 0.0
        %3859 = vmatpush1.msra.mxu0 0.0
        %3860 = vmatprep.subr.mxu0 0.0
        %3861 = vmatpush1.msra.mxu0 0.0
        %3862 = vmatprep.subr.mxu0 0.0
        %3863 = vmatpush1.msra.mxu0 0.0
        %3864 = vmatprep.subr.mxu0 0.0
        %3865 = vmatpush1.msra.mxu0 %v1921
        %3866 = vmatprep.subr.mxu0 0.0
        %3867 = vmatpush1.msra.mxu0 %v1920
        %3868 = vmatprep.subr.mxu0 0.0
        %3869 = vmatpush1.msra.mxu0 %v1919
        %3870 = vmatprep.subr.mxu0 0.0
        %3871 = vmatpush1.msra.mxu0 %v1918
        %3872 = vmatprep.subr.mxu0 0.0
        %3873 = vmatpush1.msra.mxu0 %v1917
        %3874 = vmatprep.subr.mxu0 0.0
        %3875 = vmatpush1.msra.mxu0 %v1916
        %3876 = vmatprep.subr.mxu0 0.0
        %3877 = vmatpush1.msra.mxu0 %v1915
        %3878 = vmatprep.subr.mxu0 0.0
        %3879 = vmatpush1.msra.mxu0 %v1914
        %3880 = vmatprep.subr.mxu0 0.0
        %3881 = vmatpush2.msra.mxu0 0.0
        %3882 = vmatprep.subr.mxu0 0.0
        %3883 = vmatpush2.msra.mxu0 0.0
        %3884 = vmatprep.subr.mxu0 0.0
        %3885 = vmatpush2.msra.mxu0 0.0
        %3886 = vmatprep.subr.mxu0 0.0
        %3887 = vmatpush2.msra.mxu0 0.0
        %3888 = vmatprep.subr.mxu0 0.0
        %3889 = vmatpush2.msra.mxu0 0.0
        %3890 = vmatprep.subr.mxu0 0.0
        %3891 = vmatpush2.msra.mxu0 0.0
        %3892 = vmatprep.subr.mxu0 0.0
        %3893 = vmatpush2.msra.mxu0 0.0
        %3894 = vmatprep.subr.mxu0 0.0
        %3895 = vmatpush2.msra.mxu0 0.0
        %3896 = vmatprep.subr.mxu0 0.0
        %3897 = vmatpush2.msra.mxu0 0.0
        %3898 = vmatprep.subr.mxu0 0.0
        %3899 = vmatpush2.msra.mxu0 0.0
        %3900 = vmatprep.subr.mxu0 0.0
        %3901 = vmatpush2.msra.mxu0 0.0
        %3902 = vmatprep.subr.mxu0 0.0
        %3903 = vmatpush2.msra.mxu0 0.0
        %3904 = vmatprep.subr.mxu0 0.0
        %3905 = vmatpush2.msra.mxu0 0.0
        %3906 = vmatprep.subr.mxu0 0.0
        %3907 = vmatpush2.msra.mxu0 0.0
        %3908 = vmatprep.subr.mxu0 0.0
        %3909 = vmatpush2.msra.mxu0 0.0
        %3910 = vmatprep.subr.mxu0 0.0
        %3911 = vmatpush2.msra.mxu0 0.0
        %3912 = vmatprep.mubr.f32.mxu0 0.0
        %3913 = vmatmul.mubr.f32.gmra.mxu0 %v3846
        %v3914 = vpop.f32.mrf.mxu0
        %v3915 = vadd.f32 %v3842, %v3914
        %v3916 = vpop.f32.mrf.mxu0
        %3917 = vdwg.mxu0
        %v3918 = vadd.f32 %v3915, %v2081
        %v3919 = vxor.u32 %v3918, 2147483648
        %v3920 = vmul.f32 %v3919, 1.442695
        %v3921 = vpow.pop %v3920
        %v3922 = vadd.f32 %v3921, 1.0
        %v3923 = vrcp.pop %v3922
        %v3924 = vmul.f32 1.0, %v3923
        %3925 = vmatprep.subr.mxu0 0.0
        %3926 = vmatpush1.msra.mxu0 0.0
        %3927 = vmatprep.subr.mxu0 0.0
        %3928 = vmatpush1.msra.mxu0 0.0
        %3929 = vmatprep.subr.mxu0 0.0
        %3930 = vmatpush1.msra.mxu0 0.0
        %3931 = vmatprep.subr.mxu0 0.0
        %3932 = vmatpush1.msra.mxu0 0.0
        %3933 = vmatprep.subr.mxu0 0.0
        %3934 = vmatpush1.msra.mxu0 0.0
        %3935 = vmatprep.subr.mxu0 0.0
        %3936 = vmatpush1.msra.mxu0 0.0
        %3937 = vmatprep.subr.mxu0 0.0
        %3938 = vmatpush1.msra.mxu0 0.0
        %3939 = vmatprep.subr.mxu0 0.0
        %3940 = vmatpush1.msra.mxu0 0.0
        %3941 = vmatprep.subr.mxu0 0.0
        %3942 = vmatpush1.msra.mxu0 %v2105
        %3943 = vmatprep.subr.mxu0 0.0
        %3944 = vmatpush1.msra.mxu0 %v2104
        %3945 = vmatprep.subr.mxu0 0.0
        %3946 = vmatpush1.msra.mxu0 %v2103
        %3947 = vmatprep.subr.mxu0 0.0
        %3948 = vmatpush1.msra.mxu0 %v2102
        %3949 = vmatprep.subr.mxu0 0.0
        %3950 = vmatpush1.msra.mxu0 %v2101
        %3951 = vmatprep.subr.mxu0 0.0
        %3952 = vmatpush1.msra.mxu0 %v2100
        %3953 = vmatprep.subr.mxu0 0.0
        %3954 = vmatpush1.msra.mxu0 %v2099
        %3955 = vmatprep.subr.mxu0 0.0
        %3956 = vmatpush1.msra.mxu0 %v2098
        %3957 = vmatprep.subr.mxu0 0.0
        %3958 = vmatpush2.msra.mxu0 0.0
        %3959 = vmatprep.subr.mxu0 0.0
        %3960 = vmatpush2.msra.mxu0 0.0
        %3961 = vmatprep.subr.mxu0 0.0
        %3962 = vmatpush2.msra.mxu0 0.0
        %3963 = vmatprep.subr.mxu0 0.0
        %3964 = vmatpush2.msra.mxu0 0.0
        %3965 = vmatprep.subr.mxu0 0.0
        %3966 = vmatpush2.msra.mxu0 0.0
        %3967 = vmatprep.subr.mxu0 0.0
        %3968 = vmatpush2.msra.mxu0 0.0
        %3969 = vmatprep.subr.mxu0 0.0
        %3970 = vmatpush2.msra.mxu0 0.0
        %3971 = vmatprep.subr.mxu0 0.0
        %3972 = vmatpush2.msra.mxu0 0.0
        %3973 = vmatprep.subr.mxu0 0.0
        %3974 = vmatpush2.msra.mxu0 0.0
        %3975 = vmatprep.subr.mxu0 0.0
        %3976 = vmatpush2.msra.mxu0 0.0
        %3977 = vmatprep.subr.mxu0 0.0
        %3978 = vmatpush2.msra.mxu0 0.0
        %3979 = vmatprep.subr.mxu0 0.0
        %3980 = vmatpush2.msra.mxu0 0.0
        %3981 = vmatprep.subr.mxu0 0.0
        %3982 = vmatpush2.msra.mxu0 0.0
        %3983 = vmatprep.subr.mxu0 0.0
        %3984 = vmatpush2.msra.mxu0 0.0
        %3985 = vmatprep.subr.mxu0 0.0
        %3986 = vmatpush2.msra.mxu0 0.0
        %3987 = vmatprep.subr.mxu0 0.0
        %3988 = vmatpush2.msra.mxu0 0.0
        %3989 = vmatprep.mubr.f32.mxu0 0.0
        %3990 = vmatmul.mubr.f32.gmra.mxu0 %v3773
        %v3991 = vpop.f32.mrf.mxu0
        %v3992 = vadd.f32 0.0, %v3991
        %v3993 = vpop.f32.mrf.mxu0
        %3994 = vdwg.mxu0
        %3995 = vmatprep.subr.mxu0 0.0
        %3996 = vmatpush1.msra.mxu0 0.0
        %3997 = vmatprep.subr.mxu0 0.0
        %3998 = vmatpush1.msra.mxu0 0.0
        %3999 = vmatprep.subr.mxu0 0.0
        %4000 = vmatpush1.msra.mxu0 0.0
        %4001 = vmatprep.subr.mxu0 0.0
        %4002 = vmatpush1.msra.mxu0 0.0
        %4003 = vmatprep.subr.mxu0 0.0
        %4004 = vmatpush1.msra.mxu0 0.0
        %4005 = vmatprep.subr.mxu0 0.0
        %4006 = vmatpush1.msra.mxu0 0.0
        %4007 = vmatprep.subr.mxu0 0.0
        %4008 = vmatpush1.msra.mxu0 0.0
        %4009 = vmatprep.subr.mxu0 0.0
        %4010 = vmatpush1.msra.mxu0 0.0
        %4011 = vmatprep.subr.mxu0 0.0
        %4012 = vmatpush1.msra.mxu0 %v2097
        %4013 = vmatprep.subr.mxu0 0.0
        %4014 = vmatpush1.msra.mxu0 %v2096
        %4015 = vmatprep.subr.mxu0 0.0
        %4016 = vmatpush1.msra.mxu0 %v2095
        %4017 = vmatprep.subr.mxu0 0.0
        %4018 = vmatpush1.msra.mxu0 %v2094
        %4019 = vmatprep.subr.mxu0 0.0
        %4020 = vmatpush1.msra.mxu0 %v2093
        %4021 = vmatprep.subr.mxu0 0.0
        %4022 = vmatpush1.msra.mxu0 %v2092
        %4023 = vmatprep.subr.mxu0 0.0
        %4024 = vmatpush1.msra.mxu0 %v2091
        %4025 = vmatprep.subr.mxu0 0.0
        %4026 = vmatpush1.msra.mxu0 %v2090
        %4027 = vmatprep.subr.mxu0 0.0
        %4028 = vmatpush2.msra.mxu0 0.0
        %4029 = vmatprep.subr.mxu0 0.0
        %4030 = vmatpush2.msra.mxu0 0.0
        %4031 = vmatprep.subr.mxu0 0.0
        %4032 = vmatpush2.msra.mxu0 0.0
        %4033 = vmatprep.subr.mxu0 0.0
        %4034 = vmatpush2.msra.mxu0 0.0
        %4035 = vmatprep.subr.mxu0 0.0
        %4036 = vmatpush2.msra.mxu0 0.0
        %4037 = vmatprep.subr.mxu0 0.0
        %4038 = vmatpush2.msra.mxu0 0.0
        %4039 = vmatprep.subr.mxu0 0.0
        %4040 = vmatpush2.msra.mxu0 0.0
        %4041 = vmatprep.subr.mxu0 0.0
        %4042 = vmatpush2.msra.mxu0 0.0
        %4043 = vmatprep.subr.mxu0 0.0
        %4044 = vmatpush2.msra.mxu0 0.0
        %4045 = vmatprep.subr.mxu0 0.0
        %4046 = vmatpush2.msra.mxu0 0.0
        %4047 = vmatprep.subr.mxu0 0.0
        %4048 = vmatpush2.msra.mxu0 0.0
        %4049 = vmatprep.subr.mxu0 0.0
        %4050 = vmatpush2.msra.mxu0 0.0
        %4051 = vmatprep.subr.mxu0 0.0
        %4052 = vmatpush2.msra.mxu0 0.0
        %4053 = vmatprep.subr.mxu0 0.0
        %4054 = vmatpush2.msra.mxu0 0.0
        %4055 = vmatprep.subr.mxu0 0.0
        %4056 = vmatpush2.msra.mxu0 0.0
        %4057 = vmatprep.subr.mxu0 0.0
        %4058 = vmatpush2.msra.mxu0 0.0
        %4059 = vmatprep.mubr.f32.mxu0 0.0
        %4060 = vmatmul.mubr.f32.gmra.mxu0 %v3846
        %v4061 = vpop.f32.mrf.mxu0
        %v4062 = vadd.f32 %v3992, %v4061
        %v4063 = vpop.f32.mrf.mxu0
        %4064 = vdwg.mxu0
        %v4065 = vadd.f32 %v4062, %v2251
        %v4066 = vxor.u32 %v4065, 2147483648
        %v4067 = vmul.f32 %v4066, 1.442695
        %v4068 = vpow.pop %v4067
        %v4069 = vadd.f32 %v4068, 1.0
        %v4070 = vrcp.pop %v4069
        %v4071 = vmul.f32 1.0, %v4070
        %4072 = vmatprep.subr.mxu0 0.0
        %4073 = vmatpush1.msra.mxu0 0.0
        %4074 = vmatprep.subr.mxu0 0.0
        %4075 = vmatpush1.msra.mxu0 0.0
        %4076 = vmatprep.subr.mxu0 0.0
        %4077 = vmatpush1.msra.mxu0 0.0
        %4078 = vmatprep.subr.mxu0 0.0
        %4079 = vmatpush1.msra.mxu0 0.0
        %4080 = vmatprep.subr.mxu0 0.0
        %4081 = vmatpush1.msra.mxu0 0.0
        %4082 = vmatprep.subr.mxu0 0.0
        %4083 = vmatpush1.msra.mxu0 0.0
        %4084 = vmatprep.subr.mxu0 0.0
        %4085 = vmatpush1.msra.mxu0 0.0
        %4086 = vmatprep.subr.mxu0 0.0
        %4087 = vmatpush1.msra.mxu0 0.0
        %4088 = vmatprep.subr.mxu0 0.0
        %4089 = vmatpush1.msra.mxu0 %v2267
        %4090 = vmatprep.subr.mxu0 0.0
        %4091 = vmatpush1.msra.mxu0 %v2266
        %4092 = vmatprep.subr.mxu0 0.0
        %4093 = vmatpush1.msra.mxu0 %v2265
        %4094 = vmatprep.subr.mxu0 0.0
        %4095 = vmatpush1.msra.mxu0 %v2264
        %4096 = vmatprep.subr.mxu0 0.0
        %4097 = vmatpush1.msra.mxu0 %v2263
        %4098 = vmatprep.subr.mxu0 0.0
        %4099 = vmatpush1.msra.mxu0 %v2262
        %4100 = vmatprep.subr.mxu0 0.0
        %4101 = vmatpush1.msra.mxu0 %v2261
        %4102 = vmatprep.subr.mxu0 0.0
        %4103 = vmatpush1.msra.mxu0 %v2260
        %4104 = vmatprep.subr.mxu0 0.0
        %4105 = vmatpush2.msra.mxu0 0.0
        %4106 = vmatprep.subr.mxu0 0.0
        %4107 = vmatpush2.msra.mxu0 0.0
        %4108 = vmatprep.subr.mxu0 0.0
        %4109 = vmatpush2.msra.mxu0 0.0
        %4110 = vmatprep.subr.mxu0 0.0
        %4111 = vmatpush2.msra.mxu0 0.0
        %4112 = vmatprep.subr.mxu0 0.0
        %4113 = vmatpush2.msra.mxu0 0.0
        %4114 = vmatprep.subr.mxu0 0.0
        %4115 = vmatpush2.msra.mxu0 0.0
        %4116 = vmatprep.subr.mxu0 0.0
        %4117 = vmatpush2.msra.mxu0 0.0
        %4118 = vmatprep.subr.mxu0 0.0
        %4119 = vmatpush2.msra.mxu0 0.0
        %4120 = vmatprep.subr.mxu0 0.0
        %4121 = vmatpush2.msra.mxu0 0.0
        %4122 = vmatprep.subr.mxu0 0.0
        %4123 = vmatpush2.msra.mxu0 0.0
        %4124 = vmatprep.subr.mxu0 0.0
        %4125 = vmatpush2.msra.mxu0 0.0
        %4126 = vmatprep.subr.mxu0 0.0
        %4127 = vmatpush2.msra.mxu0 0.0
        %4128 = vmatprep.subr.mxu0 0.0
        %4129 = vmatpush2.msra.mxu0 0.0
        %4130 = vmatprep.subr.mxu0 0.0
        %4131 = vmatpush2.msra.mxu0 0.0
        %4132 = vmatprep.subr.mxu0 0.0
        %4133 = vmatpush2.msra.mxu0 0.0
        %4134 = vmatprep.subr.mxu0 0.0
        %4135 = vmatpush2.msra.mxu0 0.0
        %4136 = vmatprep.mubr.f32.mxu0 0.0
        %4137 = vmatmul.mubr.f32.gmra.mxu0 %v3846
        %v4138 = vpop.f32.mrf.mxu0
        %v4139 = vadd.f32 %v2273, %v4138
        %v4140 = vpop.f32.mrf.mxu0
        %4141 = vdwg.mxu0
        %4142 = vmatprep.subr.mxu0 0.0
        %4143 = vmatpush1.msra.mxu0 0.0
        %4144 = vmatprep.subr.mxu0 0.0
        %4145 = vmatpush1.msra.mxu0 0.0
        %4146 = vmatprep.subr.mxu0 0.0
        %4147 = vmatpush1.msra.mxu0 0.0
        %4148 = vmatprep.subr.mxu0 0.0
        %4149 = vmatpush1.msra.mxu0 0.0
        %4150 = vmatprep.subr.mxu0 0.0
        %4151 = vmatpush1.msra.mxu0 0.0
        %4152 = vmatprep.subr.mxu0 0.0
        %4153 = vmatpush1.msra.mxu0 0.0
        %4154 = vmatprep.subr.mxu0 0.0
        %4155 = vmatpush1.msra.mxu0 0.0
        %4156 = vmatprep.subr.mxu0 0.0
        %4157 = vmatpush1.msra.mxu0 0.0
        %4158 = vmatprep.subr.mxu0 0.0
        %4159 = vmatpush1.msra.mxu0 %v2352
        %4160 = vmatprep.subr.mxu0 0.0
        %4161 = vmatpush1.msra.mxu0 %v2351
        %4162 = vmatprep.subr.mxu0 0.0
        %4163 = vmatpush1.msra.mxu0 %v2350
        %4164 = vmatprep.subr.mxu0 0.0
        %4165 = vmatpush1.msra.mxu0 %v2349
        %4166 = vmatprep.subr.mxu0 0.0
        %4167 = vmatpush1.msra.mxu0 %v2348
        %4168 = vmatprep.subr.mxu0 0.0
        %4169 = vmatpush1.msra.mxu0 %v2347
        %4170 = vmatprep.subr.mxu0 0.0
        %4171 = vmatpush1.msra.mxu0 %v2346
        %4172 = vmatprep.subr.mxu0 0.0
        %4173 = vmatpush1.msra.mxu0 %v2345
        %4174 = vmatprep.subr.mxu0 0.0
        %4175 = vmatpush2.msra.mxu0 0.0
        %4176 = vmatprep.subr.mxu0 0.0
        %4177 = vmatpush2.msra.mxu0 0.0
        %4178 = vmatprep.subr.mxu0 0.0
        %4179 = vmatpush2.msra.mxu0 0.0
        %4180 = vmatprep.subr.mxu0 0.0
        %4181 = vmatpush2.msra.mxu0 0.0
        %4182 = vmatprep.subr.mxu0 0.0
        %4183 = vmatpush2.msra.mxu0 0.0
        %4184 = vmatprep.subr.mxu0 0.0
        %4185 = vmatpush2.msra.mxu0 0.0
        %4186 = vmatprep.subr.mxu0 0.0
        %4187 = vmatpush2.msra.mxu0 0.0
        %4188 = vmatprep.subr.mxu0 0.0
        %4189 = vmatpush2.msra.mxu0 0.0
        %4190 = vmatprep.subr.mxu0 0.0
        %4191 = vmatpush2.msra.mxu0 0.0
        %4192 = vmatprep.subr.mxu0 0.0
        %4193 = vmatpush2.msra.mxu0 0.0
        %4194 = vmatprep.subr.mxu0 0.0
        %4195 = vmatpush2.msra.mxu0 0.0
        %4196 = vmatprep.subr.mxu0 0.0
        %4197 = vmatpush2.msra.mxu0 0.0
        %4198 = vmatprep.subr.mxu0 0.0
        %4199 = vmatpush2.msra.mxu0 0.0
        %4200 = vmatprep.subr.mxu0 0.0
        %4201 = vmatpush2.msra.mxu0 0.0
        %4202 = vmatprep.subr.mxu0 0.0
        %4203 = vmatpush2.msra.mxu0 0.0
        %4204 = vmatprep.subr.mxu0 0.0
        %4205 = vmatpush2.msra.mxu0 0.0
        %4206 = vmatprep.mubr.f32.mxu0 0.0
        %4207 = vmatmul.mubr.f32.gmra.mxu0 %v3773
        %v4208 = vpop.f32.mrf.mxu0
        %v4209 = vadd.f32 %v2358, %v4208
        %v4210 = vpop.f32.mrf.mxu0
        %4211 = vdwg.mxu0
        %v4212 = vmul.f32 %v3924, %v4209
        %v4213 = vadd.f32 %v4139, %v4212
        %v4214 = vtanh.pop %v4213
        %v4215 = vsub.f32 1.0, %v4071
        %v4216 = vmul.f32 %v4215, %v4214
        %v4217 = vmul.f32 %v4071, %v3514
        %v4218 = vadd.f32 %v4216, %v4217
        %v4219 = vsel %vm1580, %v4218, 0.0
        %4220 = vadd.xlane.f32.xlu0 %v4219
        %v4221 = vpop.xlane.xlu0 %4220
        %v4222 = vmul.f32 %v4221, %v1005
        %v4223 = vsub.f32 %v4218, %v4222
        %v4224 = vmul.f32 %v4223, %v4223
        %v4225 = vsel %vm1580, %v4224, 0.0
        %4226 = vadd.xlane.f32.xlu0 %v4225
        %v4227 = vpop.xlane.xlu0 %4226
        %v4228 = vmul.f32 %v4227, %v1005
        %v4229 = vadd.f32 %v4228, 1e-05
        %v4230 = vrsqrt.pop %v4229
        %v4231 = vmul.f32 %v4223, %v4230
        %v4232 = vmul.f32 %v4231, %v2456
        %v4233 = vadd.f32 %v4232, %v2463
        %v4235 = vsel %vm956, %v4233, 0
        %4237 = vmatprep.subr.mxu0 0.0
        %4238 = vmatpush1.msra.mxu0 0.0
        %4239 = vmatprep.subr.mxu0 0.0
        %4240 = vmatpush1.msra.mxu0 0.0
        %4241 = vmatprep.subr.mxu0 0.0
        %4242 = vmatpush1.msra.mxu0 0.0
        %4243 = vmatprep.subr.mxu0 0.0
        %4244 = vmatpush1.msra.mxu0 0.0
        %4245 = vmatprep.subr.mxu0 0.0
        %4246 = vmatpush1.msra.mxu0 0.0
        %4247 = vmatprep.subr.mxu0 0.0
        %4248 = vmatpush1.msra.mxu0 0.0
        %4249 = vmatprep.subr.mxu0 0.0
        %4250 = vmatpush1.msra.mxu0 0.0
        %4251 = vmatprep.subr.mxu0 0.0
        %4252 = vmatpush1.msra.mxu0 0.0
        %4253 = vmatprep.subr.mxu0 0.0
        %4254 = vmatpush1.msra.mxu0 %v2473
        %4255 = vmatprep.subr.mxu0 0.0
        %4256 = vmatpush1.msra.mxu0 %v2472
        %4257 = vmatprep.subr.mxu0 0.0
        %4258 = vmatpush1.msra.mxu0 %v2471
        %4259 = vmatprep.subr.mxu0 0.0
        %4260 = vmatpush1.msra.mxu0 %v2470
        %4261 = vmatprep.subr.mxu0 0.0
        %4262 = vmatpush1.msra.mxu0 %v2469
        %4263 = vmatprep.subr.mxu0 0.0
        %4264 = vmatpush1.msra.mxu0 %v2468
        %4265 = vmatprep.subr.mxu0 0.0
        %4266 = vmatpush1.msra.mxu0 %v2467
        %4267 = vmatprep.subr.mxu0 0.0
        %4268 = vmatpush1.msra.mxu0 %v2466
        %4269 = vmatprep.subr.mxu0 0.0
        %4270 = vmatpush2.msra.mxu0 0.0
        %4271 = vmatprep.subr.mxu0 0.0
        %4272 = vmatpush2.msra.mxu0 0.0
        %4273 = vmatprep.subr.mxu0 0.0
        %4274 = vmatpush2.msra.mxu0 0.0
        %4275 = vmatprep.subr.mxu0 0.0
        %4276 = vmatpush2.msra.mxu0 0.0
        %4277 = vmatprep.subr.mxu0 0.0
        %4278 = vmatpush2.msra.mxu0 0.0
        %4279 = vmatprep.subr.mxu0 0.0
        %4280 = vmatpush2.msra.mxu0 0.0
        %4281 = vmatprep.subr.mxu0 0.0
        %4282 = vmatpush2.msra.mxu0 0.0
        %4283 = vmatprep.subr.mxu0 0.0
        %4284 = vmatpush2.msra.mxu0 0.0
        %4285 = vmatprep.subr.mxu0 0.0
        %4286 = vmatpush2.msra.mxu0 0.0
        %4287 = vmatprep.subr.mxu0 0.0
        %4288 = vmatpush2.msra.mxu0 0.0
        %4289 = vmatprep.subr.mxu0 0.0
        %4290 = vmatpush2.msra.mxu0 0.0
        %4291 = vmatprep.subr.mxu0 0.0
        %4292 = vmatpush2.msra.mxu0 0.0
        %4293 = vmatprep.subr.mxu0 0.0
        %4294 = vmatpush2.msra.mxu0 0.0
        %4295 = vmatprep.subr.mxu0 0.0
        %4296 = vmatpush2.msra.mxu0 0.0
        %4297 = vmatprep.subr.mxu0 0.0
        %4298 = vmatpush2.msra.mxu0 0.0
        %4299 = vmatprep.subr.mxu0 0.0
        %4300 = vmatpush2.msra.mxu0 0.0
        %4301 = vmatprep.mubr.f32.mxu0 0.0
        %4302 = vmatmul.mubr.f32.gmra.mxu0 %v4235
        %v4303 = vpop.f32.mrf.mxu0
        %v4304 = vadd.f32 %v2479, %v4303
        %v4305 = vpop.f32.mrf.mxu0
        %4306 = vdwg.mxu0
        %v4307 = vmax.f32 %v4304, 0.0
        %4308 = vmatprep.subr.mxu0 0.0
        %4309 = vmatpush1.msra.mxu0 %v2570
        %4310 = vmatprep.subr.mxu0 0.0
        %4311 = vmatpush1.msra.mxu0 %v2569
        %4312 = vmatprep.subr.mxu0 0.0
        %4313 = vmatpush1.msra.mxu0 %v2568
        %4314 = vmatprep.subr.mxu0 0.0
        %4315 = vmatpush1.msra.mxu0 %v2567
        %4316 = vmatprep.subr.mxu0 0.0
        %4317 = vmatpush1.msra.mxu0 %v2566
        %4318 = vmatprep.subr.mxu0 0.0
        %4319 = vmatpush1.msra.mxu0 %v2565
        %4320 = vmatprep.subr.mxu0 0.0
        %4321 = vmatpush1.msra.mxu0 %v2564
        %4322 = vmatprep.subr.mxu0 0.0
        %4323 = vmatpush1.msra.mxu0 %v2563
        %4324 = vmatprep.subr.mxu0 0.0
        %4325 = vmatpush1.msra.mxu0 %v2562
        %4326 = vmatprep.subr.mxu0 0.0
        %4327 = vmatpush1.msra.mxu0 %v2561
        %4328 = vmatprep.subr.mxu0 0.0
        %4329 = vmatpush1.msra.mxu0 %v2560
        %4330 = vmatprep.subr.mxu0 0.0
        %4331 = vmatpush1.msra.mxu0 %v2559
        %4332 = vmatprep.subr.mxu0 0.0
        %4333 = vmatpush1.msra.mxu0 %v2558
        %4334 = vmatprep.subr.mxu0 0.0
        %4335 = vmatpush1.msra.mxu0 %v2557
        %4336 = vmatprep.subr.mxu0 0.0
        %4337 = vmatpush1.msra.mxu0 %v2556
        %4338 = vmatprep.subr.mxu0 0.0
        %4339 = vmatpush1.msra.mxu0 %v2555
        %4340 = vmatprep.subr.mxu0 0.0
        %4341 = vmatpush2.msra.mxu0 0.0
        %4342 = vmatprep.subr.mxu0 0.0
        %4343 = vmatpush2.msra.mxu0 0.0
        %4344 = vmatprep.subr.mxu0 0.0
        %4345 = vmatpush2.msra.mxu0 0.0
        %4346 = vmatprep.subr.mxu0 0.0
        %4347 = vmatpush2.msra.mxu0 0.0
        %4348 = vmatprep.subr.mxu0 0.0
        %4349 = vmatpush2.msra.mxu0 0.0
        %4350 = vmatprep.subr.mxu0 0.0
        %4351 = vmatpush2.msra.mxu0 0.0
        %4352 = vmatprep.subr.mxu0 0.0
        %4353 = vmatpush2.msra.mxu0 0.0
        %4354 = vmatprep.subr.mxu0 0.0
        %4355 = vmatpush2.msra.mxu0 0.0
        %4356 = vmatprep.subr.mxu0 0.0
        %4357 = vmatpush2.msra.mxu0 0.0
        %4358 = vmatprep.subr.mxu0 0.0
        %4359 = vmatpush2.msra.mxu0 0.0
        %4360 = vmatprep.subr.mxu0 0.0
        %4361 = vmatpush2.msra.mxu0 0.0
        %4362 = vmatprep.subr.mxu0 0.0
        %4363 = vmatpush2.msra.mxu0 0.0
        %4364 = vmatprep.subr.mxu0 0.0
        %4365 = vmatpush2.msra.mxu0 0.0
        %4366 = vmatprep.subr.mxu0 0.0
        %4367 = vmatpush2.msra.mxu0 0.0
        %4368 = vmatprep.subr.mxu0 0.0
        %4369 = vmatpush2.msra.mxu0 0.0
        %4370 = vmatprep.subr.mxu0 0.0
        %4371 = vmatpush2.msra.mxu0 0.0
        %4372 = vmatprep.mubr.f32.mxu0 0.0
        %4373 = vmatmul.mubr.f32.gmra.mxu0 %v4307
        %v4374 = vpop.f32.mrf.mxu0
        %v4375 = vadd.f32 0.0, %v4374
        %v4376 = vpop.f32.mrf.mxu0
        %4377 = vdwg.mxu0
        %v4378 = vadd.f32 %v4218, %v4375
        %v4379 = vadd.f32 %v4378, %v2647
        %4380 = vst.msk [vmem:[%s931] sm:$0xf] %vm1580, %v4379
        %s4381 = sand.u32 %s653, 1
        %s4382 = scalar_lea.sflag [#allocation4], %s4381
        %s4383 = sand.u32 %s653, 1
        %s4384 = smul.addr %s4383, 4
        %s4385 = scalar_lea.vmem [#allocation11], %s4384
        // Predicated region
        $region153: #{tpu_custom_call.1} parent=131 // pred_check
          %p4386 = pneg %p663
        $region154: #{tpu_custom_call.1} parent=131 // pred_check_branch
          %4388 = sbr.rel (%p4386) target = $region156
        $region155: #{tpu_custom_call.1} parent=131 // pred_region
          %s4390 = ssub.s32 64, 64
          %4391 = vsyncadd %s4382, %s4390
          %s4392 = smul.addr %s47, 64
          %s4393 = scalar_lea.hbm %s28, %s4392
          %s4395 = sshll.u32 %s4385, 4
          %s4396 = int_to_ptr.vmem [resolvable:$true] %s4395
          %4398 = dma.vmem_to_hbm [thread:$0]  %s4396, 64, %s4393, %s4382
        $region156: #{tpu_custom_call.1} parent=131 // pred_fallthru
          _
      $region132: #{tpu_custom_call.1} parent=5 // pred_fallthru
        _
      %p4399 = scmp.le.s32.totalorder 2, %s42
      // Predicated region
      $region157: #{tpu_custom_call.1} parent=5 // pred_check
        %p4400 = pneg %p4399
      $region158: #{tpu_custom_call.1} parent=5 // pred_check_branch
        %4402 = sbr.rel (%p4400) target = $region160
      $region159: #{tpu_custom_call.1} parent=5 // pred_region
        %s4403 = ssub.s32 %s42, 2
        // Predicated region
        $region161: #{tpu_custom_call.1} parent=159 // pred_check
          %p4404 = pneg %p669
        $region162: #{tpu_custom_call.1} parent=159 // pred_check_branch
          %4406 = sbr.rel (%p4404) target = $region164
        $region163: #{tpu_custom_call.1} parent=159 // pred_region
          %s4407 = sand.u32 %s654, 1
          %s4408 = scalar_lea.sflag [#allocation4], %s4407
          %s4409 = sand.u32 %s654, 1
          %s4410 = smul.addr %s4409, 4
          %s4411 = scalar_lea.vmem [#allocation11], %s4410
          %4412 = dma.done %s4408, 64
        $region164: #{tpu_custom_call.1} parent=159 // pred_fallthru
          _
      $region160: #{tpu_custom_call.1} parent=5 // pred_fallthru
        _
    $region6: #{tpu_custom_call.1} parent=1 // loop_footer
      %s46 = sadd.s32 1, %s42
    $region7: #{tpu_custom_call.1} parent=1 // loop_footer_branch
      %41 = sbr.rel target = $region3
    $region8: #{tpu_custom_call.1} parent=1 // loop_exit
      _
    %4413 = vsyncpa [#allocation3], 1
    %s4414 = scalar_lea.sflag [#allocation3], 1
    %4415 = vsyncpa %s4414, 1
    %4416 = vsyncpa [#allocation6], 1
    %4417 = vsyncpa [#allocation9], 1
    %4418 = vsyncpa [#allocation4], 1
    %s4419 = scalar_lea.sflag [#allocation4], 1
    %4420 = vsyncpa %s4419, 1

</llo_original>
